<compile_context>
chip_gen: v7x
topology: tpu7x:2x2x1
jax: 0.10.0
libtpu: 0.0.40
codegen_flags: <defaults>
</compile_context>

<pallas_src>
import functools

import numpy as np
import jax
import jax.numpy as jnp
from jax import lax
from jax.experimental import pallas as pl


# ----------------------------- config (small) -------------------------------
BATCH = 2
SEQ = 8
HIDDEN = 32
NUM_HEADS = 4
HEAD_DIM = HIDDEN // NUM_HEADS          # 8
INTERMEDIATE = 64
RMS_EPS = 1e-6
ROPE_THETA = 10000.0


def _rms_norm(x, gamma, eps):
    # x: (T, H) f32, gamma: (1, H)
    var = jnp.mean(x * x, axis=-1, keepdims=True)
    return x * lax.rsqrt(var + eps) * gamma


def decoder_kernel(x_ref, cos_ref, sin_ref, g1_ref, g2_ref,
                   wqkv_ref, wo2h_ref, wgu_ref, wd_ref,
                   o_ref, *, num_heads, head_dim, batch, seq, inter, eps):
    f32 = jnp.float32
    x = x_ref[...]                      # (T, H), T = B*S
    cos = cos_ref[...]                  # (T, D)
    sin = sin_ref[...]                  # (T, D)
    T, H = x.shape
    NH, D, B, S, I = num_heads, head_dim, batch, seq, inter
    G = NH * B                          # attention "groups" = heads x batch

    # ---- input_layernorm (RMSNorm) ----
    xn = _rms_norm(x, g1_ref[...], eps)                                   # (T, H)

    # ---- fused q / q_rot / k / k_rot / v projection: ONE batched contraction ----
    w = wqkv_ref[...]                                                     # (5*NH, H, D)
    xb = jnp.broadcast_to(xn, (5 * NH, T, H))                             # tiny; MXU has huge slack
    y = jnp.einsum('nth,nhd->ntd', xb, w, preferred_element_type=f32)     # (5*NH, T, D)
    q  = y[0 * NH:1 * NH]                                                 # (NH, T, D), scale folded
    qr = y[1 * NH:2 * NH]                                                 # == rotate_half(q)
    k  = y[2 * NH:3 * NH]
    kr = y[3 * NH:4 * NH]
    v  = y[4 * NH:5 * NH]

    # ---- RoPE: pure elementwise (rotate-half + 1/sqrt(D) already folded into the weights) ----
    q = q * cos + qr * sin
    k = k * cos + kr * sin

    # ---- attention, batched over all (head, batch) groups at once ----
    q_g = q.reshape(G, S, D)            # (NH, B*S, D) -> (NH*B, S, D): layout-preserving
    k_g = k.reshape(G, S, D)
    v_g = v.reshape(G, S, D)
    s = jnp.einsum('gqd,gkd->gqk', q_g, k_g, preferred_element_type=f32)   # (G, S, S)

    # causal mask built in-kernel; equivalent to (s + additive_mask) clamped at finfo.min
    row = lax.broadcasted_iota(jnp.int32, (S, S), 0)
    col = lax.broadcasted_iota(jnp.int32, (S, S), 1)
    s = jnp.where((col <= row)[None, :, :], s, jnp.finfo(f32).min)

    # softmax in f32; reciprocal lands on the (idle) EUP slot
    m = jnp.max(s, axis=-1, keepdims=True)
    e = jnp.exp(s - m)
    p = e * pl.reciprocal(jnp.sum(e, axis=-1, keepdims=True), approx=True)
    o_g = jnp.einsum('gqk,gkd->gqd', p, v_g, preferred_element_type=f32)   # (G, S, D)

    # ---- output projection: the reference applies o_proj TWICE for pretraining_tp == 1;
    #      (Wo_h @ Wo) is pre-folded per head in the wrapper, summed over heads here ----
    o_h = o_g.reshape(NH, T, D)
    attn = jnp.einsum('ntd,ndh->nth', o_h, wo2h_ref[...],
                      preferred_element_type=f32).sum(axis=0)              # (T, H)

    h1 = x + attn                                                          # residual 1

    # ---- post_attention_layernorm + SwiGLU MLP (gate/up fused, lane-dense 128-wide matmul) ----
    xn2 = _rms_norm(h1, g2_ref[...], eps)
    gu = jnp.dot(xn2, wgu_ref[...], preferred_element_type=f32)            # (T, 2I) = (16, 128)
    gate = gu[:, :I]
    up = gu[:, I:]
    mlp = jnp.dot(gate * jax.nn.sigmoid(gate) * up, wd_ref[...],
                  preferred_element_type=f32)                              # (T, H)

    o_ref[...] = h1 + mlp                                                  # residual 2


# ------------------------------ plain-JAX glue -------------------------------
def rope_cos_sin(seq_len, head_dim, theta=ROPE_THETA):
    inv_freq = 1.0 / (theta ** (jnp.arange(0, head_dim, 2, dtype=jnp.float32) / head_dim))
    pos = jnp.arange(seq_len, dtype=jnp.float32)          # position_ids = arange(seq)
    freqs = jnp.outer(pos, inv_freq)
    emb = jnp.concatenate([freqs, freqs], axis=-1)
    return jnp.cos(emb), jnp.sin(emb)                     # (S, D) each


def _rotate_half_matrix(d):
    # t @ R == concat([-t[d/2:], t[:d/2]])  (exact +/- permutation)
    half = d // 2
    r = np.zeros((d, d), np.float32)
    r[half:, :half] = -np.eye(half, dtype=np.float32)
    r[:half, half:] = np.eye(half, dtype=np.float32)
    return jnp.asarray(r)


@jax.jit
def llama_decoder_layer(x, params):
    B, S, H = x.shape
    T = B * S
    D, NH = HEAD_DIM, NUM_HEADS

    # RoPE tables tiled over batch so the kernel sees a flat (T, D) table.
    cos, sin = rope_cos_sin(S, D)
    cos_t = jnp.tile(cos, (B, 1))                         # (T, D)
    sin_t = jnp.tile(sin, (B, 1))

    # Weight preprocessing (one-time, load-time work in a real model):
    #  * head-stacked Wq/Wk/Wv -> (NH, H, D)
    #  * 1/sqrt(D) attention scale folded into the q weights (exact)
    #  * rotate-half folded into pre-rotated q/k weight copies (exact +/- permutation)
    #  * all five projections stacked along the group dim -> (5*NH, H, D), one kernel einsum
    #  * per-head row-split of Wo, double o_proj folded: Wo2_h = Wo_h @ Wo
    #  * gate/up weights concatenated -> (H, 2*I) for a single lane-dense matmul
    R = _rotate_half_matrix(D)
    scale = 1.0 / np.sqrt(D).astype(np.float32)
    wq_h = params["wq"].reshape(H, NH, D).transpose(1, 0, 2) * scale
    wk_h = params["wk"].reshape(H, NH, D).transpose(1, 0, 2)
    wv_h = params["wv"].reshape(H, NH, D).transpose(1, 0, 2)
    wqr_h = wq_h @ R
    wkr_h = wk_h @ R
    w_qkv = jnp.concatenate([wq_h, wqr_h, wk_h, wkr_h, wv_h], axis=0)     # (5*NH, H, D)

    wo_h = params["wo"].reshape(NH, D, H)
    wo2_h = jnp.einsum('ndh,hj->ndj', wo_h, params["wo"])                 # (NH, D, H)

    w_gu = jnp.concatenate([params["wg"], params["wu"]], axis=1)          # (H, 2*I)

    kernel = functools.partial(decoder_kernel, num_heads=NH, head_dim=D,
                               batch=B, seq=S, inter=INTERMEDIATE, eps=RMS_EPS)
    # Single invocation, no grid: every operand is placed whole in VMEM
    # (the entire problem is a few KB).
    out = pl.pallas_call(
        kernel,
        out_shape=jax.ShapeDtypeStruct((T, H), jnp.float32),
    )(x.reshape(T, H), cos_t, sin_t, params["g1"], params["g2"],
      w_qkv, wo2_h, w_gu, params["wd"])
    return out.reshape(B, S, H)


def init_params(key):
    ks = jax.random.split(key, 7)
    s = 0.05
    return {
        "g1": jnp.ones((1, HIDDEN), jnp.float32),
        "g2": jnp.ones((1, HIDDEN), jnp.float32),
        "wq": s * jax.random.normal(ks[0], (HIDDEN, HIDDEN), jnp.float32),
        "wk": s * jax.random.normal(ks[1], (HIDDEN, HIDDEN), jnp.float32),
        "wv": s * jax.random.normal(ks[2], (HIDDEN, HIDDEN), jnp.float32),
        "wo": s * jax.random.normal(ks[3], (HIDDEN, HIDDEN), jnp.float32),
        "wg": s * jax.random.normal(ks[4], (HIDDEN, INTERMEDIATE), jnp.float32),
        "wu": s * jax.random.normal(ks[5], (HIDDEN, INTERMEDIATE), jnp.float32),
        "wd": s * jax.random.normal(ks[6], (INTERMEDIATE, HIDDEN), jnp.float32),
    }


def reference(x, p):
    # Faithful plain-JAX port of the PyTorch module (pretraining_tp == 1 path).
    B, S, H = x.shape
    D = HEAD_DIM
    cos, sin = rope_cos_sin(S, D)

    def rms(t, g):
        return t * lax.rsqrt(jnp.mean(t * t, -1, keepdims=True) + RMS_EPS) * g

    # additive causal mask, as the HF model would pass it in
    i = jnp.arange(S)[:, None]
    j = jnp.arange(S)[None, :]
    mask = jnp.where(j <= i, 0.0, jnp.finfo(jnp.float32).min)[None, None]   # (1,1,S,S)

    xn = rms(x, p["g1"])
    q = (xn @ p["wq"]).reshape(B, S, NUM_HEADS, D).transpose(0, 2, 1, 3)
    k = (xn @ p["wk"]).reshape(B, S, NUM_HEADS, D).transpose(0, 2, 1, 3)
    v = (xn @ p["wv"]).reshape(B, S, NUM_HEADS, D).transpose(0, 2, 1, 3)

    def rope(t):
        rot = jnp.concatenate([-t[..., D // 2:], t[..., :D // 2]], axis=-1)
        return t * cos[None, None] + rot * sin[None, None]

    q, k = rope(q), rope(k)
    s = jnp.einsum("bhqd,bhkd->bhqk", q, k) / np.sqrt(D) + mask
    s = jnp.maximum(s, jnp.finfo(jnp.float32).min)
    prob = jax.nn.softmax(s, axis=-1)
    o = jnp.einsum("bhqk,bhkd->bhqd", prob, v).transpose(0, 2, 1, 3).reshape(B, S, H)
    o = (o @ p["wo"]) @ p["wo"]          # o_proj applied twice, as in the torch code
    h1 = x + o
    xn2 = rms(h1, p["g2"])
    mlp = (jax.nn.silu(xn2 @ p["wg"]) * (xn2 @ p["wu"])) @ p["wd"]
    return h1 + mlp


if __name__ == "__main__":
    key = jax.random.PRNGKey(0)
    k_x, k_p = jax.random.split(key)
    x = jax.random.normal(k_x, (BATCH, SEQ, HIDDEN), jnp.float32)
    params = init_params(k_p)

    out = jax.block_until_ready(llama_decoder_layer(x, params))
    ref = jax.block_until_ready(reference(x, params))

    assert out.shape == (BATCH, SEQ, HIDDEN)
    err = np.max(np.abs(np.asarray(out) - np.asarray(ref)))
    assert np.allclose(np.asarray(out), np.asarray(ref), atol=1e-2, rtol=1e-2), \
        f"max abs diff {err}"

    print("KERNEL_OK")
</pallas_src>

<mosaic_0001>
module attributes {stable_mosaic.version = 11 : i64} {
  func.func @decoder_kernel(%arg0: memref<16x32xf32, #tpu.memory_space<vmem>>, %arg1: memref<16x8xf32, #tpu.memory_space<vmem>>, %arg2: memref<16x8xf32, #tpu.memory_space<vmem>>, %arg3: memref<1x32xf32, #tpu.memory_space<vmem>>, %arg4: memref<1x32xf32, #tpu.memory_space<vmem>>, %arg5: memref<20x32x8xf32, #tpu.memory_space<vmem>>, %arg6: memref<4x8x32xf32, #tpu.memory_space<vmem>>, %arg7: memref<32x128xf32, #tpu.memory_space<vmem>>, %arg8: memref<64x32xf32, #tpu.memory_space<vmem>>, %arg9: memref<16x32xf32, #tpu.memory_space<vmem>>) attributes {dimension_semantics = [], scalar_prefetch = 0 : i64, scratch_operands = 0 : i64, tpu.core_type = #tpu.core_type<tc>} {
    %c0 = arith.constant 0 : index
    %c0_0 = arith.constant 0 : index
    %0 = vector.load %arg0[%c0, %c0_0] : memref<16x32xf32, #tpu.memory_space<vmem>>, vector<16x32xf32>
    %c0_1 = arith.constant 0 : index
    %c0_2 = arith.constant 0 : index
    %1 = vector.load %arg1[%c0_1, %c0_2] : memref<16x8xf32, #tpu.memory_space<vmem>>, vector<16x8xf32>
    %c0_3 = arith.constant 0 : index
    %c0_4 = arith.constant 0 : index
    %2 = vector.load %arg2[%c0_3, %c0_4] : memref<16x8xf32, #tpu.memory_space<vmem>>, vector<16x8xf32>
    %c0_5 = arith.constant 0 : index
    %c0_6 = arith.constant 0 : index
    %3 = vector.load %arg3[%c0_5, %c0_6] : memref<1x32xf32, #tpu.memory_space<vmem>>, vector<1x32xf32>
    %4 = arith.mulf %0, %0 : vector<16x32xf32>
    %cst = arith.constant dense<0.000000e+00> : vector<16xf32>
    %5 = vector.multi_reduction <add>, %4, %cst [1] : vector<16x32xf32> to vector<16xf32>
    %6 = vector.shape_cast %5 : vector<16xf32> to vector<16x1xf32>
    %cst_7 = arith.constant 3.200000e+01 : f32
    %7 = vector.broadcast %cst_7 : f32 to vector<16x1xf32>
    %8 = arith.divf %6, %7 : vector<16x1xf32>
    %cst_8 = arith.constant 9.99999997E-7 : f32
    %9 = vector.broadcast %cst_8 : f32 to vector<16x1xf32>
    %10 = arith.addf %8, %9 : vector<16x1xf32>
    %11 = math.rsqrt %10 : vector<16x1xf32>
    %12 = vector.broadcast %11 : vector<16x1xf32> to vector<16x32xf32>
    %13 = arith.mulf %0, %12 : vector<16x32xf32>
    %14 = vector.broadcast %3 : vector<1x32xf32> to vector<16x32xf32>
    %15 = arith.mulf %13, %14 : vector<16x32xf32>
    %c0_9 = arith.constant 0 : index
    %c0_10 = arith.constant 0 : index
    %c0_11 = arith.constant 0 : index
    %16 = vector.load %arg5[%c0_9, %c0_10, %c0_11] : memref<20x32x8xf32, #tpu.memory_space<vmem>>, vector<20x32x8xf32>
    %17 = vector.shape_cast %15 : vector<16x32xf32> to vector<1x16x32xf32>
    %18 = vector.broadcast %17 : vector<1x16x32xf32> to vector<20x16x32xf32>
    "tpu.trace_start"() <{level = 10 : i32, message = "nth,nhd->ntd"}> : () -> ()
    %cst_12 = arith.constant dense<0.000000e+00> : vector<20x16x8xf32>
    %19 = tpu.matmul %18, %16, %cst_12 {dimension_numbers = #tpu.dot_dimension_numbers<[2], [1], [1], [2], [0, 0, 0, 1, 1, 2], [0], [0]>} : vector<20x16x32xf32>, vector<20x32x8xf32>, vector<20x16x8xf32> -> vector<20x16x8xf32>
    "tpu.trace_stop"() : () -> ()
    %20 = vector.extract_strided_slice %19 {offsets = [0, 0, 0], sizes = [4, 16, 8], strides = [1, 1, 1]} : vector<20x16x8xf32> to vector<4x16x8xf32>
    %21 = vector.extract_strided_slice %19 {offsets = [4, 0, 0], sizes = [4, 16, 8], strides = [1, 1, 1]} : vector<20x16x8xf32> to vector<4x16x8xf32>
    %22 = vector.extract_strided_slice %19 {offsets = [8, 0, 0], sizes = [4, 16, 8], strides = [1, 1, 1]} : vector<20x16x8xf32> to vector<4x16x8xf32>
    %23 = vector.extract_strided_slice %19 {offsets = [12, 0, 0], sizes = [4, 16, 8], strides = [1, 1, 1]} : vector<20x16x8xf32> to vector<4x16x8xf32>
    %24 = vector.extract_strided_slice %19 {offsets = [16, 0, 0], sizes = [4, 16, 8], strides = [1, 1, 1]} : vector<20x16x8xf32> to vector<4x16x8xf32>
    %25 = vector.shape_cast %1 : vector<16x8xf32> to vector<1x16x8xf32>
    %26 = vector.broadcast %25 : vector<1x16x8xf32> to vector<4x16x8xf32>
    %27 = arith.mulf %20, %26 : vector<4x16x8xf32>
    %28 = vector.shape_cast %2 : vector<16x8xf32> to vector<1x16x8xf32>
    %29 = vector.broadcast %28 : vector<1x16x8xf32> to vector<4x16x8xf32>
    %30 = arith.mulf %21, %29 : vector<4x16x8xf32>
    %31 = arith.addf %27, %30 : vector<4x16x8xf32>
    %32 = vector.shape_cast %1 : vector<16x8xf32> to vector<1x16x8xf32>
    %33 = vector.broadcast %32 : vector<1x16x8xf32> to vector<4x16x8xf32>
    %34 = arith.mulf %22, %33 : vector<4x16x8xf32>
    %35 = vector.shape_cast %2 : vector<16x8xf32> to vector<1x16x8xf32>
    %36 = vector.broadcast %35 : vector<1x16x8xf32> to vector<4x16x8xf32>
    %37 = arith.mulf %23, %36 : vector<4x16x8xf32>
    %38 = arith.addf %34, %37 : vector<4x16x8xf32>
    %39 = vector.shape_cast %31 : vector<4x16x8xf32> to vector<8x8x8xf32>
    %40 = vector.shape_cast %38 : vector<4x16x8xf32> to vector<8x8x8xf32>
    %41 = vector.shape_cast %24 : vector<4x16x8xf32> to vector<8x8x8xf32>
    "tpu.trace_start"() <{level = 10 : i32, message = "gqd,gkd->gqk"}> : () -> ()
    %cst_13 = arith.constant dense<0.000000e+00> : vector<8x8x8xf32>
    %42 = tpu.matmul %39, %40, %cst_13 {dimension_numbers = #tpu.dot_dimension_numbers<[2], [2], [1], [1], [0, 0, 0, 1, 1, 1], [0], [0]>} : vector<8x8x8xf32>, vector<8x8x8xf32>, vector<8x8x8xf32> -> vector<8x8x8xf32>
    "tpu.trace_stop"() : () -> ()
    %43 = tpu.iota {dimensions = array<i32: 0>} : vector<8x8xi32>
    %44 = tpu.iota {dimensions = array<i32: 1>} : vector<8x8xi32>
    %45 = arith.cmpi sle, %44, %43 : vector<8x8xi32>
    %46 = vector.shape_cast %45 : vector<8x8xi1> to vector<1x8x8xi1>
    %cst_14 = arith.constant -3.40282347E+38 : f32
    %47 = vector.shape_cast %46 : vector<1x8x8xi1> to vector<1x8x8xi1>
    %48 = vector.broadcast %47 : vector<1x8x8xi1> to vector<8x8x8xi1>
    %49 = vector.broadcast %cst_14 : f32 to vector<8x8x8xf32>
    %50 = arith.select %48, %42, %49 : vector<8x8x8xi1>, vector<8x8x8xf32>
    %cst_15 = arith.constant dense<0xFF800000> : vector<8x8xf32>
    %51 = vector.multi_reduction <maximumf>, %50, %cst_15 [2] : vector<8x8x8xf32> to vector<8x8xf32>
    %52 = vector.shape_cast %51 : vector<8x8xf32> to vector<8x8x1xf32>
    %53 = vector.broadcast %52 : vector<8x8x1xf32> to vector<8x8x8xf32>
    %54 = arith.subf %50, %53 : vector<8x8x8xf32>
    %55 = math.exp %54 : vector<8x8x8xf32>
    %cst_16 = arith.constant dense<0.000000e+00> : vector<8x8xf32>
    %56 = vector.multi_reduction <add>, %55, %cst_16 [2] : vector<8x8x8xf32> to vector<8x8xf32>
    %57 = vector.shape_cast %56 : vector<8x8xf32> to vector<8x8x1xf32>
    %58 = tpu.reciprocal %57 {approx = true} : vector<8x8x1xf32> -> vector<8x8x1xf32>
    %59 = vector.broadcast %58 : vector<8x8x1xf32> to vector<8x8x8xf32>
    %60 = arith.mulf %55, %59 : vector<8x8x8xf32>
    "tpu.trace_start"() <{level = 10 : i32, message = "gqk,gkd->gqd"}> : () -> ()
    %cst_17 = arith.constant dense<0.000000e+00> : vector<8x8x8xf32>
    %61 = tpu.matmul %60, %41, %cst_17 {dimension_numbers = #tpu.dot_dimension_numbers<[2], [1], [1], [2], [0, 0, 0, 1, 1, 2], [0], [0]>} : vector<8x8x8xf32>, vector<8x8x8xf32>, vector<8x8x8xf32> -> vector<8x8x8xf32>
    "tpu.trace_stop"() : () -> ()
    %62 = vector.shape_cast %61 : vector<8x8x8xf32> to vector<4x16x8xf32>
    %c0_18 = arith.constant 0 : index
    %c0_19 = arith.constant 0 : index
    %c0_20 = arith.constant 0 : index
    %63 = vector.load %arg6[%c0_18, %c0_19, %c0_20] : memref<4x8x32xf32, #tpu.memory_space<vmem>>, vector<4x8x32xf32>
    "tpu.trace_start"() <{level = 10 : i32, message = "ntd,ndh->nth"}> : () -> ()
    %cst_21 = arith.constant dense<0.000000e+00> : vector<4x16x32xf32>
    %64 = tpu.matmul %62, %63, %cst_21 {dimension_numbers = #tpu.dot_dimension_numbers<[2], [1], [1], [2], [0, 0, 0, 1, 1, 2], [0], [0]>} : vector<4x16x8xf32>, vector<4x8x32xf32>, vector<4x16x32xf32> -> vector<4x16x32xf32>
    "tpu.trace_stop"() : () -> ()
    %cst_22 = arith.constant dense<0.000000e+00> : vector<16x32xf32>
    %65 = vector.multi_reduction <add>, %64, %cst_22 [0] : vector<4x16x32xf32> to vector<16x32xf32>
    %66 = arith.addf %0, %65 : vector<16x32xf32>
    %c0_23 = arith.constant 0 : index
    %c0_24 = arith.constant 0 : index
    %67 = vector.load %arg4[%c0_23, %c0_24] : memref<1x32xf32, #tpu.memory_space<vmem>>, vector<1x32xf32>
    %68 = arith.mulf %66, %66 : vector<16x32xf32>
    %cst_25 = arith.constant dense<0.000000e+00> : vector<16xf32>
    %69 = vector.multi_reduction <add>, %68, %cst_25 [1] : vector<16x32xf32> to vector<16xf32>
    %70 = vector.shape_cast %69 : vector<16xf32> to vector<16x1xf32>
    %cst_26 = arith.constant 3.200000e+01 : f32
    %71 = vector.broadcast %cst_26 : f32 to vector<16x1xf32>
    %72 = arith.divf %70, %71 : vector<16x1xf32>
    %cst_27 = arith.constant 9.99999997E-7 : f32
    %73 = vector.broadcast %cst_27 : f32 to vector<16x1xf32>
    %74 = arith.addf %72, %73 : vector<16x1xf32>
    %75 = math.rsqrt %74 : vector<16x1xf32>
    %76 = vector.broadcast %75 : vector<16x1xf32> to vector<16x32xf32>
    %77 = arith.mulf %66, %76 : vector<16x32xf32>
    %78 = vector.broadcast %67 : vector<1x32xf32> to vector<16x32xf32>
    %79 = arith.mulf %77, %78 : vector<16x32xf32>
    %c0_28 = arith.constant 0 : index
    %c0_29 = arith.constant 0 : index
    %80 = vector.load %arg7[%c0_28, %c0_29] : memref<32x128xf32, #tpu.memory_space<vmem>>, vector<32x128xf32>
    %cst_30 = arith.constant dense<0.000000e+00> : vector<16x128xf32>
    %81 = tpu.matmul %79, %80, %cst_30 {dimension_numbers = #tpu.dot_dimension_numbers<[1], [0], [0], [1], [0, 0, 1, 1], [], []>} : vector<16x32xf32>, vector<32x128xf32>, vector<16x128xf32> -> vector<16x128xf32>
    %82 = vector.extract_strided_slice %81 {offsets = [0, 0], sizes = [16, 64], strides = [1, 1]} : vector<16x128xf32> to vector<16x64xf32>
    %83 = vector.extract_strided_slice %81 {offsets = [0, 64], sizes = [16, 64], strides = [1, 1]} : vector<16x128xf32> to vector<16x64xf32>
    %84 = arith.negf %82 : vector<16x64xf32>
    %85 = math.exp %84 : vector<16x64xf32>
    %cst_31 = arith.constant 1.000000e+00 : f32
    %86 = vector.broadcast %cst_31 : f32 to vector<16x64xf32>
    %87 = arith.addf %86, %85 : vector<16x64xf32>
    %88 = arith.divf %86, %87 : vector<16x64xf32>
    %89 = arith.mulf %82, %88 : vector<16x64xf32>
    %90 = arith.mulf %89, %83 : vector<16x64xf32>
    %c0_32 = arith.constant 0 : index
    %c0_33 = arith.constant 0 : index
    %91 = vector.load %arg8[%c0_32, %c0_33] : memref<64x32xf32, #tpu.memory_space<vmem>>, vector<64x32xf32>
    %cst_34 = arith.constant dense<0.000000e+00> : vector<16x32xf32>
    %92 = tpu.matmul %90, %91, %cst_34 {dimension_numbers = #tpu.dot_dimension_numbers<[1], [0], [0], [1], [0, 0, 1, 1], [], []>} : vector<16x64xf32>, vector<64x32xf32>, vector<16x32xf32> -> vector<16x32xf32>
    %93 = arith.addf %66, %92 : vector<16x32xf32>
    %c0_35 = arith.constant 0 : index
    %c0_36 = arith.constant 0 : index
    %94 = vector.load %arg9[%c0_35, %c0_36] : memref<16x32xf32, #tpu.memory_space<vmem>>, vector<16x32xf32>
    tpu.vector_store %arg9[%c0_35, %c0_36], %93 {strides = array<i32>} : memref<16x32xf32, #tpu.memory_space<vmem>>, vector<16x32xf32>,
    return
  }
}

</mosaic_0001>

<llo_original>
// kernel: llama_decoder_layer.1
$region0: #{llama_decoder_layer.1}
  #allocation0 [shape = 'u32[]', space=smem, size = 0x4, offset = 0x4, fixed_abs, tag = 'smem constant byte address 0x4 - core index']
  #allocation1 [shape = 'u32[144,128]{1,0:T(1,128)}', space=vmem, size = 0x12000, scoped, tag = 'internal scratch']
  %s0 = inlined_call_operand.vmem [shape: f32[16,32], index: 0, kind: input, shape index: {}]
  %s1 = inlined_call_operand.vmem [shape: f32[16,8], index: 1, kind: input, shape index: {}]
  %s2 = inlined_call_operand.vmem [shape: f32[16,8], index: 2, kind: input, shape index: {}]
  %s3 = inlined_call_operand.vmem [shape: f32[1,32], index: 3, kind: input, shape index: {}]
  %s4 = inlined_call_operand.vmem [shape: f32[1,32], index: 4, kind: input, shape index: {}]
  %s5 = inlined_call_operand.vmem [shape: f32[20,32,8], index: 5, kind: input, shape index: {}]
  %s6 = inlined_call_operand.vmem [shape: f32[4,8,32], index: 6, kind: input, shape index: {}]
  %s7 = inlined_call_operand.vmem [shape: f32[32,128], index: 7, kind: input, shape index: {}]
  %s8 = inlined_call_operand.vmem [shape: f32[64,32], index: 8, kind: input, shape index: {}]
  %s9 = inlined_call_operand.hbm [shape: f32[16,32], index: 9, kind: output, shape index: {}]
  %s10 = sld [smem:[#allocation0]]
  $region46: #{llama_decoder_layer.1} parent=0
    _
  %s12 = ssub.s32 1, %s10
  %s13 = scalar_select 0, %s12, %s10
  $region1: #{llama_decoder_layer.1} parent=0
    #allocation2 [shape = 'u8[8192]{0}', space=vmem, size = 0x2000, scoped, tag = 'output window, operand 0, single buffered']
    #allocation3 [shape = 's32[1]{0}', space=sflag, size = 0x4, scoped, tag = 'scoped memory for llama_decoder_layer.1']
    %14 = vsyncpa [#allocation3], 0
    // Predicated region
    $region2: #{llama_decoder_layer.1} parent=1 // pred_check
      _
    $region3: #{llama_decoder_layer.1} parent=1 // pred_check_branch
      %16 = sbr.rel (0) target = $region5
    $region4: #{llama_decoder_layer.1} parent=1 // pred_region
      _
    $region5: #{llama_decoder_layer.1} parent=1 // pred_fallthru
      _
    // Predicated region
    $region6: #{llama_decoder_layer.1} parent=1 // pred_check
      _
    $region7: #{llama_decoder_layer.1} parent=1 // pred_check_branch
      %18 = sbr.rel (0) target = $region9
    $region8: #{llama_decoder_layer.1} parent=1 // pred_region
      _
    $region9: #{llama_decoder_layer.1} parent=1 // pred_fallthru
      _
    // Predicated region
    $region10: #{llama_decoder_layer.1} parent=1 // pred_check
      _
    $region11: #{llama_decoder_layer.1} parent=1 // pred_check_branch
      %20 = sbr.rel (0) target = $region13
    $region12: #{llama_decoder_layer.1} parent=1 // pred_region
      _
    $region13: #{llama_decoder_layer.1} parent=1 // pred_fallthru
      _
    // Predicated region
    $region14: #{llama_decoder_layer.1} parent=1 // pred_check
      _
    $region15: #{llama_decoder_layer.1} parent=1 // pred_check_branch
      %22 = sbr.rel (0) target = $region17
    $region16: #{llama_decoder_layer.1} parent=1 // pred_region
      _
    $region17: #{llama_decoder_layer.1} parent=1 // pred_fallthru
      _
    // Predicated region
    $region18: #{llama_decoder_layer.1} parent=1 // pred_check
      _
    $region19: #{llama_decoder_layer.1} parent=1 // pred_check_branch
      %24 = sbr.rel (0) target = $region21
    $region20: #{llama_decoder_layer.1} parent=1 // pred_region
      _
    $region21: #{llama_decoder_layer.1} parent=1 // pred_fallthru
      _
    // Predicated region
    $region22: #{llama_decoder_layer.1} parent=1 // pred_check
      _
    $region23: #{llama_decoder_layer.1} parent=1 // pred_check_branch
      %26 = sbr.rel (0) target = $region25
    $region24: #{llama_decoder_layer.1} parent=1 // pred_region
      _
    $region25: #{llama_decoder_layer.1} parent=1 // pred_fallthru
      _
    // Predicated region
    $region26: #{llama_decoder_layer.1} parent=1 // pred_check
      _
    $region27: #{llama_decoder_layer.1} parent=1 // pred_check_branch
      %28 = sbr.rel (0) target = $region29
    $region28: #{llama_decoder_layer.1} parent=1 // pred_region
      _
    $region29: #{llama_decoder_layer.1} parent=1 // pred_fallthru
      _
    // Predicated region
    $region30: #{llama_decoder_layer.1} parent=1 // pred_check
      _
    $region31: #{llama_decoder_layer.1} parent=1 // pred_check_branch
      %30 = sbr.rel (0) target = $region33
    $region32: #{llama_decoder_layer.1} parent=1 // pred_region
      _
    $region33: #{llama_decoder_layer.1} parent=1 // pred_fallthru
      _
    // Predicated region
    $region34: #{llama_decoder_layer.1} parent=1 // pred_check
      _
    $region35: #{llama_decoder_layer.1} parent=1 // pred_check_branch
      %32 = sbr.rel (0) target = $region37
    $region36: #{llama_decoder_layer.1} parent=1 // pred_region
      _
    $region37: #{llama_decoder_layer.1} parent=1 // pred_fallthru
      _
    %v33 = vld [vmem:[%s0] sm:$0xff]
    %v34 = vld [vmem:[%s0 + $0x8] sm:$0xff]
    %v35 = vld [vmem:[%s1] sm:$0xff]
    %v36 = vld [vmem:[%s1 + $0x8] sm:$0xff]
    %v37 = vld [vmem:[%s2] sm:$0xff]
    %v38 = vld [vmem:[%s2 + $0x8] sm:$0xff]
    %v39 = vld [vmem:[%s3] sm:$0x1]
    %v40 = vmul.f32 %v33, %v33
    %v41 = vmul.f32 %v34, %v34
    %vm42 = vcmask 261120
    %v43 = vsel %vm42, %v40, 0.0
    %44 = vadd.xlane.f32.xlu0 %v43
    %v45 = vpop.xlane.xlu0 %44
    %v46 = vsel %vm42, %v41, 0.0
    %47 = vadd.xlane.f32.xlu0 %v46
    %v48 = vpop.xlane.xlu0 %47
    %v49 = vrcp.pop 32.0
    %v50 = vmul.f32 %v45, %v49
    %v51 = vmul.f32 %v48, %v49
    %v52 = vadd.f32 %v50, 1e-06
    %v53 = vadd.f32 %v51, 1e-06
    %v54 = vrsqrt.pop %v52
    %v55 = vrsqrt.pop %v53
    %v56 = vmul.f32 %v33, %v54
    %v57 = vmul.f32 %v34, %v55
    %v59 = vlaneseq
    %v60 = vshrl.u32 %v59, 7
    %v61 = vsub.s32 0, %v60
    %v62 = vrot.slane %v39, %v61
    %v64 = vmul.f32 %v56, %v62
    %v65 = vmul.f32 %v57, %v62
    %v66 = vld [vmem:[%s5] sm:$0xff]
    %v67 = vld [vmem:[%s5 + $0x8] sm:$0xff]
    %v68 = vld [vmem:[%s5 + $0x10] sm:$0xff]
    %v69 = vld [vmem:[%s5 + $0x18] sm:$0xff]
    %v70 = vld [vmem:[%s5 + $0x20] sm:$0xff]
    %v71 = vld [vmem:[%s5 + $0x28] sm:$0xff]
    %v72 = vld [vmem:[%s5 + $0x30] sm:$0xff]
    %v73 = vld [vmem:[%s5 + $0x38] sm:$0xff]
    %v74 = vld [vmem:[%s5 + $0x40] sm:$0xff]
    %v75 = vld [vmem:[%s5 + $0x48] sm:$0xff]
    %v76 = vld [vmem:[%s5 + $0x50] sm:$0xff]
    %v77 = vld [vmem:[%s5 + $0x58] sm:$0xff]
    %v78 = vld [vmem:[%s5 + $0x60] sm:$0xff]
    %v79 = vld [vmem:[%s5 + $0x68] sm:$0xff]
    %v80 = vld [vmem:[%s5 + $0x70] sm:$0xff]
    %v81 = vld [vmem:[%s5 + $0x78] sm:$0xff]
    %v82 = vld [vmem:[%s5 + $0x80] sm:$0xff]
    %v83 = vld [vmem:[%s5 + $0x88] sm:$0xff]
    %v84 = vld [vmem:[%s5 + $0x90] sm:$0xff]
    %v85 = vld [vmem:[%s5 + $0x98] sm:$0xff]
    %v86 = vld [vmem:[%s5 + $0xa0] sm:$0xff]
    %v87 = vld [vmem:[%s5 + $0xa8] sm:$0xff]
    %v88 = vld [vmem:[%s5 + $0xb0] sm:$0xff]
    %v89 = vld [vmem:[%s5 + $0xb8] sm:$0xff]
    %v90 = vld [vmem:[%s5 + $0xc0] sm:$0xff]
    %v91 = vld [vmem:[%s5 + $0xc8] sm:$0xff]
    %v92 = vld [vmem:[%s5 + $0xd0] sm:$0xff]
    %v93 = vld [vmem:[%s5 + $0xd8] sm:$0xff]
    %v94 = vld [vmem:[%s5 + $0xe0] sm:$0xff]
    %v95 = vld [vmem:[%s5 + $0xe8] sm:$0xff]
    %v96 = vld [vmem:[%s5 + $0xf0] sm:$0xff]
    %v97 = vld [vmem:[%s5 + $0xf8] sm:$0xff]
    %v98 = vld [vmem:[%s5 + $0x100] sm:$0xff]
    %v99 = vld [vmem:[%s5 + $0x108] sm:$0xff]
    %v100 = vld [vmem:[%s5 + $0x110] sm:$0xff]
    %v101 = vld [vmem:[%s5 + $0x118] sm:$0xff]
    %v102 = vld [vmem:[%s5 + $0x120] sm:$0xff]
    %v103 = vld [vmem:[%s5 + $0x128] sm:$0xff]
    %v104 = vld [vmem:[%s5 + $0x130] sm:$0xff]
    %v105 = vld [vmem:[%s5 + $0x138] sm:$0xff]
    %v106 = vld [vmem:[%s5 + $0x140] sm:$0xff]
    %v107 = vld [vmem:[%s5 + $0x148] sm:$0xff]
    %v108 = vld [vmem:[%s5 + $0x150] sm:$0xff]
    %v109 = vld [vmem:[%s5 + $0x158] sm:$0xff]
    %v110 = vld [vmem:[%s5 + $0x160] sm:$0xff]
    %v111 = vld [vmem:[%s5 + $0x168] sm:$0xff]
    %v112 = vld [vmem:[%s5 + $0x170] sm:$0xff]
    %v113 = vld [vmem:[%s5 + $0x178] sm:$0xff]
    %v114 = vld [vmem:[%s5 + $0x180] sm:$0xff]
    %v115 = vld [vmem:[%s5 + $0x188] sm:$0xff]
    %v116 = vld [vmem:[%s5 + $0x190] sm:$0xff]
    %v117 = vld [vmem:[%s5 + $0x198] sm:$0xff]
    %v118 = vld [vmem:[%s5 + $0x1a0] sm:$0xff]
    %v119 = vld [vmem:[%s5 + $0x1a8] sm:$0xff]
    %v120 = vld [vmem:[%s5 + $0x1b0] sm:$0xff]
    %v121 = vld [vmem:[%s5 + $0x1b8] sm:$0xff]
    %v122 = vld [vmem:[%s5 + $0x1c0] sm:$0xff]
    %v123 = vld [vmem:[%s5 + $0x1c8] sm:$0xff]
    %v124 = vld [vmem:[%s5 + $0x1d0] sm:$0xff]
    %v125 = vld [vmem:[%s5 + $0x1d8] sm:$0xff]
    %v126 = vld [vmem:[%s5 + $0x1e0] sm:$0xff]
    %v127 = vld [vmem:[%s5 + $0x1e8] sm:$0xff]
    %v128 = vld [vmem:[%s5 + $0x1f0] sm:$0xff]
    %v129 = vld [vmem:[%s5 + $0x1f8] sm:$0xff]
    %v130 = vld [vmem:[%s5 + $0x200] sm:$0xff]
    %v131 = vld [vmem:[%s5 + $0x208] sm:$0xff]
    %v132 = vld [vmem:[%s5 + $0x210] sm:$0xff]
    %v133 = vld [vmem:[%s5 + $0x218] sm:$0xff]
    %v134 = vld [vmem:[%s5 + $0x220] sm:$0xff]
    %v135 = vld [vmem:[%s5 + $0x228] sm:$0xff]
    %v136 = vld [vmem:[%s5 + $0x230] sm:$0xff]
    %v137 = vld [vmem:[%s5 + $0x238] sm:$0xff]
    %v138 = vld [vmem:[%s5 + $0x240] sm:$0xff]
    %v139 = vld [vmem:[%s5 + $0x248] sm:$0xff]
    %v140 = vld [vmem:[%s5 + $0x250] sm:$0xff]
    %v141 = vld [vmem:[%s5 + $0x258] sm:$0xff]
    %v142 = vld [vmem:[%s5 + $0x260] sm:$0xff]
    %v143 = vld [vmem:[%s5 + $0x268] sm:$0xff]
    %v144 = vld [vmem:[%s5 + $0x270] sm:$0xff]
    %v145 = vld [vmem:[%s5 + $0x278] sm:$0xff]
    %v147 = vsel %vm42, %v64, 0
    %v150 = vsel %vm42, %v65, 0
    %152 = vmatprep.subr.mxu0 0.0
    %153 = vmatpush1.msra.mxu0 %v66
    %154 = vmatprep.subr.mxu0 0.0
    %155 = vmatpush1.msra.mxu0 %v67
    %156 = vmatprep.subr.mxu0 0.0
    %157 = vmatpush1.msra.mxu0 %v68
    %158 = vmatprep.subr.mxu0 0.0
    %159 = vmatpush1.msra.mxu0 %v69
    %160 = vmatprep.subr.mxu0 0.0
    %161 = vmatpush1.msra.mxu0 0.0
    %162 = vmatprep.subr.mxu0 0.0
    %163 = vmatpush1.msra.mxu0 0.0
    %164 = vmatprep.subr.mxu0 0.0
    %165 = vmatpush1.msra.mxu0 0.0
    %166 = vmatprep.subr.mxu0 0.0
    %167 = vmatpush1.msra.mxu0 0.0
    %168 = vmatprep.subr.mxu0 0.0
    %169 = vmatpush1.msra.mxu0 0.0
    %170 = vmatprep.subr.mxu0 0.0
    %171 = vmatpush1.msra.mxu0 0.0
    %172 = vmatprep.subr.mxu0 0.0
    %173 = vmatpush1.msra.mxu0 0.0
    %174 = vmatprep.subr.mxu0 0.0
    %175 = vmatpush1.msra.mxu0 0.0
    %176 = vmatprep.subr.mxu0 0.0
    %177 = vmatpush1.msra.mxu0 0.0
    %178 = vmatprep.subr.mxu0 0.0
    %179 = vmatpush1.msra.mxu0 0.0
    %180 = vmatprep.subr.mxu0 0.0
    %181 = vmatpush1.msra.mxu0 0.0
    %182 = vmatprep.subr.mxu0 0.0
    %183 = vmatpush1.msra.mxu0 0.0
    %184 = vmatprep.subr.mxu0 0.0
    %185 = vmatpush1.msra.mxu0 0.0
    %186 = vmatprep.subr.mxu0 0.0
    %187 = vmatpush1.msra.mxu0 0.0
    %188 = vmatprep.subr.mxu0 0.0
    %189 = vmatpush1.msra.mxu0 0.0
    %190 = vmatprep.subr.mxu0 0.0
    %191 = vmatpush1.msra.mxu0 0.0
    %192 = vmatprep.subr.mxu0 0.0
    %193 = vmatpush1.msra.mxu0 0.0
    %194 = vmatprep.subr.mxu0 0.0
    %195 = vmatpush1.msra.mxu0 0.0
    %196 = vmatprep.subr.mxu0 0.0
    %197 = vmatpush1.msra.mxu0 0.0
    %198 = vmatprep.subr.mxu0 0.0
    %199 = vmatpush1.msra.mxu0 0.0
    %200 = vmatprep.subr.mxu0 0.0
    %201 = vmatpush1.msra.mxu0 0.0
    %202 = vmatprep.subr.mxu0 0.0
    %203 = vmatpush1.msra.mxu0 0.0
    %204 = vmatprep.subr.mxu0 0.0
    %205 = vmatpush1.msra.mxu0 0.0
    %206 = vmatprep.subr.mxu0 0.0
    %207 = vmatpush1.msra.mxu0 0.0
    %208 = vmatprep.subr.mxu0 0.0
    %209 = vmatpush1.msra.mxu0 0.0
    %210 = vmatprep.subr.mxu0 0.0
    %211 = vmatpush1.msra.mxu0 0.0
    %212 = vmatprep.subr.mxu0 0.0
    %213 = vmatpush1.msra.mxu0 0.0
    %214 = vmatprep.subr.mxu0 0.0
    %215 = vmatpush1.msra.mxu0 0.0
    %216 = vmatprep.mubr.f32.mxu0 0.0
    %217 = vmatmul.mubr.f32.gmra.mrb[0].mxu0 %v147
    %v218 = vpop.f32.mrb[0].mxu0
    %v219 = vadd.f32 0.0, %v218
    %v220 = vpop.f32.mrb[0].mxu0
    %221 = vmatprep.mubr.f32.mxu0 0.0
    %222 = vmatmul.mubr.f32.gmra.mrb[0].mxu0 %v150
    %v223 = vpop.f32.mrb[0].mxu0
    %v224 = vadd.f32 0.0, %v223
    %v225 = vpop.f32.mrb[0].mxu0
    %226 = vdwg.mxu0
    %227 = vmatprep.subr.mxu0 0.0
    %228 = vmatpush1.msra.mxu0 %v70
    %229 = vmatprep.subr.mxu0 0.0
    %230 = vmatpush1.msra.mxu0 %v71
    %231 = vmatprep.subr.mxu0 0.0
    %232 = vmatpush1.msra.mxu0 %v72
    %233 = vmatprep.subr.mxu0 0.0
    %234 = vmatpush1.msra.mxu0 %v73
    %235 = vmatprep.subr.mxu0 0.0
    %236 = vmatpush1.msra.mxu0 0.0
    %237 = vmatprep.subr.mxu0 0.0
    %238 = vmatpush1.msra.mxu0 0.0
    %239 = vmatprep.subr.mxu0 0.0
    %240 = vmatpush1.msra.mxu0 0.0
    %241 = vmatprep.subr.mxu0 0.0
    %242 = vmatpush1.msra.mxu0 0.0
    %243 = vmatprep.subr.mxu0 0.0
    %244 = vmatpush1.msra.mxu0 0.0
    %245 = vmatprep.subr.mxu0 0.0
    %246 = vmatpush1.msra.mxu0 0.0
    %247 = vmatprep.subr.mxu0 0.0
    %248 = vmatpush1.msra.mxu0 0.0
    %249 = vmatprep.subr.mxu0 0.0
    %250 = vmatpush1.msra.mxu0 0.0
    %251 = vmatprep.subr.mxu0 0.0
    %252 = vmatpush1.msra.mxu0 0.0
    %253 = vmatprep.subr.mxu0 0.0
    %254 = vmatpush1.msra.mxu0 0.0
    %255 = vmatprep.subr.mxu0 0.0
    %256 = vmatpush1.msra.mxu0 0.0
    %257 = vmatprep.subr.mxu0 0.0
    %258 = vmatpush1.msra.mxu0 0.0
    %259 = vmatprep.subr.mxu0 0.0
    %260 = vmatpush1.msra.mxu0 0.0
    %261 = vmatprep.subr.mxu0 0.0
    %262 = vmatpush1.msra.mxu0 0.0
    %263 = vmatprep.subr.mxu0 0.0
    %264 = vmatpush1.msra.mxu0 0.0
    %265 = vmatprep.subr.mxu0 0.0
    %266 = vmatpush1.msra.mxu0 0.0
    %267 = vmatprep.subr.mxu0 0.0
    %268 = vmatpush1.msra.mxu0 0.0
    %269 = vmatprep.subr.mxu0 0.0
    %270 = vmatpush1.msra.mxu0 0.0
    %271 = vmatprep.subr.mxu0 0.0
    %272 = vmatpush1.msra.mxu0 0.0
    %273 = vmatprep.subr.mxu0 0.0
    %274 = vmatpush1.msra.mxu0 0.0
    %275 = vmatprep.subr.mxu0 0.0
    %276 = vmatpush1.msra.mxu0 0.0
    %277 = vmatprep.subr.mxu0 0.0
    %278 = vmatpush1.msra.mxu0 0.0
    %279 = vmatprep.subr.mxu0 0.0
    %280 = vmatpush1.msra.mxu0 0.0
    %281 = vmatprep.subr.mxu0 0.0
    %282 = vmatpush1.msra.mxu0 0.0
    %283 = vmatprep.subr.mxu0 0.0
    %284 = vmatpush1.msra.mxu0 0.0
    %285 = vmatprep.subr.mxu0 0.0
    %286 = vmatpush1.msra.mxu0 0.0
    %287 = vmatprep.subr.mxu0 0.0
    %288 = vmatpush1.msra.mxu0 0.0
    %289 = vmatprep.subr.mxu0 0.0
    %290 = vmatpush1.msra.mxu0 0.0
    %291 = vmatprep.mubr.f32.mxu0 0.0
    %292 = vmatmul.mubr.f32.gmra.mrb[0].mxu0 %v147
    %v293 = vpop.f32.mrb[0].mxu0
    %v294 = vadd.f32 0.0, %v293
    %v295 = vpop.f32.mrb[0].mxu0
    %296 = vmatprep.mubr.f32.mxu0 0.0
    %297 = vmatmul.mubr.f32.gmra.mrb[0].mxu0 %v150
    %v298 = vpop.f32.mrb[0].mxu0
    %v299 = vadd.f32 0.0, %v298
    %v300 = vpop.f32.mrb[0].mxu0
    %301 = vdwg.mxu0
    %302 = vmatprep.subr.mxu0 0.0
    %303 = vmatpush1.msra.mxu0 %v74
    %304 = vmatprep.subr.mxu0 0.0
    %305 = vmatpush1.msra.mxu0 %v75
    %306 = vmatprep.subr.mxu0 0.0
    %307 = vmatpush1.msra.mxu0 %v76
    %308 = vmatprep.subr.mxu0 0.0
    %309 = vmatpush1.msra.mxu0 %v77
    %310 = vmatprep.subr.mxu0 0.0
    %311 = vmatpush1.msra.mxu0 0.0
    %312 = vmatprep.subr.mxu0 0.0
    %313 = vmatpush1.msra.mxu0 0.0
    %314 = vmatprep.subr.mxu0 0.0
    %315 = vmatpush1.msra.mxu0 0.0
    %316 = vmatprep.subr.mxu0 0.0
    %317 = vmatpush1.msra.mxu0 0.0
    %318 = vmatprep.subr.mxu0 0.0
    %319 = vmatpush1.msra.mxu0 0.0
    %320 = vmatprep.subr.mxu0 0.0
    %321 = vmatpush1.msra.mxu0 0.0
    %322 = vmatprep.subr.mxu0 0.0
    %323 = vmatpush1.msra.mxu0 0.0
    %324 = vmatprep.subr.mxu0 0.0
    %325 = vmatpush1.msra.mxu0 0.0
    %326 = vmatprep.subr.mxu0 0.0
    %327 = vmatpush1.msra.mxu0 0.0
    %328 = vmatprep.subr.mxu0 0.0
    %329 = vmatpush1.msra.mxu0 0.0
    %330 = vmatprep.subr.mxu0 0.0
    %331 = vmatpush1.msra.mxu0 0.0
    %332 = vmatprep.subr.mxu0 0.0
    %333 = vmatpush1.msra.mxu0 0.0
    %334 = vmatprep.subr.mxu0 0.0
    %335 = vmatpush1.msra.mxu0 0.0
    %336 = vmatprep.subr.mxu0 0.0
    %337 = vmatpush1.msra.mxu0 0.0
    %338 = vmatprep.subr.mxu0 0.0
    %339 = vmatpush1.msra.mxu0 0.0
    %340 = vmatprep.subr.mxu0 0.0
    %341 = vmatpush1.msra.mxu0 0.0
    %342 = vmatprep.subr.mxu0 0.0
    %343 = vmatpush1.msra.mxu0 0.0
    %344 = vmatprep.subr.mxu0 0.0
    %345 = vmatpush1.msra.mxu0 0.0
    %346 = vmatprep.subr.mxu0 0.0
    %347 = vmatpush1.msra.mxu0 0.0
    %348 = vmatprep.subr.mxu0 0.0
    %349 = vmatpush1.msra.mxu0 0.0
    %350 = vmatprep.subr.mxu0 0.0
    %351 = vmatpush1.msra.mxu0 0.0
    %352 = vmatprep.subr.mxu0 0.0
    %353 = vmatpush1.msra.mxu0 0.0
    %354 = vmatprep.subr.mxu0 0.0
    %355 = vmatpush1.msra.mxu0 0.0
    %356 = vmatprep.subr.mxu0 0.0
    %357 = vmatpush1.msra.mxu0 0.0
    %358 = vmatprep.subr.mxu0 0.0
    %359 = vmatpush1.msra.mxu0 0.0
    %360 = vmatprep.subr.mxu0 0.0
    %361 = vmatpush1.msra.mxu0 0.0
    %362 = vmatprep.subr.mxu0 0.0
    %363 = vmatpush1.msra.mxu0 0.0
    %364 = vmatprep.subr.mxu0 0.0
    %365 = vmatpush1.msra.mxu0 0.0
    %366 = vmatprep.mubr.f32.mxu0 0.0
    %367 = vmatmul.mubr.f32.gmra.mrb[0].mxu0 %v147
    %v368 = vpop.f32.mrb[0].mxu0
    %v369 = vadd.f32 0.0, %v368
    %v370 = vpop.f32.mrb[0].mxu0
    %371 = vmatprep.mubr.f32.mxu0 0.0
    %372 = vmatmul.mubr.f32.gmra.mrb[0].mxu0 %v150
    %v373 = vpop.f32.mrb[0].mxu0
    %v374 = vadd.f32 0.0, %v373
    %v375 = vpop.f32.mrb[0].mxu0
    %376 = vdwg.mxu0
    %377 = vmatprep.subr.mxu0 0.0
    %378 = vmatpush1.msra.mxu0 %v78
    %379 = vmatprep.subr.mxu0 0.0
    %380 = vmatpush1.msra.mxu0 %v79
    %381 = vmatprep.subr.mxu0 0.0
    %382 = vmatpush1.msra.mxu0 %v80
    %383 = vmatprep.subr.mxu0 0.0
    %384 = vmatpush1.msra.mxu0 %v81
    %385 = vmatprep.subr.mxu0 0.0
    %386 = vmatpush1.msra.mxu0 0.0
    %387 = vmatprep.subr.mxu0 0.0
    %388 = vmatpush1.msra.mxu0 0.0
    %389 = vmatprep.subr.mxu0 0.0
    %390 = vmatpush1.msra.mxu0 0.0
    %391 = vmatprep.subr.mxu0 0.0
    %392 = vmatpush1.msra.mxu0 0.0
    %393 = vmatprep.subr.mxu0 0.0
    %394 = vmatpush1.msra.mxu0 0.0
    %395 = vmatprep.subr.mxu0 0.0
    %396 = vmatpush1.msra.mxu0 0.0
    %397 = vmatprep.subr.mxu0 0.0
    %398 = vmatpush1.msra.mxu0 0.0
    %399 = vmatprep.subr.mxu0 0.0
    %400 = vmatpush1.msra.mxu0 0.0
    %401 = vmatprep.subr.mxu0 0.0
    %402 = vmatpush1.msra.mxu0 0.0
    %403 = vmatprep.subr.mxu0 0.0
    %404 = vmatpush1.msra.mxu0 0.0
    %405 = vmatprep.subr.mxu0 0.0
    %406 = vmatpush1.msra.mxu0 0.0
    %407 = vmatprep.subr.mxu0 0.0
    %408 = vmatpush1.msra.mxu0 0.0
    %409 = vmatprep.subr.mxu0 0.0
    %410 = vmatpush1.msra.mxu0 0.0
    %411 = vmatprep.subr.mxu0 0.0
    %412 = vmatpush1.msra.mxu0 0.0
    %413 = vmatprep.subr.mxu0 0.0
    %414 = vmatpush1.msra.mxu0 0.0
    %415 = vmatprep.subr.mxu0 0.0
    %416 = vmatpush1.msra.mxu0 0.0
    %417 = vmatprep.subr.mxu0 0.0
    %418 = vmatpush1.msra.mxu0 0.0
    %419 = vmatprep.subr.mxu0 0.0
    %420 = vmatpush1.msra.mxu0 0.0
    %421 = vmatprep.subr.mxu0 0.0
    %422 = vmatpush1.msra.mxu0 0.0
    %423 = vmatprep.subr.mxu0 0.0
    %424 = vmatpush1.msra.mxu0 0.0
    %425 = vmatprep.subr.mxu0 0.0
    %426 = vmatpush1.msra.mxu0 0.0
    %427 = vmatprep.subr.mxu0 0.0
    %428 = vmatpush1.msra.mxu0 0.0
    %429 = vmatprep.subr.mxu0 0.0
    %430 = vmatpush1.msra.mxu0 0.0
    %431 = vmatprep.subr.mxu0 0.0
    %432 = vmatpush1.msra.mxu0 0.0
    %433 = vmatprep.subr.mxu0 0.0
    %434 = vmatpush1.msra.mxu0 0.0
    %435 = vmatprep.subr.mxu0 0.0
    %436 = vmatpush1.msra.mxu0 0.0
    %437 = vmatprep.subr.mxu0 0.0
    %438 = vmatpush1.msra.mxu0 0.0
    %439 = vmatprep.subr.mxu0 0.0
    %440 = vmatpush1.msra.mxu0 0.0
    %441 = vmatprep.mubr.f32.mxu0 0.0
    %442 = vmatmul.mubr.f32.gmra.mrb[0].mxu0 %v147
    %v443 = vpop.f32.mrb[0].mxu0
    %v444 = vadd.f32 0.0, %v443
    %v445 = vpop.f32.mrb[0].mxu0
    %446 = vmatprep.mubr.f32.mxu0 0.0
    %447 = vmatmul.mubr.f32.gmra.mrb[0].mxu0 %v150
    %v448 = vpop.f32.mrb[0].mxu0
    %v449 = vadd.f32 0.0, %v448
    %v450 = vpop.f32.mrb[0].mxu0
    %451 = vdwg.mxu0
    %452 = vmatprep.subr.mxu0 0.0
    %453 = vmatpush1.msra.mxu0 %v82
    %454 = vmatprep.subr.mxu0 0.0
    %455 = vmatpush1.msra.mxu0 %v83
    %456 = vmatprep.subr.mxu0 0.0
    %457 = vmatpush1.msra.mxu0 %v84
    %458 = vmatprep.subr.mxu0 0.0
    %459 = vmatpush1.msra.mxu0 %v85
    %460 = vmatprep.subr.mxu0 0.0
    %461 = vmatpush1.msra.mxu0 0.0
    %462 = vmatprep.subr.mxu0 0.0
    %463 = vmatpush1.msra.mxu0 0.0
    %464 = vmatprep.subr.mxu0 0.0
    %465 = vmatpush1.msra.mxu0 0.0
    %466 = vmatprep.subr.mxu0 0.0
    %467 = vmatpush1.msra.mxu0 0.0
    %468 = vmatprep.subr.mxu0 0.0
    %469 = vmatpush1.msra.mxu0 0.0
    %470 = vmatprep.subr.mxu0 0.0
    %471 = vmatpush1.msra.mxu0 0.0
    %472 = vmatprep.subr.mxu0 0.0
    %473 = vmatpush1.msra.mxu0 0.0
    %474 = vmatprep.subr.mxu0 0.0
    %475 = vmatpush1.msra.mxu0 0.0
    %476 = vmatprep.subr.mxu0 0.0
    %477 = vmatpush1.msra.mxu0 0.0
    %478 = vmatprep.subr.mxu0 0.0
    %479 = vmatpush1.msra.mxu0 0.0
    %480 = vmatprep.subr.mxu0 0.0
    %481 = vmatpush1.msra.mxu0 0.0
    %482 = vmatprep.subr.mxu0 0.0
    %483 = vmatpush1.msra.mxu0 0.0
    %484 = vmatprep.subr.mxu0 0.0
    %485 = vmatpush1.msra.mxu0 0.0
    %486 = vmatprep.subr.mxu0 0.0
    %487 = vmatpush1.msra.mxu0 0.0
    %488 = vmatprep.subr.mxu0 0.0
    %489 = vmatpush1.msra.mxu0 0.0
    %490 = vmatprep.subr.mxu0 0.0
    %491 = vmatpush1.msra.mxu0 0.0
    %492 = vmatprep.subr.mxu0 0.0
    %493 = vmatpush1.msra.mxu0 0.0
    %494 = vmatprep.subr.mxu0 0.0
    %495 = vmatpush1.msra.mxu0 0.0
    %496 = vmatprep.subr.mxu0 0.0
    %497 = vmatpush1.msra.mxu0 0.0
    %498 = vmatprep.subr.mxu0 0.0
    %499 = vmatpush1.msra.mxu0 0.0
    %500 = vmatprep.subr.mxu0 0.0
    %501 = vmatpush1.msra.mxu0 0.0
    %502 = vmatprep.subr.mxu0 0.0
    %503 = vmatpush1.msra.mxu0 0.0
    %504 = vmatprep.subr.mxu0 0.0
    %505 = vmatpush1.msra.mxu0 0.0
    %506 = vmatprep.subr.mxu0 0.0
    %507 = vmatpush1.msra.mxu0 0.0
    %508 = vmatprep.subr.mxu0 0.0
    %509 = vmatpush1.msra.mxu0 0.0
    %510 = vmatprep.subr.mxu0 0.0
    %511 = vmatpush1.msra.mxu0 0.0
    %512 = vmatprep.subr.mxu0 0.0
    %513 = vmatpush1.msra.mxu0 0.0
    %514 = vmatprep.subr.mxu0 0.0
    %515 = vmatpush1.msra.mxu0 0.0
    %516 = vmatprep.mubr.f32.mxu0 0.0
    %517 = vmatmul.mubr.f32.gmra.mrb[0].mxu0 %v147
    %v518 = vpop.f32.mrb[0].mxu0
    %v519 = vadd.f32 0.0, %v518
    %v520 = vpop.f32.mrb[0].mxu0
    %521 = vmatprep.mubr.f32.mxu0 0.0
    %522 = vmatmul.mubr.f32.gmra.mrb[0].mxu0 %v150
    %v523 = vpop.f32.mrb[0].mxu0
    %v524 = vadd.f32 0.0, %v523
    %v525 = vpop.f32.mrb[0].mxu0
    %526 = vdwg.mxu0
    %527 = vmatprep.subr.mxu0 0.0
    %528 = vmatpush1.msra.mxu0 %v86
    %529 = vmatprep.subr.mxu0 0.0
    %530 = vmatpush1.msra.mxu0 %v87
    %531 = vmatprep.subr.mxu0 0.0
    %532 = vmatpush1.msra.mxu0 %v88
    %533 = vmatprep.subr.mxu0 0.0
    %534 = vmatpush1.msra.mxu0 %v89
    %535 = vmatprep.subr.mxu0 0.0
    %536 = vmatpush1.msra.mxu0 0.0
    %537 = vmatprep.subr.mxu0 0.0
    %538 = vmatpush1.msra.mxu0 0.0
    %539 = vmatprep.subr.mxu0 0.0
    %540 = vmatpush1.msra.mxu0 0.0
    %541 = vmatprep.subr.mxu0 0.0
    %542 = vmatpush1.msra.mxu0 0.0
    %543 = vmatprep.subr.mxu0 0.0
    %544 = vmatpush1.msra.mxu0 0.0
    %545 = vmatprep.subr.mxu0 0.0
    %546 = vmatpush1.msra.mxu0 0.0
    %547 = vmatprep.subr.mxu0 0.0
    %548 = vmatpush1.msra.mxu0 0.0
    %549 = vmatprep.subr.mxu0 0.0
    %550 = vmatpush1.msra.mxu0 0.0
    %551 = vmatprep.subr.mxu0 0.0
    %552 = vmatpush1.msra.mxu0 0.0
    %553 = vmatprep.subr.mxu0 0.0
    %554 = vmatpush1.msra.mxu0 0.0
    %555 = vmatprep.subr.mxu0 0.0
    %556 = vmatpush1.msra.mxu0 0.0
    %557 = vmatprep.subr.mxu0 0.0
    %558 = vmatpush1.msra.mxu0 0.0
    %559 = vmatprep.subr.mxu0 0.0
    %560 = vmatpush1.msra.mxu0 0.0
    %561 = vmatprep.subr.mxu0 0.0
    %562 = vmatpush1.msra.mxu0 0.0
    %563 = vmatprep.subr.mxu0 0.0
    %564 = vmatpush1.msra.mxu0 0.0
    %565 = vmatprep.subr.mxu0 0.0
    %566 = vmatpush1.msra.mxu0 0.0
    %567 = vmatprep.subr.mxu0 0.0
    %568 = vmatpush1.msra.mxu0 0.0
    %569 = vmatprep.subr.mxu0 0.0
    %570 = vmatpush1.msra.mxu0 0.0
    %571 = vmatprep.subr.mxu0 0.0
    %572 = vmatpush1.msra.mxu0 0.0
    %573 = vmatprep.subr.mxu0 0.0
    %574 = vmatpush1.msra.mxu0 0.0
    %575 = vmatprep.subr.mxu0 0.0
    %576 = vmatpush1.msra.mxu0 0.0
    %577 = vmatprep.subr.mxu0 0.0
    %578 = vmatpush1.msra.mxu0 0.0
    %579 = vmatprep.subr.mxu0 0.0
    %580 = vmatpush1.msra.mxu0 0.0
    %581 = vmatprep.subr.mxu0 0.0
    %582 = vmatpush1.msra.mxu0 0.0
    %583 = vmatprep.subr.mxu0 0.0
    %584 = vmatpush1.msra.mxu0 0.0
    %585 = vmatprep.subr.mxu0 0.0
    %586 = vmatpush1.msra.mxu0 0.0
    %587 = vmatprep.subr.mxu0 0.0
    %588 = vmatpush1.msra.mxu0 0.0
    %589 = vmatprep.subr.mxu0 0.0
    %590 = vmatpush1.msra.mxu0 0.0
    %591 = vmatprep.mubr.f32.mxu0 0.0
    %592 = vmatmul.mubr.f32.gmra.mrb[0].mxu0 %v147
    %v593 = vpop.f32.mrb[0].mxu0
    %v594 = vadd.f32 0.0, %v593
    %v595 = vpop.f32.mrb[0].mxu0
    %596 = vmatprep.mubr.f32.mxu0 0.0
    %597 = vmatmul.mubr.f32.gmra.mrb[0].mxu0 %v150
    %v598 = vpop.f32.mrb[0].mxu0
    %v599 = vadd.f32 0.0, %v598
    %v600 = vpop.f32.mrb[0].mxu0
    %601 = vdwg.mxu0
    %602 = vmatprep.subr.mxu0 0.0
    %603 = vmatpush1.msra.mxu0 %v90
    %604 = vmatprep.subr.mxu0 0.0
    %605 = vmatpush1.msra.mxu0 %v91
    %606 = vmatprep.subr.mxu0 0.0
    %607 = vmatpush1.msra.mxu0 %v92
    %608 = vmatprep.subr.mxu0 0.0
    %609 = vmatpush1.msra.mxu0 %v93
    %610 = vmatprep.subr.mxu0 0.0
    %611 = vmatpush1.msra.mxu0 0.0
    %612 = vmatprep.subr.mxu0 0.0
    %613 = vmatpush1.msra.mxu0 0.0
    %614 = vmatprep.subr.mxu0 0.0
    %615 = vmatpush1.msra.mxu0 0.0
    %616 = vmatprep.subr.mxu0 0.0
    %617 = vmatpush1.msra.mxu0 0.0
    %618 = vmatprep.subr.mxu0 0.0
    %619 = vmatpush1.msra.mxu0 0.0
    %620 = vmatprep.subr.mxu0 0.0
    %621 = vmatpush1.msra.mxu0 0.0
    %622 = vmatprep.subr.mxu0 0.0
    %623 = vmatpush1.msra.mxu0 0.0
    %624 = vmatprep.subr.mxu0 0.0
    %625 = vmatpush1.msra.mxu0 0.0
    %626 = vmatprep.subr.mxu0 0.0
    %627 = vmatpush1.msra.mxu0 0.0
    %628 = vmatprep.subr.mxu0 0.0
    %629 = vmatpush1.msra.mxu0 0.0
    %630 = vmatprep.subr.mxu0 0.0
    %631 = vmatpush1.msra.mxu0 0.0
    %632 = vmatprep.subr.mxu0 0.0
    %633 = vmatpush1.msra.mxu0 0.0
    %634 = vmatprep.subr.mxu0 0.0
    %635 = vmatpush1.msra.mxu0 0.0
    %636 = vmatprep.subr.mxu0 0.0
    %637 = vmatpush1.msra.mxu0 0.0
    %638 = vmatprep.subr.mxu0 0.0
    %639 = vmatpush1.msra.mxu0 0.0
    %640 = vmatprep.subr.mxu0 0.0
    %641 = vmatpush1.msra.mxu0 0.0
    %642 = vmatprep.subr.mxu0 0.0
    %643 = vmatpush1.msra.mxu0 0.0
    %644 = vmatprep.subr.mxu0 0.0
    %645 = vmatpush1.msra.mxu0 0.0
    %646 = vmatprep.subr.mxu0 0.0
    %647 = vmatpush1.msra.mxu0 0.0
    %648 = vmatprep.subr.mxu0 0.0
    %649 = vmatpush1.msra.mxu0 0.0
    %650 = vmatprep.subr.mxu0 0.0
    %651 = vmatpush1.msra.mxu0 0.0
    %652 = vmatprep.subr.mxu0 0.0
    %653 = vmatpush1.msra.mxu0 0.0
    %654 = vmatprep.subr.mxu0 0.0
    %655 = vmatpush1.msra.mxu0 0.0
    %656 = vmatprep.subr.mxu0 0.0
    %657 = vmatpush1.msra.mxu0 0.0
    %658 = vmatprep.subr.mxu0 0.0
    %659 = vmatpush1.msra.mxu0 0.0
    %660 = vmatprep.subr.mxu0 0.0
    %661 = vmatpush1.msra.mxu0 0.0
    %662 = vmatprep.subr.mxu0 0.0
    %663 = vmatpush1.msra.mxu0 0.0
    %664 = vmatprep.subr.mxu0 0.0
    %665 = vmatpush1.msra.mxu0 0.0
    %666 = vmatprep.mubr.f32.mxu0 0.0
    %667 = vmatmul.mubr.f32.gmra.mrb[0].mxu0 %v147
    %v668 = vpop.f32.mrb[0].mxu0
    %v669 = vadd.f32 0.0, %v668
    %v670 = vpop.f32.mrb[0].mxu0
    %671 = vmatprep.mubr.f32.mxu0 0.0
    %672 = vmatmul.mubr.f32.gmra.mrb[0].mxu0 %v150
    %v673 = vpop.f32.mrb[0].mxu0
    %v674 = vadd.f32 0.0, %v673
    %v675 = vpop.f32.mrb[0].mxu0
    %676 = vdwg.mxu0
    %677 = vmatprep.subr.mxu0 0.0
    %678 = vmatpush1.msra.mxu0 %v94
    %679 = vmatprep.subr.mxu0 0.0
    %680 = vmatpush1.msra.mxu0 %v95
    %681 = vmatprep.subr.mxu0 0.0
    %682 = vmatpush1.msra.mxu0 %v96
    %683 = vmatprep.subr.mxu0 0.0
    %684 = vmatpush1.msra.mxu0 %v97
    %685 = vmatprep.subr.mxu0 0.0
    %686 = vmatpush1.msra.mxu0 0.0
    %687 = vmatprep.subr.mxu0 0.0
    %688 = vmatpush1.msra.mxu0 0.0
    %689 = vmatprep.subr.mxu0 0.0
    %690 = vmatpush1.msra.mxu0 0.0
    %691 = vmatprep.subr.mxu0 0.0
    %692 = vmatpush1.msra.mxu0 0.0
    %693 = vmatprep.subr.mxu0 0.0
    %694 = vmatpush1.msra.mxu0 0.0
    %695 = vmatprep.subr.mxu0 0.0
    %696 = vmatpush1.msra.mxu0 0.0
    %697 = vmatprep.subr.mxu0 0.0
    %698 = vmatpush1.msra.mxu0 0.0
    %699 = vmatprep.subr.mxu0 0.0
    %700 = vmatpush1.msra.mxu0 0.0
    %701 = vmatprep.subr.mxu0 0.0
    %702 = vmatpush1.msra.mxu0 0.0
    %703 = vmatprep.subr.mxu0 0.0
    %704 = vmatpush1.msra.mxu0 0.0
    %705 = vmatprep.subr.mxu0 0.0
    %706 = vmatpush1.msra.mxu0 0.0
    %707 = vmatprep.subr.mxu0 0.0
    %708 = vmatpush1.msra.mxu0 0.0
    %709 = vmatprep.subr.mxu0 0.0
    %710 = vmatpush1.msra.mxu0 0.0
    %711 = vmatprep.subr.mxu0 0.0
    %712 = vmatpush1.msra.mxu0 0.0
    %713 = vmatprep.subr.mxu0 0.0
    %714 = vmatpush1.msra.mxu0 0.0
    %715 = vmatprep.subr.mxu0 0.0
    %716 = vmatpush1.msra.mxu0 0.0
    %717 = vmatprep.subr.mxu0 0.0
    %718 = vmatpush1.msra.mxu0 0.0
    %719 = vmatprep.subr.mxu0 0.0
    %720 = vmatpush1.msra.mxu0 0.0
    %721 = vmatprep.subr.mxu0 0.0
    %722 = vmatpush1.msra.mxu0 0.0
    %723 = vmatprep.subr.mxu0 0.0
    %724 = vmatpush1.msra.mxu0 0.0
    %725 = vmatprep.subr.mxu0 0.0
    %726 = vmatpush1.msra.mxu0 0.0
    %727 = vmatprep.subr.mxu0 0.0
    %728 = vmatpush1.msra.mxu0 0.0
    %729 = vmatprep.subr.mxu0 0.0
    %730 = vmatpush1.msra.mxu0 0.0
    %731 = vmatprep.subr.mxu0 0.0
    %732 = vmatpush1.msra.mxu0 0.0
    %733 = vmatprep.subr.mxu0 0.0
    %734 = vmatpush1.msra.mxu0 0.0
    %735 = vmatprep.subr.mxu0 0.0
    %736 = vmatpush1.msra.mxu0 0.0
    %737 = vmatprep.subr.mxu0 0.0
    %738 = vmatpush1.msra.mxu0 0.0
    %739 = vmatprep.subr.mxu0 0.0
    %740 = vmatpush1.msra.mxu0 0.0
    %741 = vmatprep.mubr.f32.mxu0 0.0
    %742 = vmatmul.mubr.f32.gmra.mrb[0].mxu0 %v147
    %v743 = vpop.f32.mrb[0].mxu0
    %v744 = vadd.f32 0.0, %v743
    %v745 = vpop.f32.mrb[0].mxu0
    %746 = vmatprep.mubr.f32.mxu0 0.0
    %747 = vmatmul.mubr.f32.gmra.mrb[0].mxu0 %v150
    %v748 = vpop.f32.mrb[0].mxu0
    %v749 = vadd.f32 0.0, %v748
    %v750 = vpop.f32.mrb[0].mxu0
    %751 = vdwg.mxu0
    %752 = vmatprep.subr.mxu0 0.0
    %753 = vmatpush1.msra.mxu0 %v98
    %754 = vmatprep.subr.mxu0 0.0
    %755 = vmatpush1.msra.mxu0 %v99
    %756 = vmatprep.subr.mxu0 0.0
    %757 = vmatpush1.msra.mxu0 %v100
    %758 = vmatprep.subr.mxu0 0.0
    %759 = vmatpush1.msra.mxu0 %v101
    %760 = vmatprep.subr.mxu0 0.0
    %761 = vmatpush1.msra.mxu0 0.0
    %762 = vmatprep.subr.mxu0 0.0
    %763 = vmatpush1.msra.mxu0 0.0
    %764 = vmatprep.subr.mxu0 0.0
    %765 = vmatpush1.msra.mxu0 0.0
    %766 = vmatprep.subr.mxu0 0.0
    %767 = vmatpush1.msra.mxu0 0.0
    %768 = vmatprep.subr.mxu0 0.0
    %769 = vmatpush1.msra.mxu0 0.0
    %770 = vmatprep.subr.mxu0 0.0
    %771 = vmatpush1.msra.mxu0 0.0
    %772 = vmatprep.subr.mxu0 0.0
    %773 = vmatpush1.msra.mxu0 0.0
    %774 = vmatprep.subr.mxu0 0.0
    %775 = vmatpush1.msra.mxu0 0.0
    %776 = vmatprep.subr.mxu0 0.0
    %777 = vmatpush1.msra.mxu0 0.0
    %778 = vmatprep.subr.mxu0 0.0
    %779 = vmatpush1.msra.mxu0 0.0
    %780 = vmatprep.subr.mxu0 0.0
    %781 = vmatpush1.msra.mxu0 0.0
    %782 = vmatprep.subr.mxu0 0.0
    %783 = vmatpush1.msra.mxu0 0.0
    %784 = vmatprep.subr.mxu0 0.0
    %785 = vmatpush1.msra.mxu0 0.0
    %786 = vmatprep.subr.mxu0 0.0
    %787 = vmatpush1.msra.mxu0 0.0
    %788 = vmatprep.subr.mxu0 0.0
    %789 = vmatpush1.msra.mxu0 0.0
    %790 = vmatprep.subr.mxu0 0.0
    %791 = vmatpush1.msra.mxu0 0.0
    %792 = vmatprep.subr.mxu0 0.0
    %793 = vmatpush1.msra.mxu0 0.0
    %794 = vmatprep.subr.mxu0 0.0
    %795 = vmatpush1.msra.mxu0 0.0
    %796 = vmatprep.subr.mxu0 0.0
    %797 = vmatpush1.msra.mxu0 0.0
    %798 = vmatprep.subr.mxu0 0.0
    %799 = vmatpush1.msra.mxu0 0.0
    %800 = vmatprep.subr.mxu0 0.0
    %801 = vmatpush1.msra.mxu0 0.0
    %802 = vmatprep.subr.mxu0 0.0
    %803 = vmatpush1.msra.mxu0 0.0
    %804 = vmatprep.subr.mxu0 0.0
    %805 = vmatpush1.msra.mxu0 0.0
    %806 = vmatprep.subr.mxu0 0.0
    %807 = vmatpush1.msra.mxu0 0.0
    %808 = vmatprep.subr.mxu0 0.0
    %809 = vmatpush1.msra.mxu0 0.0
    %810 = vmatprep.subr.mxu0 0.0
    %811 = vmatpush1.msra.mxu0 0.0
    %812 = vmatprep.subr.mxu0 0.0
    %813 = vmatpush1.msra.mxu0 0.0
    %814 = vmatprep.subr.mxu0 0.0
    %815 = vmatpush1.msra.mxu0 0.0
    %816 = vmatprep.mubr.f32.mxu0 0.0
    %817 = vmatmul.mubr.f32.gmra.mrb[0].mxu0 %v147
    %v818 = vpop.f32.mrb[0].mxu0
    %v819 = vadd.f32 0.0, %v818
    %v820 = vpop.f32.mrb[0].mxu0
    %821 = vmatprep.mubr.f32.mxu0 0.0
    %822 = vmatmul.mubr.f32.gmra.mrb[0].mxu0 %v150
    %v823 = vpop.f32.mrb[0].mxu0
    %v824 = vadd.f32 0.0, %v823
    %v825 = vpop.f32.mrb[0].mxu0
    %826 = vdwg.mxu0
    %827 = vmatprep.subr.mxu0 0.0
    %828 = vmatpush1.msra.mxu0 %v102
    %829 = vmatprep.subr.mxu0 0.0
    %830 = vmatpush1.msra.mxu0 %v103
    %831 = vmatprep.subr.mxu0 0.0
    %832 = vmatpush1.msra.mxu0 %v104
    %833 = vmatprep.subr.mxu0 0.0
    %834 = vmatpush1.msra.mxu0 %v105
    %835 = vmatprep.subr.mxu0 0.0
    %836 = vmatpush1.msra.mxu0 0.0
    %837 = vmatprep.subr.mxu0 0.0
    %838 = vmatpush1.msra.mxu0 0.0
    %839 = vmatprep.subr.mxu0 0.0
    %840 = vmatpush1.msra.mxu0 0.0
    %841 = vmatprep.subr.mxu0 0.0
    %842 = vmatpush1.msra.mxu0 0.0
    %843 = vmatprep.subr.mxu0 0.0
    %844 = vmatpush1.msra.mxu0 0.0
    %845 = vmatprep.subr.mxu0 0.0
    %846 = vmatpush1.msra.mxu0 0.0
    %847 = vmatprep.subr.mxu0 0.0
    %848 = vmatpush1.msra.mxu0 0.0
    %849 = vmatprep.subr.mxu0 0.0
    %850 = vmatpush1.msra.mxu0 0.0
    %851 = vmatprep.subr.mxu0 0.0
    %852 = vmatpush1.msra.mxu0 0.0
    %853 = vmatprep.subr.mxu0 0.0
    %854 = vmatpush1.msra.mxu0 0.0
    %855 = vmatprep.subr.mxu0 0.0
    %856 = vmatpush1.msra.mxu0 0.0
    %857 = vmatprep.subr.mxu0 0.0
    %858 = vmatpush1.msra.mxu0 0.0
    %859 = vmatprep.subr.mxu0 0.0
    %860 = vmatpush1.msra.mxu0 0.0
    %861 = vmatprep.subr.mxu0 0.0
    %862 = vmatpush1.msra.mxu0 0.0
    %863 = vmatprep.subr.mxu0 0.0
    %864 = vmatpush1.msra.mxu0 0.0
    %865 = vmatprep.subr.mxu0 0.0
    %866 = vmatpush1.msra.mxu0 0.0
    %867 = vmatprep.subr.mxu0 0.0
    %868 = vmatpush1.msra.mxu0 0.0
    %869 = vmatprep.subr.mxu0 0.0
    %870 = vmatpush1.msra.mxu0 0.0
    %871 = vmatprep.subr.mxu0 0.0
    %872 = vmatpush1.msra.mxu0 0.0
    %873 = vmatprep.subr.mxu0 0.0
    %874 = vmatpush1.msra.mxu0 0.0
    %875 = vmatprep.subr.mxu0 0.0
    %876 = vmatpush1.msra.mxu0 0.0
    %877 = vmatprep.subr.mxu0 0.0
    %878 = vmatpush1.msra.mxu0 0.0
    %879 = vmatprep.subr.mxu0 0.0
    %880 = vmatpush1.msra.mxu0 0.0
    %881 = vmatprep.subr.mxu0 0.0
    %882 = vmatpush1.msra.mxu0 0.0
    %883 = vmatprep.subr.mxu0 0.0
    %884 = vmatpush1.msra.mxu0 0.0
    %885 = vmatprep.subr.mxu0 0.0
    %886 = vmatpush1.msra.mxu0 0.0
    %887 = vmatprep.subr.mxu0 0.0
    %888 = vmatpush1.msra.mxu0 0.0
    %889 = vmatprep.subr.mxu0 0.0
    %890 = vmatpush1.msra.mxu0 0.0
    %891 = vmatprep.mubr.f32.mxu0 0.0
    %892 = vmatmul.mubr.f32.gmra.mrb[0].mxu0 %v147
    %v893 = vpop.f32.mrb[0].mxu0
    %v894 = vadd.f32 0.0, %v893
    %v895 = vpop.f32.mrb[0].mxu0
    %896 = vmatprep.mubr.f32.mxu0 0.0
    %897 = vmatmul.mubr.f32.gmra.mrb[0].mxu0 %v150
    %v898 = vpop.f32.mrb[0].mxu0
    %v899 = vadd.f32 0.0, %v898
    %v900 = vpop.f32.mrb[0].mxu0
    %901 = vdwg.mxu0
    %902 = vmatprep.subr.mxu0 0.0
    %903 = vmatpush1.msra.mxu0 %v106
    %904 = vmatprep.subr.mxu0 0.0
    %905 = vmatpush1.msra.mxu0 %v107
    %906 = vmatprep.subr.mxu0 0.0
    %907 = vmatpush1.msra.mxu0 %v108
    %908 = vmatprep.subr.mxu0 0.0
    %909 = vmatpush1.msra.mxu0 %v109
    %910 = vmatprep.subr.mxu0 0.0
    %911 = vmatpush1.msra.mxu0 0.0
    %912 = vmatprep.subr.mxu0 0.0
    %913 = vmatpush1.msra.mxu0 0.0
    %914 = vmatprep.subr.mxu0 0.0
    %915 = vmatpush1.msra.mxu0 0.0
    %916 = vmatprep.subr.mxu0 0.0
    %917 = vmatpush1.msra.mxu0 0.0
    %918 = vmatprep.subr.mxu0 0.0
    %919 = vmatpush1.msra.mxu0 0.0
    %920 = vmatprep.subr.mxu0 0.0
    %921 = vmatpush1.msra.mxu0 0.0
    %922 = vmatprep.subr.mxu0 0.0
    %923 = vmatpush1.msra.mxu0 0.0
    %924 = vmatprep.subr.mxu0 0.0
    %925 = vmatpush1.msra.mxu0 0.0
    %926 = vmatprep.subr.mxu0 0.0
    %927 = vmatpush1.msra.mxu0 0.0
    %928 = vmatprep.subr.mxu0 0.0
    %929 = vmatpush1.msra.mxu0 0.0
    %930 = vmatprep.subr.mxu0 0.0
    %931 = vmatpush1.msra.mxu0 0.0
    %932 = vmatprep.subr.mxu0 0.0
    %933 = vmatpush1.msra.mxu0 0.0
    %934 = vmatprep.subr.mxu0 0.0
    %935 = vmatpush1.msra.mxu0 0.0
    %936 = vmatprep.subr.mxu0 0.0
    %937 = vmatpush1.msra.mxu0 0.0
    %938 = vmatprep.subr.mxu0 0.0
    %939 = vmatpush1.msra.mxu0 0.0
    %940 = vmatprep.subr.mxu0 0.0
    %941 = vmatpush1.msra.mxu0 0.0
    %942 = vmatprep.subr.mxu0 0.0
    %943 = vmatpush1.msra.mxu0 0.0
    %944 = vmatprep.subr.mxu0 0.0
    %945 = vmatpush1.msra.mxu0 0.0
    %946 = vmatprep.subr.mxu0 0.0
    %947 = vmatpush1.msra.mxu0 0.0
    %948 = vmatprep.subr.mxu0 0.0
    %949 = vmatpush1.msra.mxu0 0.0
    %950 = vmatprep.subr.mxu0 0.0
    %951 = vmatpush1.msra.mxu0 0.0
    %952 = vmatprep.subr.mxu0 0.0
    %953 = vmatpush1.msra.mxu0 0.0
    %954 = vmatprep.subr.mxu0 0.0
    %955 = vmatpush1.msra.mxu0 0.0
    %956 = vmatprep.subr.mxu0 0.0
    %957 = vmatpush1.msra.mxu0 0.0
    %958 = vmatprep.subr.mxu0 0.0
    %959 = vmatpush1.msra.mxu0 0.0
    %960 = vmatprep.subr.mxu0 0.0
    %961 = vmatpush1.msra.mxu0 0.0
    %962 = vmatprep.subr.mxu0 0.0
    %963 = vmatpush1.msra.mxu0 0.0
    %964 = vmatprep.subr.mxu0 0.0
    %965 = vmatpush1.msra.mxu0 0.0
    %966 = vmatprep.mubr.f32.mxu0 0.0
    %967 = vmatmul.mubr.f32.gmra.mrb[0].mxu0 %v147
    %v968 = vpop.f32.mrb[0].mxu0
    %v969 = vadd.f32 0.0, %v968
    %v970 = vpop.f32.mrb[0].mxu0
    %971 = vmatprep.mubr.f32.mxu0 0.0
    %972 = vmatmul.mubr.f32.gmra.mrb[0].mxu0 %v150
    %v973 = vpop.f32.mrb[0].mxu0
    %v974 = vadd.f32 0.0, %v973
    %v975 = vpop.f32.mrb[0].mxu0
    %976 = vdwg.mxu0
    %977 = vmatprep.subr.mxu0 0.0
    %978 = vmatpush1.msra.mxu0 %v110
    %979 = vmatprep.subr.mxu0 0.0
    %980 = vmatpush1.msra.mxu0 %v111
    %981 = vmatprep.subr.mxu0 0.0
    %982 = vmatpush1.msra.mxu0 %v112
    %983 = vmatprep.subr.mxu0 0.0
    %984 = vmatpush1.msra.mxu0 %v113
    %985 = vmatprep.subr.mxu0 0.0
    %986 = vmatpush1.msra.mxu0 0.0
    %987 = vmatprep.subr.mxu0 0.0
    %988 = vmatpush1.msra.mxu0 0.0
    %989 = vmatprep.subr.mxu0 0.0
    %990 = vmatpush1.msra.mxu0 0.0
    %991 = vmatprep.subr.mxu0 0.0
    %992 = vmatpush1.msra.mxu0 0.0
    %993 = vmatprep.subr.mxu0 0.0
    %994 = vmatpush1.msra.mxu0 0.0
    %995 = vmatprep.subr.mxu0 0.0
    %996 = vmatpush1.msra.mxu0 0.0
    %997 = vmatprep.subr.mxu0 0.0
    %998 = vmatpush1.msra.mxu0 0.0
    %999 = vmatprep.subr.mxu0 0.0
    %1000 = vmatpush1.msra.mxu0 0.0
    %1001 = vmatprep.subr.mxu0 0.0
    %1002 = vmatpush1.msra.mxu0 0.0
    %1003 = vmatprep.subr.mxu0 0.0
    %1004 = vmatpush1.msra.mxu0 0.0
    %1005 = vmatprep.subr.mxu0 0.0
    %1006 = vmatpush1.msra.mxu0 0.0
    %1007 = vmatprep.subr.mxu0 0.0
    %1008 = vmatpush1.msra.mxu0 0.0
    %1009 = vmatprep.subr.mxu0 0.0
    %1010 = vmatpush1.msra.mxu0 0.0
    %1011 = vmatprep.subr.mxu0 0.0
    %1012 = vmatpush1.msra.mxu0 0.0
    %1013 = vmatprep.subr.mxu0 0.0
    %1014 = vmatpush1.msra.mxu0 0.0
    %1015 = vmatprep.subr.mxu0 0.0
    %1016 = vmatpush1.msra.mxu0 0.0
    %1017 = vmatprep.subr.mxu0 0.0
    %1018 = vmatpush1.msra.mxu0 0.0
    %1019 = vmatprep.subr.mxu0 0.0
    %1020 = vmatpush1.msra.mxu0 0.0
    %1021 = vmatprep.subr.mxu0 0.0
    %1022 = vmatpush1.msra.mxu0 0.0
    %1023 = vmatprep.subr.mxu0 0.0
    %1024 = vmatpush1.msra.mxu0 0.0
    %1025 = vmatprep.subr.mxu0 0.0
    %1026 = vmatpush1.msra.mxu0 0.0
    %1027 = vmatprep.subr.mxu0 0.0
    %1028 = vmatpush1.msra.mxu0 0.0
    %1029 = vmatprep.subr.mxu0 0.0
    %1030 = vmatpush1.msra.mxu0 0.0
    %1031 = vmatprep.subr.mxu0 0.0
    %1032 = vmatpush1.msra.mxu0 0.0
    %1033 = vmatprep.subr.mxu0 0.0
    %1034 = vmatpush1.msra.mxu0 0.0
    %1035 = vmatprep.subr.mxu0 0.0
    %1036 = vmatpush1.msra.mxu0 0.0
    %1037 = vmatprep.subr.mxu0 0.0
    %1038 = vmatpush1.msra.mxu0 0.0
    %1039 = vmatprep.subr.mxu0 0.0
    %1040 = vmatpush1.msra.mxu0 0.0
    %1041 = vmatprep.mubr.f32.mxu0 0.0
    %1042 = vmatmul.mubr.f32.gmra.mrb[0].mxu0 %v147
    %v1043 = vpop.f32.mrb[0].mxu0
    %v1044 = vadd.f32 0.0, %v1043
    %v1045 = vpop.f32.mrb[0].mxu0
    %1046 = vmatprep.mubr.f32.mxu0 0.0
    %1047 = vmatmul.mubr.f32.gmra.mrb[0].mxu0 %v150
    %v1048 = vpop.f32.mrb[0].mxu0
    %v1049 = vadd.f32 0.0, %v1048
    %v1050 = vpop.f32.mrb[0].mxu0
    %1051 = vdwg.mxu0
    %1052 = vmatprep.subr.mxu0 0.0
    %1053 = vmatpush1.msra.mxu0 %v114
    %1054 = vmatprep.subr.mxu0 0.0
    %1055 = vmatpush1.msra.mxu0 %v115
    %1056 = vmatprep.subr.mxu0 0.0
    %1057 = vmatpush1.msra.mxu0 %v116
    %1058 = vmatprep.subr.mxu0 0.0
    %1059 = vmatpush1.msra.mxu0 %v117
    %1060 = vmatprep.subr.mxu0 0.0
    %1061 = vmatpush1.msra.mxu0 0.0
    %1062 = vmatprep.subr.mxu0 0.0
    %1063 = vmatpush1.msra.mxu0 0.0
    %1064 = vmatprep.subr.mxu0 0.0
    %1065 = vmatpush1.msra.mxu0 0.0
    %1066 = vmatprep.subr.mxu0 0.0
    %1067 = vmatpush1.msra.mxu0 0.0
    %1068 = vmatprep.subr.mxu0 0.0
    %1069 = vmatpush1.msra.mxu0 0.0
    %1070 = vmatprep.subr.mxu0 0.0
    %1071 = vmatpush1.msra.mxu0 0.0
    %1072 = vmatprep.subr.mxu0 0.0
    %1073 = vmatpush1.msra.mxu0 0.0
    %1074 = vmatprep.subr.mxu0 0.0
    %1075 = vmatpush1.msra.mxu0 0.0
    %1076 = vmatprep.subr.mxu0 0.0
    %1077 = vmatpush1.msra.mxu0 0.0
    %1078 = vmatprep.subr.mxu0 0.0
    %1079 = vmatpush1.msra.mxu0 0.0
    %1080 = vmatprep.subr.mxu0 0.0
    %1081 = vmatpush1.msra.mxu0 0.0
    %1082 = vmatprep.subr.mxu0 0.0
    %1083 = vmatpush1.msra.mxu0 0.0
    %1084 = vmatprep.subr.mxu0 0.0
    %1085 = vmatpush1.msra.mxu0 0.0
    %1086 = vmatprep.subr.mxu0 0.0
    %1087 = vmatpush1.msra.mxu0 0.0
    %1088 = vmatprep.subr.mxu0 0.0
    %1089 = vmatpush1.msra.mxu0 0.0
    %1090 = vmatprep.subr.mxu0 0.0
    %1091 = vmatpush1.msra.mxu0 0.0
    %1092 = vmatprep.subr.mxu0 0.0
    %1093 = vmatpush1.msra.mxu0 0.0
    %1094 = vmatprep.subr.mxu0 0.0
    %1095 = vmatpush1.msra.mxu0 0.0
    %1096 = vmatprep.subr.mxu0 0.0
    %1097 = vmatpush1.msra.mxu0 0.0
    %1098 = vmatprep.subr.mxu0 0.0
    %1099 = vmatpush1.msra.mxu0 0.0
    %1100 = vmatprep.subr.mxu0 0.0
    %1101 = vmatpush1.msra.mxu0 0.0
    %1102 = vmatprep.subr.mxu0 0.0
    %1103 = vmatpush1.msra.mxu0 0.0
    %1104 = vmatprep.subr.mxu0 0.0
    %1105 = vmatpush1.msra.mxu0 0.0
    %1106 = vmatprep.subr.mxu0 0.0
    %1107 = vmatpush1.msra.mxu0 0.0
    %1108 = vmatprep.subr.mxu0 0.0
    %1109 = vmatpush1.msra.mxu0 0.0
    %1110 = vmatprep.subr.mxu0 0.0
    %1111 = vmatpush1.msra.mxu0 0.0
    %1112 = vmatprep.subr.mxu0 0.0
    %1113 = vmatpush1.msra.mxu0 0.0
    %1114 = vmatprep.subr.mxu0 0.0
    %1115 = vmatpush1.msra.mxu0 0.0
    %1116 = vmatprep.mubr.f32.mxu0 0.0
    %1117 = vmatmul.mubr.f32.gmra.mrb[0].mxu0 %v147
    %v1118 = vpop.f32.mrb[0].mxu0
    %v1119 = vadd.f32 0.0, %v1118
    %v1120 = vpop.f32.mrb[0].mxu0
    %1121 = vmatprep.mubr.f32.mxu0 0.0
    %1122 = vmatmul.mubr.f32.gmra.mrb[0].mxu0 %v150
    %v1123 = vpop.f32.mrb[0].mxu0
    %v1124 = vadd.f32 0.0, %v1123
    %v1125 = vpop.f32.mrb[0].mxu0
    %1126 = vdwg.mxu0
    %1127 = vmatprep.subr.mxu0 0.0
    %1128 = vmatpush1.msra.mxu0 %v118
    %1129 = vmatprep.subr.mxu0 0.0
    %1130 = vmatpush1.msra.mxu0 %v119
    %1131 = vmatprep.subr.mxu0 0.0
    %1132 = vmatpush1.msra.mxu0 %v120
    %1133 = vmatprep.subr.mxu0 0.0
    %1134 = vmatpush1.msra.mxu0 %v121
    %1135 = vmatprep.subr.mxu0 0.0
    %1136 = vmatpush1.msra.mxu0 0.0
    %1137 = vmatprep.subr.mxu0 0.0
    %1138 = vmatpush1.msra.mxu0 0.0
    %1139 = vmatprep.subr.mxu0 0.0
    %1140 = vmatpush1.msra.mxu0 0.0
    %1141 = vmatprep.subr.mxu0 0.0
    %1142 = vmatpush1.msra.mxu0 0.0
    %1143 = vmatprep.subr.mxu0 0.0
    %1144 = vmatpush1.msra.mxu0 0.0
    %1145 = vmatprep.subr.mxu0 0.0
    %1146 = vmatpush1.msra.mxu0 0.0
    %1147 = vmatprep.subr.mxu0 0.0
    %1148 = vmatpush1.msra.mxu0 0.0
    %1149 = vmatprep.subr.mxu0 0.0
    %1150 = vmatpush1.msra.mxu0 0.0
    %1151 = vmatprep.subr.mxu0 0.0
    %1152 = vmatpush1.msra.mxu0 0.0
    %1153 = vmatprep.subr.mxu0 0.0
    %1154 = vmatpush1.msra.mxu0 0.0
    %1155 = vmatprep.subr.mxu0 0.0
    %1156 = vmatpush1.msra.mxu0 0.0
    %1157 = vmatprep.subr.mxu0 0.0
    %1158 = vmatpush1.msra.mxu0 0.0
    %1159 = vmatprep.subr.mxu0 0.0
    %1160 = vmatpush1.msra.mxu0 0.0
    %1161 = vmatprep.subr.mxu0 0.0
    %1162 = vmatpush1.msra.mxu0 0.0
    %1163 = vmatprep.subr.mxu0 0.0
    %1164 = vmatpush1.msra.mxu0 0.0
    %1165 = vmatprep.subr.mxu0 0.0
    %1166 = vmatpush1.msra.mxu0 0.0
    %1167 = vmatprep.subr.mxu0 0.0
    %1168 = vmatpush1.msra.mxu0 0.0
    %1169 = vmatprep.subr.mxu0 0.0
    %1170 = vmatpush1.msra.mxu0 0.0
    %1171 = vmatprep.subr.mxu0 0.0
    %1172 = vmatpush1.msra.mxu0 0.0
    %1173 = vmatprep.subr.mxu0 0.0
    %1174 = vmatpush1.msra.mxu0 0.0
    %1175 = vmatprep.subr.mxu0 0.0
    %1176 = vmatpush1.msra.mxu0 0.0
    %1177 = vmatprep.subr.mxu0 0.0
    %1178 = vmatpush1.msra.mxu0 0.0
    %1179 = vmatprep.subr.mxu0 0.0
    %1180 = vmatpush1.msra.mxu0 0.0
    %1181 = vmatprep.subr.mxu0 0.0
    %1182 = vmatpush1.msra.mxu0 0.0
    %1183 = vmatprep.subr.mxu0 0.0
    %1184 = vmatpush1.msra.mxu0 0.0
    %1185 = vmatprep.subr.mxu0 0.0
    %1186 = vmatpush1.msra.mxu0 0.0
    %1187 = vmatprep.subr.mxu0 0.0
    %1188 = vmatpush1.msra.mxu0 0.0
    %1189 = vmatprep.subr.mxu0 0.0
    %1190 = vmatpush1.msra.mxu0 0.0
    %1191 = vmatprep.mubr.f32.mxu0 0.0
    %1192 = vmatmul.mubr.f32.gmra.mrb[0].mxu0 %v147
    %v1193 = vpop.f32.mrb[0].mxu0
    %v1194 = vadd.f32 0.0, %v1193
    %v1195 = vpop.f32.mrb[0].mxu0
    %1196 = vmatprep.mubr.f32.mxu0 0.0
    %1197 = vmatmul.mubr.f32.gmra.mrb[0].mxu0 %v150
    %v1198 = vpop.f32.mrb[0].mxu0
    %v1199 = vadd.f32 0.0, %v1198
    %v1200 = vpop.f32.mrb[0].mxu0
    %1201 = vdwg.mxu0
    %1202 = vmatprep.subr.mxu0 0.0
    %1203 = vmatpush1.msra.mxu0 %v122
    %1204 = vmatprep.subr.mxu0 0.0
    %1205 = vmatpush1.msra.mxu0 %v123
    %1206 = vmatprep.subr.mxu0 0.0
    %1207 = vmatpush1.msra.mxu0 %v124
    %1208 = vmatprep.subr.mxu0 0.0
    %1209 = vmatpush1.msra.mxu0 %v125
    %1210 = vmatprep.subr.mxu0 0.0
    %1211 = vmatpush1.msra.mxu0 0.0
    %1212 = vmatprep.subr.mxu0 0.0
    %1213 = vmatpush1.msra.mxu0 0.0
    %1214 = vmatprep.subr.mxu0 0.0
    %1215 = vmatpush1.msra.mxu0 0.0
    %1216 = vmatprep.subr.mxu0 0.0
    %1217 = vmatpush1.msra.mxu0 0.0
    %1218 = vmatprep.subr.mxu0 0.0
    %1219 = vmatpush1.msra.mxu0 0.0
    %1220 = vmatprep.subr.mxu0 0.0
    %1221 = vmatpush1.msra.mxu0 0.0
    %1222 = vmatprep.subr.mxu0 0.0
    %1223 = vmatpush1.msra.mxu0 0.0
    %1224 = vmatprep.subr.mxu0 0.0
    %1225 = vmatpush1.msra.mxu0 0.0
    %1226 = vmatprep.subr.mxu0 0.0
    %1227 = vmatpush1.msra.mxu0 0.0
    %1228 = vmatprep.subr.mxu0 0.0
    %1229 = vmatpush1.msra.mxu0 0.0
    %1230 = vmatprep.subr.mxu0 0.0
    %1231 = vmatpush1.msra.mxu0 0.0
    %1232 = vmatprep.subr.mxu0 0.0
    %1233 = vmatpush1.msra.mxu0 0.0
    %1234 = vmatprep.subr.mxu0 0.0
    %1235 = vmatpush1.msra.mxu0 0.0
    %1236 = vmatprep.subr.mxu0 0.0
    %1237 = vmatpush1.msra.mxu0 0.0
    %1238 = vmatprep.subr.mxu0 0.0
    %1239 = vmatpush1.msra.mxu0 0.0
    %1240 = vmatprep.subr.mxu0 0.0
    %1241 = vmatpush1.msra.mxu0 0.0
    %1242 = vmatprep.subr.mxu0 0.0
    %1243 = vmatpush1.msra.mxu0 0.0
    %1244 = vmatprep.subr.mxu0 0.0
    %1245 = vmatpush1.msra.mxu0 0.0
    %1246 = vmatprep.subr.mxu0 0.0
    %1247 = vmatpush1.msra.mxu0 0.0
    %1248 = vmatprep.subr.mxu0 0.0
    %1249 = vmatpush1.msra.mxu0 0.0
    %1250 = vmatprep.subr.mxu0 0.0
    %1251 = vmatpush1.msra.mxu0 0.0
    %1252 = vmatprep.subr.mxu0 0.0
    %1253 = vmatpush1.msra.mxu0 0.0
    %1254 = vmatprep.subr.mxu0 0.0
    %1255 = vmatpush1.msra.mxu0 0.0
    %1256 = vmatprep.subr.mxu0 0.0
    %1257 = vmatpush1.msra.mxu0 0.0
    %1258 = vmatprep.subr.mxu0 0.0
    %1259 = vmatpush1.msra.mxu0 0.0
    %1260 = vmatprep.subr.mxu0 0.0
    %1261 = vmatpush1.msra.mxu0 0.0
    %1262 = vmatprep.subr.mxu0 0.0
    %1263 = vmatpush1.msra.mxu0 0.0
    %1264 = vmatprep.subr.mxu0 0.0
    %1265 = vmatpush1.msra.mxu0 0.0
    %1266 = vmatprep.mubr.f32.mxu0 0.0
    %1267 = vmatmul.mubr.f32.gmra.mrb[0].mxu0 %v147
    %v1268 = vpop.f32.mrb[0].mxu0
    %v1269 = vadd.f32 0.0, %v1268
    %v1270 = vpop.f32.mrb[0].mxu0
    %1271 = vmatprep.mubr.f32.mxu0 0.0
    %1272 = vmatmul.mubr.f32.gmra.mrb[0].mxu0 %v150
    %v1273 = vpop.f32.mrb[0].mxu0
    %v1274 = vadd.f32 0.0, %v1273
    %v1275 = vpop.f32.mrb[0].mxu0
    %1276 = vdwg.mxu0
    %1277 = vmatprep.subr.mxu0 0.0
    %1278 = vmatpush1.msra.mxu0 %v126
    %1279 = vmatprep.subr.mxu0 0.0
    %1280 = vmatpush1.msra.mxu0 %v127
    %1281 = vmatprep.subr.mxu0 0.0
    %1282 = vmatpush1.msra.mxu0 %v128
    %1283 = vmatprep.subr.mxu0 0.0
    %1284 = vmatpush1.msra.mxu0 %v129
    %1285 = vmatprep.subr.mxu0 0.0
    %1286 = vmatpush1.msra.mxu0 0.0
    %1287 = vmatprep.subr.mxu0 0.0
    %1288 = vmatpush1.msra.mxu0 0.0
    %1289 = vmatprep.subr.mxu0 0.0
    %1290 = vmatpush1.msra.mxu0 0.0
    %1291 = vmatprep.subr.mxu0 0.0
    %1292 = vmatpush1.msra.mxu0 0.0
    %1293 = vmatprep.subr.mxu0 0.0
    %1294 = vmatpush1.msra.mxu0 0.0
    %1295 = vmatprep.subr.mxu0 0.0
    %1296 = vmatpush1.msra.mxu0 0.0
    %1297 = vmatprep.subr.mxu0 0.0
    %1298 = vmatpush1.msra.mxu0 0.0
    %1299 = vmatprep.subr.mxu0 0.0
    %1300 = vmatpush1.msra.mxu0 0.0
    %1301 = vmatprep.subr.mxu0 0.0
    %1302 = vmatpush1.msra.mxu0 0.0
    %1303 = vmatprep.subr.mxu0 0.0
    %1304 = vmatpush1.msra.mxu0 0.0
    %1305 = vmatprep.subr.mxu0 0.0
    %1306 = vmatpush1.msra.mxu0 0.0
    %1307 = vmatprep.subr.mxu0 0.0
    %1308 = vmatpush1.msra.mxu0 0.0
    %1309 = vmatprep.subr.mxu0 0.0
    %1310 = vmatpush1.msra.mxu0 0.0
    %1311 = vmatprep.subr.mxu0 0.0
    %1312 = vmatpush1.msra.mxu0 0.0
    %1313 = vmatprep.subr.mxu0 0.0
    %1314 = vmatpush1.msra.mxu0 0.0
    %1315 = vmatprep.subr.mxu0 0.0
    %1316 = vmatpush1.msra.mxu0 0.0
    %1317 = vmatprep.subr.mxu0 0.0
    %1318 = vmatpush1.msra.mxu0 0.0
    %1319 = vmatprep.subr.mxu0 0.0
    %1320 = vmatpush1.msra.mxu0 0.0
    %1321 = vmatprep.subr.mxu0 0.0
    %1322 = vmatpush1.msra.mxu0 0.0
    %1323 = vmatprep.subr.mxu0 0.0
    %1324 = vmatpush1.msra.mxu0 0.0
    %1325 = vmatprep.subr.mxu0 0.0
    %1326 = vmatpush1.msra.mxu0 0.0
    %1327 = vmatprep.subr.mxu0 0.0
    %1328 = vmatpush1.msra.mxu0 0.0
    %1329 = vmatprep.subr.mxu0 0.0
    %1330 = vmatpush1.msra.mxu0 0.0
    %1331 = vmatprep.subr.mxu0 0.0
    %1332 = vmatpush1.msra.mxu0 0.0
    %1333 = vmatprep.subr.mxu0 0.0
    %1334 = vmatpush1.msra.mxu0 0.0
    %1335 = vmatprep.subr.mxu0 0.0
    %1336 = vmatpush1.msra.mxu0 0.0
    %1337 = vmatprep.subr.mxu0 0.0
    %1338 = vmatpush1.msra.mxu0 0.0
    %1339 = vmatprep.subr.mxu0 0.0
    %1340 = vmatpush1.msra.mxu0 0.0
    %1341 = vmatprep.mubr.f32.mxu0 0.0
    %1342 = vmatmul.mubr.f32.gmra.mrb[0].mxu0 %v147
    %v1343 = vpop.f32.mrb[0].mxu0
    %v1344 = vadd.f32 0.0, %v1343
    %v1345 = vpop.f32.mrb[0].mxu0
    %1346 = vmatprep.mubr.f32.mxu0 0.0
    %1347 = vmatmul.mubr.f32.gmra.mrb[0].mxu0 %v150
    %v1348 = vpop.f32.mrb[0].mxu0
    %v1349 = vadd.f32 0.0, %v1348
    %v1350 = vpop.f32.mrb[0].mxu0
    %1351 = vdwg.mxu0
    %1352 = vmatprep.subr.mxu0 0.0
    %1353 = vmatpush1.msra.mxu0 %v130
    %1354 = vmatprep.subr.mxu0 0.0
    %1355 = vmatpush1.msra.mxu0 %v131
    %1356 = vmatprep.subr.mxu0 0.0
    %1357 = vmatpush1.msra.mxu0 %v132
    %1358 = vmatprep.subr.mxu0 0.0
    %1359 = vmatpush1.msra.mxu0 %v133
    %1360 = vmatprep.subr.mxu0 0.0
    %1361 = vmatpush1.msra.mxu0 0.0
    %1362 = vmatprep.subr.mxu0 0.0
    %1363 = vmatpush1.msra.mxu0 0.0
    %1364 = vmatprep.subr.mxu0 0.0
    %1365 = vmatpush1.msra.mxu0 0.0
    %1366 = vmatprep.subr.mxu0 0.0
    %1367 = vmatpush1.msra.mxu0 0.0
    %1368 = vmatprep.subr.mxu0 0.0
    %1369 = vmatpush1.msra.mxu0 0.0
    %1370 = vmatprep.subr.mxu0 0.0
    %1371 = vmatpush1.msra.mxu0 0.0
    %1372 = vmatprep.subr.mxu0 0.0
    %1373 = vmatpush1.msra.mxu0 0.0
    %1374 = vmatprep.subr.mxu0 0.0
    %1375 = vmatpush1.msra.mxu0 0.0
    %1376 = vmatprep.subr.mxu0 0.0
    %1377 = vmatpush1.msra.mxu0 0.0
    %1378 = vmatprep.subr.mxu0 0.0
    %1379 = vmatpush1.msra.mxu0 0.0
    %1380 = vmatprep.subr.mxu0 0.0
    %1381 = vmatpush1.msra.mxu0 0.0
    %1382 = vmatprep.subr.mxu0 0.0
    %1383 = vmatpush1.msra.mxu0 0.0
    %1384 = vmatprep.subr.mxu0 0.0
    %1385 = vmatpush1.msra.mxu0 0.0
    %1386 = vmatprep.subr.mxu0 0.0
    %1387 = vmatpush1.msra.mxu0 0.0
    %1388 = vmatprep.subr.mxu0 0.0
    %1389 = vmatpush1.msra.mxu0 0.0
    %1390 = vmatprep.subr.mxu0 0.0
    %1391 = vmatpush1.msra.mxu0 0.0
    %1392 = vmatprep.subr.mxu0 0.0
    %1393 = vmatpush1.msra.mxu0 0.0
    %1394 = vmatprep.subr.mxu0 0.0
    %1395 = vmatpush1.msra.mxu0 0.0
    %1396 = vmatprep.subr.mxu0 0.0
    %1397 = vmatpush1.msra.mxu0 0.0
    %1398 = vmatprep.subr.mxu0 0.0
    %1399 = vmatpush1.msra.mxu0 0.0
    %1400 = vmatprep.subr.mxu0 0.0
    %1401 = vmatpush1.msra.mxu0 0.0
    %1402 = vmatprep.subr.mxu0 0.0
    %1403 = vmatpush1.msra.mxu0 0.0
    %1404 = vmatprep.subr.mxu0 0.0
    %1405 = vmatpush1.msra.mxu0 0.0
    %1406 = vmatprep.subr.mxu0 0.0
    %1407 = vmatpush1.msra.mxu0 0.0
    %1408 = vmatprep.subr.mxu0 0.0
    %1409 = vmatpush1.msra.mxu0 0.0
    %1410 = vmatprep.subr.mxu0 0.0
    %1411 = vmatpush1.msra.mxu0 0.0
    %1412 = vmatprep.subr.mxu0 0.0
    %1413 = vmatpush1.msra.mxu0 0.0
    %1414 = vmatprep.subr.mxu0 0.0
    %1415 = vmatpush1.msra.mxu0 0.0
    %1416 = vmatprep.mubr.f32.mxu0 0.0
    %1417 = vmatmul.mubr.f32.gmra.mrb[0].mxu0 %v147
    %v1418 = vpop.f32.mrb[0].mxu0
    %v1419 = vadd.f32 0.0, %v1418
    %v1420 = vpop.f32.mrb[0].mxu0
    %1421 = vmatprep.mubr.f32.mxu0 0.0
    %1422 = vmatmul.mubr.f32.gmra.mrb[0].mxu0 %v150
    %v1423 = vpop.f32.mrb[0].mxu0
    %v1424 = vadd.f32 0.0, %v1423
    %v1425 = vpop.f32.mrb[0].mxu0
    %1426 = vdwg.mxu0
    %1427 = vmatprep.subr.mxu0 0.0
    %1428 = vmatpush1.msra.mxu0 %v134
    %1429 = vmatprep.subr.mxu0 0.0
    %1430 = vmatpush1.msra.mxu0 %v135
    %1431 = vmatprep.subr.mxu0 0.0
    %1432 = vmatpush1.msra.mxu0 %v136
    %1433 = vmatprep.subr.mxu0 0.0
    %1434 = vmatpush1.msra.mxu0 %v137
    %1435 = vmatprep.subr.mxu0 0.0
    %1436 = vmatpush1.msra.mxu0 0.0
    %1437 = vmatprep.subr.mxu0 0.0
    %1438 = vmatpush1.msra.mxu0 0.0
    %1439 = vmatprep.subr.mxu0 0.0
    %1440 = vmatpush1.msra.mxu0 0.0
    %1441 = vmatprep.subr.mxu0 0.0
    %1442 = vmatpush1.msra.mxu0 0.0
    %1443 = vmatprep.subr.mxu0 0.0
    %1444 = vmatpush1.msra.mxu0 0.0
    %1445 = vmatprep.subr.mxu0 0.0
    %1446 = vmatpush1.msra.mxu0 0.0
    %1447 = vmatprep.subr.mxu0 0.0
    %1448 = vmatpush1.msra.mxu0 0.0
    %1449 = vmatprep.subr.mxu0 0.0
    %1450 = vmatpush1.msra.mxu0 0.0
    %1451 = vmatprep.subr.mxu0 0.0
    %1452 = vmatpush1.msra.mxu0 0.0
    %1453 = vmatprep.subr.mxu0 0.0
    %1454 = vmatpush1.msra.mxu0 0.0
    %1455 = vmatprep.subr.mxu0 0.0
    %1456 = vmatpush1.msra.mxu0 0.0
    %1457 = vmatprep.subr.mxu0 0.0
    %1458 = vmatpush1.msra.mxu0 0.0
    %1459 = vmatprep.subr.mxu0 0.0
    %1460 = vmatpush1.msra.mxu0 0.0
    %1461 = vmatprep.subr.mxu0 0.0
    %1462 = vmatpush1.msra.mxu0 0.0
    %1463 = vmatprep.subr.mxu0 0.0
    %1464 = vmatpush1.msra.mxu0 0.0
    %1465 = vmatprep.subr.mxu0 0.0
    %1466 = vmatpush1.msra.mxu0 0.0
    %1467 = vmatprep.subr.mxu0 0.0
    %1468 = vmatpush1.msra.mxu0 0.0
    %1469 = vmatprep.subr.mxu0 0.0
    %1470 = vmatpush1.msra.mxu0 0.0
    %1471 = vmatprep.subr.mxu0 0.0
    %1472 = vmatpush1.msra.mxu0 0.0
    %1473 = vmatprep.subr.mxu0 0.0
    %1474 = vmatpush1.msra.mxu0 0.0
    %1475 = vmatprep.subr.mxu0 0.0
    %1476 = vmatpush1.msra.mxu0 0.0
    %1477 = vmatprep.subr.mxu0 0.0
    %1478 = vmatpush1.msra.mxu0 0.0
    %1479 = vmatprep.subr.mxu0 0.0
    %1480 = vmatpush1.msra.mxu0 0.0
    %1481 = vmatprep.subr.mxu0 0.0
    %1482 = vmatpush1.msra.mxu0 0.0
    %1483 = vmatprep.subr.mxu0 0.0
    %1484 = vmatpush1.msra.mxu0 0.0
    %1485 = vmatprep.subr.mxu0 0.0
    %1486 = vmatpush1.msra.mxu0 0.0
    %1487 = vmatprep.subr.mxu0 0.0
    %1488 = vmatpush1.msra.mxu0 0.0
    %1489 = vmatprep.subr.mxu0 0.0
    %1490 = vmatpush1.msra.mxu0 0.0
    %1491 = vmatprep.mubr.f32.mxu0 0.0
    %1492 = vmatmul.mubr.f32.gmra.mrb[0].mxu0 %v147
    %v1493 = vpop.f32.mrb[0].mxu0
    %v1494 = vadd.f32 0.0, %v1493
    %v1495 = vpop.f32.mrb[0].mxu0
    %1496 = vmatprep.mubr.f32.mxu0 0.0
    %1497 = vmatmul.mubr.f32.gmra.mrb[0].mxu0 %v150
    %v1498 = vpop.f32.mrb[0].mxu0
    %v1499 = vadd.f32 0.0, %v1498
    %v1500 = vpop.f32.mrb[0].mxu0
    %1501 = vdwg.mxu0
    %1502 = vmatprep.subr.mxu0 0.0
    %1503 = vmatpush1.msra.mxu0 %v138
    %1504 = vmatprep.subr.mxu0 0.0
    %1505 = vmatpush1.msra.mxu0 %v139
    %1506 = vmatprep.subr.mxu0 0.0
    %1507 = vmatpush1.msra.mxu0 %v140
    %1508 = vmatprep.subr.mxu0 0.0
    %1509 = vmatpush1.msra.mxu0 %v141
    %1510 = vmatprep.subr.mxu0 0.0
    %1511 = vmatpush1.msra.mxu0 0.0
    %1512 = vmatprep.subr.mxu0 0.0
    %1513 = vmatpush1.msra.mxu0 0.0
    %1514 = vmatprep.subr.mxu0 0.0
    %1515 = vmatpush1.msra.mxu0 0.0
    %1516 = vmatprep.subr.mxu0 0.0
    %1517 = vmatpush1.msra.mxu0 0.0
    %1518 = vmatprep.subr.mxu0 0.0
    %1519 = vmatpush1.msra.mxu0 0.0
    %1520 = vmatprep.subr.mxu0 0.0
    %1521 = vmatpush1.msra.mxu0 0.0
    %1522 = vmatprep.subr.mxu0 0.0
    %1523 = vmatpush1.msra.mxu0 0.0
    %1524 = vmatprep.subr.mxu0 0.0
    %1525 = vmatpush1.msra.mxu0 0.0
    %1526 = vmatprep.subr.mxu0 0.0
    %1527 = vmatpush1.msra.mxu0 0.0
    %1528 = vmatprep.subr.mxu0 0.0
    %1529 = vmatpush1.msra.mxu0 0.0
    %1530 = vmatprep.subr.mxu0 0.0
    %1531 = vmatpush1.msra.mxu0 0.0
    %1532 = vmatprep.subr.mxu0 0.0
    %1533 = vmatpush1.msra.mxu0 0.0
    %1534 = vmatprep.subr.mxu0 0.0
    %1535 = vmatpush1.msra.mxu0 0.0
    %1536 = vmatprep.subr.mxu0 0.0
    %1537 = vmatpush1.msra.mxu0 0.0
    %1538 = vmatprep.subr.mxu0 0.0
    %1539 = vmatpush1.msra.mxu0 0.0
    %1540 = vmatprep.subr.mxu0 0.0
    %1541 = vmatpush1.msra.mxu0 0.0
    %1542 = vmatprep.subr.mxu0 0.0
    %1543 = vmatpush1.msra.mxu0 0.0
    %1544 = vmatprep.subr.mxu0 0.0
    %1545 = vmatpush1.msra.mxu0 0.0
    %1546 = vmatprep.subr.mxu0 0.0
    %1547 = vmatpush1.msra.mxu0 0.0
    %1548 = vmatprep.subr.mxu0 0.0
    %1549 = vmatpush1.msra.mxu0 0.0
    %1550 = vmatprep.subr.mxu0 0.0
    %1551 = vmatpush1.msra.mxu0 0.0
    %1552 = vmatprep.subr.mxu0 0.0
    %1553 = vmatpush1.msra.mxu0 0.0
    %1554 = vmatprep.subr.mxu0 0.0
    %1555 = vmatpush1.msra.mxu0 0.0
    %1556 = vmatprep.subr.mxu0 0.0
    %1557 = vmatpush1.msra.mxu0 0.0
    %1558 = vmatprep.subr.mxu0 0.0
    %1559 = vmatpush1.msra.mxu0 0.0
    %1560 = vmatprep.subr.mxu0 0.0
    %1561 = vmatpush1.msra.mxu0 0.0
    %1562 = vmatprep.subr.mxu0 0.0
    %1563 = vmatpush1.msra.mxu0 0.0
    %1564 = vmatprep.subr.mxu0 0.0
    %1565 = vmatpush1.msra.mxu0 0.0
    %1566 = vmatprep.mubr.f32.mxu0 0.0
    %1567 = vmatmul.mubr.f32.gmra.mrb[0].mxu0 %v147
    %v1568 = vpop.f32.mrb[0].mxu0
    %v1569 = vadd.f32 0.0, %v1568
    %v1570 = vpop.f32.mrb[0].mxu0
    %1571 = vmatprep.mubr.f32.mxu0 0.0
    %1572 = vmatmul.mubr.f32.gmra.mrb[0].mxu0 %v150
    %v1573 = vpop.f32.mrb[0].mxu0
    %v1574 = vadd.f32 0.0, %v1573
    %v1575 = vpop.f32.mrb[0].mxu0
    %1576 = vdwg.mxu0
    %1577 = vmatprep.subr.mxu0 0.0
    %1578 = vmatpush1.msra.mxu0 %v142
    %1579 = vmatprep.subr.mxu0 0.0
    %1580 = vmatpush1.msra.mxu0 %v143
    %1581 = vmatprep.subr.mxu0 0.0
    %1582 = vmatpush1.msra.mxu0 %v144
    %1583 = vmatprep.subr.mxu0 0.0
    %1584 = vmatpush1.msra.mxu0 %v145
    %1585 = vmatprep.subr.mxu0 0.0
    %1586 = vmatpush1.msra.mxu0 0.0
    %1587 = vmatprep.subr.mxu0 0.0
    %1588 = vmatpush1.msra.mxu0 0.0
    %1589 = vmatprep.subr.mxu0 0.0
    %1590 = vmatpush1.msra.mxu0 0.0
    %1591 = vmatprep.subr.mxu0 0.0
    %1592 = vmatpush1.msra.mxu0 0.0
    %1593 = vmatprep.subr.mxu0 0.0
    %1594 = vmatpush1.msra.mxu0 0.0
    %1595 = vmatprep.subr.mxu0 0.0
    %1596 = vmatpush1.msra.mxu0 0.0
    %1597 = vmatprep.subr.mxu0 0.0
    %1598 = vmatpush1.msra.mxu0 0.0
    %1599 = vmatprep.subr.mxu0 0.0
    %1600 = vmatpush1.msra.mxu0 0.0
    %1601 = vmatprep.subr.mxu0 0.0
    %1602 = vmatpush1.msra.mxu0 0.0
    %1603 = vmatprep.subr.mxu0 0.0
    %1604 = vmatpush1.msra.mxu0 0.0
    %1605 = vmatprep.subr.mxu0 0.0
    %1606 = vmatpush1.msra.mxu0 0.0
    %1607 = vmatprep.subr.mxu0 0.0
    %1608 = vmatpush1.msra.mxu0 0.0
    %1609 = vmatprep.subr.mxu0 0.0
    %1610 = vmatpush1.msra.mxu0 0.0
    %1611 = vmatprep.subr.mxu0 0.0
    %1612 = vmatpush1.msra.mxu0 0.0
    %1613 = vmatprep.subr.mxu0 0.0
    %1614 = vmatpush1.msra.mxu0 0.0
    %1615 = vmatprep.subr.mxu0 0.0
    %1616 = vmatpush1.msra.mxu0 0.0
    %1617 = vmatprep.subr.mxu0 0.0
    %1618 = vmatpush1.msra.mxu0 0.0
    %1619 = vmatprep.subr.mxu0 0.0
    %1620 = vmatpush1.msra.mxu0 0.0
    %1621 = vmatprep.subr.mxu0 0.0
    %1622 = vmatpush1.msra.mxu0 0.0
    %1623 = vmatprep.subr.mxu0 0.0
    %1624 = vmatpush1.msra.mxu0 0.0
    %1625 = vmatprep.subr.mxu0 0.0
    %1626 = vmatpush1.msra.mxu0 0.0
    %1627 = vmatprep.subr.mxu0 0.0
    %1628 = vmatpush1.msra.mxu0 0.0
    %1629 = vmatprep.subr.mxu0 0.0
    %1630 = vmatpush1.msra.mxu0 0.0
    %1631 = vmatprep.subr.mxu0 0.0
    %1632 = vmatpush1.msra.mxu0 0.0
    %1633 = vmatprep.subr.mxu0 0.0
    %1634 = vmatpush1.msra.mxu0 0.0
    %1635 = vmatprep.subr.mxu0 0.0
    %1636 = vmatpush1.msra.mxu0 0.0
    %1637 = vmatprep.subr.mxu0 0.0
    %1638 = vmatpush1.msra.mxu0 0.0
    %1639 = vmatprep.subr.mxu0 0.0
    %1640 = vmatpush1.msra.mxu0 0.0
    %1641 = vmatprep.mubr.f32.mxu0 0.0
    %1642 = vmatmul.mubr.f32.gmra.mrb[0].mxu0 %v147
    %v1643 = vpop.f32.mrb[0].mxu0
    %v1644 = vadd.f32 0.0, %v1643
    %v1645 = vpop.f32.mrb[0].mxu0
    %1646 = vmatprep.mubr.f32.mxu0 0.0
    %1647 = vmatmul.mubr.f32.gmra.mrb[0].mxu0 %v150
    %v1648 = vpop.f32.mrb[0].mxu0
    %v1649 = vadd.f32 0.0, %v1648
    %v1650 = vpop.f32.mrb[0].mxu0
    %1651 = vdwg.mxu0
    %v1652 = vmul.f32 %v219, %v35
    %v1653 = vmul.f32 %v224, %v36
    %v1654 = vmul.f32 %v294, %v35
    %v1655 = vmul.f32 %v299, %v36
    %v1656 = vmul.f32 %v369, %v35
    %v1657 = vmul.f32 %v374, %v36
    %v1658 = vmul.f32 %v444, %v35
    %v1659 = vmul.f32 %v449, %v36
    %v1660 = vmul.f32 %v519, %v37
    %v1661 = vmul.f32 %v524, %v38
    %v1662 = vmul.f32 %v594, %v37
    %v1663 = vmul.f32 %v599, %v38
    %v1664 = vmul.f32 %v669, %v37
    %v1665 = vmul.f32 %v674, %v38
    %v1666 = vmul.f32 %v744, %v37
    %v1667 = vmul.f32 %v749, %v38
    %v1668 = vadd.f32 %v1652, %v1660
    %v1669 = vadd.f32 %v1653, %v1661
    %v1670 = vadd.f32 %v1654, %v1662
    %v1671 = vadd.f32 %v1655, %v1663
    %v1672 = vadd.f32 %v1656, %v1664
    %v1673 = vadd.f32 %v1657, %v1665
    %v1674 = vadd.f32 %v1658, %v1666
    %v1675 = vadd.f32 %v1659, %v1667
    %v1676 = vmul.f32 %v819, %v35
    %v1677 = vmul.f32 %v824, %v36
    %v1678 = vmul.f32 %v894, %v35
    %v1679 = vmul.f32 %v899, %v36
    %v1680 = vmul.f32 %v969, %v35
    %v1681 = vmul.f32 %v974, %v36
    %v1682 = vmul.f32 %v1044, %v35
    %v1683 = vmul.f32 %v1049, %v36
    %v1684 = vmul.f32 %v1119, %v37
    %v1685 = vmul.f32 %v1124, %v38
    %v1686 = vmul.f32 %v1194, %v37
    %v1687 = vmul.f32 %v1199, %v38
    %v1688 = vmul.f32 %v1269, %v37
    %v1689 = vmul.f32 %v1274, %v38
    %v1690 = vmul.f32 %v1344, %v37
    %v1691 = vmul.f32 %v1349, %v38
    %v1692 = vadd.f32 %v1676, %v1684
    %v1693 = vadd.f32 %v1677, %v1685
    %v1694 = vadd.f32 %v1678, %v1686
    %v1695 = vadd.f32 %v1679, %v1687
    %v1696 = vadd.f32 %v1680, %v1688
    %v1697 = vadd.f32 %v1681, %v1689
    %v1698 = vadd.f32 %v1682, %v1690
    %v1699 = vadd.f32 %v1683, %v1691
    %vm1700 = vcmask 64512
    %v1702 = vsel %vm1700, %v1668, 0
    %v1705 = vsel %vm1700, %v1692, 0
    %1707 = vmatprep.subr.mxu0 0.0
    %1708 = vmatpush1.xpose.msra.mxu0 %v1705
    %1709 = vmatprep.subr.mxu0 0.0
    %1710 = vmatpush1.xpose.msra.mxu0 0.0
    %1711 = vmatprep.subr.mxu0 0.0
    %1712 = vmatpush1.xpose.msra.mxu0 0.0
    %1713 = vmatprep.subr.mxu0 0.0
    %1714 = vmatpush1.xpose.msra.mxu0 0.0
    %1715 = vmatprep.subr.mxu0 0.0
    %1716 = vmatpush1.xpose.msra.mxu0 0.0
    %1717 = vmatprep.subr.mxu0 0.0
    %1718 = vmatpush1.xpose.msra.mxu0 0.0
    %1719 = vmatprep.subr.mxu0 0.0
    %1720 = vmatpush1.xpose.msra.mxu0 0.0
    %1721 = vmatprep.subr.mxu0 0.0
    %1722 = vmatpush1.xpose.msra.mxu0 0.0
    %1723 = vmatprep.subr.mxu0 0.0
    %1724 = vmatpush1.xpose.msra.mxu0 0.0
    %1725 = vmatprep.subr.mxu0 0.0
    %1726 = vmatpush1.xpose.msra.mxu0 0.0
    %1727 = vmatprep.subr.mxu0 0.0
    %1728 = vmatpush1.xpose.msra.mxu0 0.0
    %1729 = vmatprep.subr.mxu0 0.0
    %1730 = vmatpush1.xpose.msra.mxu0 0.0
    %1731 = vmatprep.subr.mxu0 0.0
    %1732 = vmatpush1.xpose.msra.mxu0 0.0
    %1733 = vmatprep.subr.mxu0 0.0
    %1734 = vmatpush1.xpose.msra.mxu0 0.0
    %1735 = vmatprep.subr.mxu0 0.0
    %1736 = vmatpush1.xpose.msra.mxu0 0.0
    %1737 = vmatprep.subr.mxu0 0.0
    %1738 = vmatpush1.xpose.msra.mxu0 0.0
    %1739 = vmatprep.subr.mxu0 0.0
    %1740 = vmatpush1.xpose.msra.mxu0 0.0
    %1741 = vmatprep.subr.mxu0 0.0
    %1742 = vmatpush1.xpose.msra.mxu0 0.0
    %1743 = vmatprep.subr.mxu0 0.0
    %1744 = vmatpush1.xpose.msra.mxu0 0.0
    %1745 = vmatprep.subr.mxu0 0.0
    %1746 = vmatpush1.xpose.msra.mxu0 0.0
    %1747 = vmatprep.subr.mxu0 0.0
    %1748 = vmatpush1.xpose.msra.mxu0 0.0
    %1749 = vmatprep.subr.mxu0 0.0
    %1750 = vmatpush1.xpose.msra.mxu0 0.0
    %1751 = vmatprep.subr.mxu0 0.0
    %1752 = vmatpush1.xpose.msra.mxu0 0.0
    %1753 = vmatprep.subr.mxu0 0.0
    %1754 = vmatpush1.xpose.msra.mxu0 0.0
    %1755 = vmatprep.subr.mxu0 0.0
    %1756 = vmatpush1.xpose.msra.mxu0 0.0
    %1757 = vmatprep.subr.mxu0 0.0
    %1758 = vmatpush1.xpose.msra.mxu0 0.0
    %1759 = vmatprep.subr.mxu0 0.0
    %1760 = vmatpush1.xpose.msra.mxu0 0.0
    %1761 = vmatprep.subr.mxu0 0.0
    %1762 = vmatpush1.xpose.msra.mxu0 0.0
    %1763 = vmatprep.subr.mxu0 0.0
    %1764 = vmatpush1.xpose.msra.mxu0 0.0
    %1765 = vmatprep.subr.mxu0 0.0
    %1766 = vmatpush1.xpose.msra.mxu0 0.0
    %1767 = vmatprep.subr.mxu0 0.0
    %1768 = vmatpush1.xpose.msra.mxu0 0.0
    %1769 = vmatprep.subr.mxu0 0.0
    %1770 = vmatpush1.xpose.msra.mxu0 0.0
    %1771 = vmatprep.mubr.f32.mxu0 0.0
    %1772 = vmatmul.mubr.f32.gmra.mrb[0].mxu0 %v1702
    %v1773 = vpop.f32.mrb[0].mxu0
    %v1774 = vadd.f32 0.0, %v1773
    %v1775 = vpop.f32.mrb[0].mxu0
    %1776 = vdwg.mxu0
    %v1778 = vsel %vm1700, %v1669, 0
    %v1781 = vsel %vm1700, %v1693, 0
    %1783 = vmatprep.subr.mxu0 0.0
    %1784 = vmatpush1.xpose.msra.mxu0 %v1781
    %1785 = vmatprep.subr.mxu0 0.0
    %1786 = vmatpush1.xpose.msra.mxu0 0.0
    %1787 = vmatprep.subr.mxu0 0.0
    %1788 = vmatpush1.xpose.msra.mxu0 0.0
    %1789 = vmatprep.subr.mxu0 0.0
    %1790 = vmatpush1.xpose.msra.mxu0 0.0
    %1791 = vmatprep.subr.mxu0 0.0
    %1792 = vmatpush1.xpose.msra.mxu0 0.0
    %1793 = vmatprep.subr.mxu0 0.0
    %1794 = vmatpush1.xpose.msra.mxu0 0.0
    %1795 = vmatprep.subr.mxu0 0.0
    %1796 = vmatpush1.xpose.msra.mxu0 0.0
    %1797 = vmatprep.subr.mxu0 0.0
    %1798 = vmatpush1.xpose.msra.mxu0 0.0
    %1799 = vmatprep.subr.mxu0 0.0
    %1800 = vmatpush1.xpose.msra.mxu0 0.0
    %1801 = vmatprep.subr.mxu0 0.0
    %1802 = vmatpush1.xpose.msra.mxu0 0.0
    %1803 = vmatprep.subr.mxu0 0.0
    %1804 = vmatpush1.xpose.msra.mxu0 0.0
    %1805 = vmatprep.subr.mxu0 0.0
    %1806 = vmatpush1.xpose.msra.mxu0 0.0
    %1807 = vmatprep.subr.mxu0 0.0
    %1808 = vmatpush1.xpose.msra.mxu0 0.0
    %1809 = vmatprep.subr.mxu0 0.0
    %1810 = vmatpush1.xpose.msra.mxu0 0.0
    %1811 = vmatprep.subr.mxu0 0.0
    %1812 = vmatpush1.xpose.msra.mxu0 0.0
    %1813 = vmatprep.subr.mxu0 0.0
    %1814 = vmatpush1.xpose.msra.mxu0 0.0
    %1815 = vmatprep.subr.mxu0 0.0
    %1816 = vmatpush1.xpose.msra.mxu0 0.0
    %1817 = vmatprep.subr.mxu0 0.0
    %1818 = vmatpush1.xpose.msra.mxu0 0.0
    %1819 = vmatprep.subr.mxu0 0.0
    %1820 = vmatpush1.xpose.msra.mxu0 0.0
    %1821 = vmatprep.subr.mxu0 0.0
    %1822 = vmatpush1.xpose.msra.mxu0 0.0
    %1823 = vmatprep.subr.mxu0 0.0
    %1824 = vmatpush1.xpose.msra.mxu0 0.0
    %1825 = vmatprep.subr.mxu0 0.0
    %1826 = vmatpush1.xpose.msra.mxu0 0.0
    %1827 = vmatprep.subr.mxu0 0.0
    %1828 = vmatpush1.xpose.msra.mxu0 0.0
    %1829 = vmatprep.subr.mxu0 0.0
    %1830 = vmatpush1.xpose.msra.mxu0 0.0
    %1831 = vmatprep.subr.mxu0 0.0
    %1832 = vmatpush1.xpose.msra.mxu0 0.0
    %1833 = vmatprep.subr.mxu0 0.0
    %1834 = vmatpush1.xpose.msra.mxu0 0.0
    %1835 = vmatprep.subr.mxu0 0.0
    %1836 = vmatpush1.xpose.msra.mxu0 0.0
    %1837 = vmatprep.subr.mxu0 0.0
    %1838 = vmatpush1.xpose.msra.mxu0 0.0
    %1839 = vmatprep.subr.mxu0 0.0
    %1840 = vmatpush1.xpose.msra.mxu0 0.0
    %1841 = vmatprep.subr.mxu0 0.0
    %1842 = vmatpush1.xpose.msra.mxu0 0.0
    %1843 = vmatprep.subr.mxu0 0.0
    %1844 = vmatpush1.xpose.msra.mxu0 0.0
    %1845 = vmatprep.subr.mxu0 0.0
    %1846 = vmatpush1.xpose.msra.mxu0 0.0
    %1847 = vmatprep.mubr.f32.mxu0 0.0
    %1848 = vmatmul.mubr.f32.gmra.mrb[0].mxu0 %v1778
    %v1849 = vpop.f32.mrb[0].mxu0
    %v1850 = vadd.f32 0.0, %v1849
    %v1851 = vpop.f32.mrb[0].mxu0
    %1852 = vdwg.mxu0
    %v1854 = vsel %vm1700, %v1670, 0
    %v1857 = vsel %vm1700, %v1694, 0
    %1859 = vmatprep.subr.mxu0 0.0
    %1860 = vmatpush1.xpose.msra.mxu0 %v1857
    %1861 = vmatprep.subr.mxu0 0.0
    %1862 = vmatpush1.xpose.msra.mxu0 0.0
    %1863 = vmatprep.subr.mxu0 0.0
    %1864 = vmatpush1.xpose.msra.mxu0 0.0
    %1865 = vmatprep.subr.mxu0 0.0
    %1866 = vmatpush1.xpose.msra.mxu0 0.0
    %1867 = vmatprep.subr.mxu0 0.0
    %1868 = vmatpush1.xpose.msra.mxu0 0.0
    %1869 = vmatprep.subr.mxu0 0.0
    %1870 = vmatpush1.xpose.msra.mxu0 0.0
    %1871 = vmatprep.subr.mxu0 0.0
    %1872 = vmatpush1.xpose.msra.mxu0 0.0
    %1873 = vmatprep.subr.mxu0 0.0
    %1874 = vmatpush1.xpose.msra.mxu0 0.0
    %1875 = vmatprep.subr.mxu0 0.0
    %1876 = vmatpush1.xpose.msra.mxu0 0.0
    %1877 = vmatprep.subr.mxu0 0.0
    %1878 = vmatpush1.xpose.msra.mxu0 0.0
    %1879 = vmatprep.subr.mxu0 0.0
    %1880 = vmatpush1.xpose.msra.mxu0 0.0
    %1881 = vmatprep.subr.mxu0 0.0
    %1882 = vmatpush1.xpose.msra.mxu0 0.0
    %1883 = vmatprep.subr.mxu0 0.0
    %1884 = vmatpush1.xpose.msra.mxu0 0.0
    %1885 = vmatprep.subr.mxu0 0.0
    %1886 = vmatpush1.xpose.msra.mxu0 0.0
    %1887 = vmatprep.subr.mxu0 0.0
    %1888 = vmatpush1.xpose.msra.mxu0 0.0
    %1889 = vmatprep.subr.mxu0 0.0
    %1890 = vmatpush1.xpose.msra.mxu0 0.0
    %1891 = vmatprep.subr.mxu0 0.0
    %1892 = vmatpush1.xpose.msra.mxu0 0.0
    %1893 = vmatprep.subr.mxu0 0.0
    %1894 = vmatpush1.xpose.msra.mxu0 0.0
    %1895 = vmatprep.subr.mxu0 0.0
    %1896 = vmatpush1.xpose.msra.mxu0 0.0
    %1897 = vmatprep.subr.mxu0 0.0
    %1898 = vmatpush1.xpose.msra.mxu0 0.0
    %1899 = vmatprep.subr.mxu0 0.0
    %1900 = vmatpush1.xpose.msra.mxu0 0.0
    %1901 = vmatprep.subr.mxu0 0.0
    %1902 = vmatpush1.xpose.msra.mxu0 0.0
    %1903 = vmatprep.subr.mxu0 0.0
    %1904 = vmatpush1.xpose.msra.mxu0 0.0
    %1905 = vmatprep.subr.mxu0 0.0
    %1906 = vmatpush1.xpose.msra.mxu0 0.0
    %1907 = vmatprep.subr.mxu0 0.0
    %1908 = vmatpush1.xpose.msra.mxu0 0.0
    %1909 = vmatprep.subr.mxu0 0.0
    %1910 = vmatpush1.xpose.msra.mxu0 0.0
    %1911 = vmatprep.subr.mxu0 0.0
    %1912 = vmatpush1.xpose.msra.mxu0 0.0
    %1913 = vmatprep.subr.mxu0 0.0
    %1914 = vmatpush1.xpose.msra.mxu0 0.0
    %1915 = vmatprep.subr.mxu0 0.0
    %1916 = vmatpush1.xpose.msra.mxu0 0.0
    %1917 = vmatprep.subr.mxu0 0.0
    %1918 = vmatpush1.xpose.msra.mxu0 0.0
    %1919 = vmatprep.subr.mxu0 0.0
    %1920 = vmatpush1.xpose.msra.mxu0 0.0
    %1921 = vmatprep.subr.mxu0 0.0
    %1922 = vmatpush1.xpose.msra.mxu0 0.0
    %1923 = vmatprep.mubr.f32.mxu0 0.0
    %1924 = vmatmul.mubr.f32.gmra.mrb[0].mxu0 %v1854
    %v1925 = vpop.f32.mrb[0].mxu0
    %v1926 = vadd.f32 0.0, %v1925
    %v1927 = vpop.f32.mrb[0].mxu0
    %1928 = vdwg.mxu0
    %v1930 = vsel %vm1700, %v1671, 0
    %v1933 = vsel %vm1700, %v1695, 0
    %1935 = vmatprep.subr.mxu0 0.0
    %1936 = vmatpush1.xpose.msra.mxu0 %v1933
    %1937 = vmatprep.subr.mxu0 0.0
    %1938 = vmatpush1.xpose.msra.mxu0 0.0
    %1939 = vmatprep.subr.mxu0 0.0
    %1940 = vmatpush1.xpose.msra.mxu0 0.0
    %1941 = vmatprep.subr.mxu0 0.0
    %1942 = vmatpush1.xpose.msra.mxu0 0.0
    %1943 = vmatprep.subr.mxu0 0.0
    %1944 = vmatpush1.xpose.msra.mxu0 0.0
    %1945 = vmatprep.subr.mxu0 0.0
    %1946 = vmatpush1.xpose.msra.mxu0 0.0
    %1947 = vmatprep.subr.mxu0 0.0
    %1948 = vmatpush1.xpose.msra.mxu0 0.0
    %1949 = vmatprep.subr.mxu0 0.0
    %1950 = vmatpush1.xpose.msra.mxu0 0.0
    %1951 = vmatprep.subr.mxu0 0.0
    %1952 = vmatpush1.xpose.msra.mxu0 0.0
    %1953 = vmatprep.subr.mxu0 0.0
    %1954 = vmatpush1.xpose.msra.mxu0 0.0
    %1955 = vmatprep.subr.mxu0 0.0
    %1956 = vmatpush1.xpose.msra.mxu0 0.0
    %1957 = vmatprep.subr.mxu0 0.0
    %1958 = vmatpush1.xpose.msra.mxu0 0.0
    %1959 = vmatprep.subr.mxu0 0.0
    %1960 = vmatpush1.xpose.msra.mxu0 0.0
    %1961 = vmatprep.subr.mxu0 0.0
    %1962 = vmatpush1.xpose.msra.mxu0 0.0
    %1963 = vmatprep.subr.mxu0 0.0
    %1964 = vmatpush1.xpose.msra.mxu0 0.0
    %1965 = vmatprep.subr.mxu0 0.0
    %1966 = vmatpush1.xpose.msra.mxu0 0.0
    %1967 = vmatprep.subr.mxu0 0.0
    %1968 = vmatpush1.xpose.msra.mxu0 0.0
    %1969 = vmatprep.subr.mxu0 0.0
    %1970 = vmatpush1.xpose.msra.mxu0 0.0
    %1971 = vmatprep.subr.mxu0 0.0
    %1972 = vmatpush1.xpose.msra.mxu0 0.0
    %1973 = vmatprep.subr.mxu0 0.0
    %1974 = vmatpush1.xpose.msra.mxu0 0.0
    %1975 = vmatprep.subr.mxu0 0.0
    %1976 = vmatpush1.xpose.msra.mxu0 0.0
    %1977 = vmatprep.subr.mxu0 0.0
    %1978 = vmatpush1.xpose.msra.mxu0 0.0
    %1979 = vmatprep.subr.mxu0 0.0
    %1980 = vmatpush1.xpose.msra.mxu0 0.0
    %1981 = vmatprep.subr.mxu0 0.0
    %1982 = vmatpush1.xpose.msra.mxu0 0.0
    %1983 = vmatprep.subr.mxu0 0.0
    %1984 = vmatpush1.xpose.msra.mxu0 0.0
    %1985 = vmatprep.subr.mxu0 0.0
    %1986 = vmatpush1.xpose.msra.mxu0 0.0
    %1987 = vmatprep.subr.mxu0 0.0
    %1988 = vmatpush1.xpose.msra.mxu0 0.0
    %1989 = vmatprep.subr.mxu0 0.0
    %1990 = vmatpush1.xpose.msra.mxu0 0.0
    %1991 = vmatprep.subr.mxu0 0.0
    %1992 = vmatpush1.xpose.msra.mxu0 0.0
    %1993 = vmatprep.subr.mxu0 0.0
    %1994 = vmatpush1.xpose.msra.mxu0 0.0
    %1995 = vmatprep.subr.mxu0 0.0
    %1996 = vmatpush1.xpose.msra.mxu0 0.0
    %1997 = vmatprep.subr.mxu0 0.0
    %1998 = vmatpush1.xpose.msra.mxu0 0.0
    %1999 = vmatprep.mubr.f32.mxu0 0.0
    %2000 = vmatmul.mubr.f32.gmra.mrb[0].mxu0 %v1930
    %v2001 = vpop.f32.mrb[0].mxu0
    %v2002 = vadd.f32 0.0, %v2001
    %v2003 = vpop.f32.mrb[0].mxu0
    %2004 = vdwg.mxu0
    %v2006 = vsel %vm1700, %v1672, 0
    %v2009 = vsel %vm1700, %v1696, 0
    %2011 = vmatprep.subr.mxu0 0.0
    %2012 = vmatpush1.xpose.msra.mxu0 %v2009
    %2013 = vmatprep.subr.mxu0 0.0
    %2014 = vmatpush1.xpose.msra.mxu0 0.0
    %2015 = vmatprep.subr.mxu0 0.0
    %2016 = vmatpush1.xpose.msra.mxu0 0.0
    %2017 = vmatprep.subr.mxu0 0.0
    %2018 = vmatpush1.xpose.msra.mxu0 0.0
    %2019 = vmatprep.subr.mxu0 0.0
    %2020 = vmatpush1.xpose.msra.mxu0 0.0
    %2021 = vmatprep.subr.mxu0 0.0
    %2022 = vmatpush1.xpose.msra.mxu0 0.0
    %2023 = vmatprep.subr.mxu0 0.0
    %2024 = vmatpush1.xpose.msra.mxu0 0.0
    %2025 = vmatprep.subr.mxu0 0.0
    %2026 = vmatpush1.xpose.msra.mxu0 0.0
    %2027 = vmatprep.subr.mxu0 0.0
    %2028 = vmatpush1.xpose.msra.mxu0 0.0
    %2029 = vmatprep.subr.mxu0 0.0
    %2030 = vmatpush1.xpose.msra.mxu0 0.0
    %2031 = vmatprep.subr.mxu0 0.0
    %2032 = vmatpush1.xpose.msra.mxu0 0.0
    %2033 = vmatprep.subr.mxu0 0.0
    %2034 = vmatpush1.xpose.msra.mxu0 0.0
    %2035 = vmatprep.subr.mxu0 0.0
    %2036 = vmatpush1.xpose.msra.mxu0 0.0
    %2037 = vmatprep.subr.mxu0 0.0
    %2038 = vmatpush1.xpose.msra.mxu0 0.0
    %2039 = vmatprep.subr.mxu0 0.0
    %2040 = vmatpush1.xpose.msra.mxu0 0.0
    %2041 = vmatprep.subr.mxu0 0.0
    %2042 = vmatpush1.xpose.msra.mxu0 0.0
    %2043 = vmatprep.subr.mxu0 0.0
    %2044 = vmatpush1.xpose.msra.mxu0 0.0
    %2045 = vmatprep.subr.mxu0 0.0
    %2046 = vmatpush1.xpose.msra.mxu0 0.0
    %2047 = vmatprep.subr.mxu0 0.0
    %2048 = vmatpush1.xpose.msra.mxu0 0.0
    %2049 = vmatprep.subr.mxu0 0.0
    %2050 = vmatpush1.xpose.msra.mxu0 0.0
    %2051 = vmatprep.subr.mxu0 0.0
    %2052 = vmatpush1.xpose.msra.mxu0 0.0
    %2053 = vmatprep.subr.mxu0 0.0
    %2054 = vmatpush1.xpose.msra.mxu0 0.0
    %2055 = vmatprep.subr.mxu0 0.0
    %2056 = vmatpush1.xpose.msra.mxu0 0.0
    %2057 = vmatprep.subr.mxu0 0.0
    %2058 = vmatpush1.xpose.msra.mxu0 0.0
    %2059 = vmatprep.subr.mxu0 0.0
    %2060 = vmatpush1.xpose.msra.mxu0 0.0
    %2061 = vmatprep.subr.mxu0 0.0
    %2062 = vmatpush1.xpose.msra.mxu0 0.0
    %2063 = vmatprep.subr.mxu0 0.0
    %2064 = vmatpush1.xpose.msra.mxu0 0.0
    %2065 = vmatprep.subr.mxu0 0.0
    %2066 = vmatpush1.xpose.msra.mxu0 0.0
    %2067 = vmatprep.subr.mxu0 0.0
    %2068 = vmatpush1.xpose.msra.mxu0 0.0
    %2069 = vmatprep.subr.mxu0 0.0
    %2070 = vmatpush1.xpose.msra.mxu0 0.0
    %2071 = vmatprep.subr.mxu0 0.0
    %2072 = vmatpush1.xpose.msra.mxu0 0.0
    %2073 = vmatprep.subr.mxu0 0.0
    %2074 = vmatpush1.xpose.msra.mxu0 0.0
    %2075 = vmatprep.mubr.f32.mxu0 0.0
    %2076 = vmatmul.mubr.f32.gmra.mrb[0].mxu0 %v2006
    %v2077 = vpop.f32.mrb[0].mxu0
    %v2078 = vadd.f32 0.0, %v2077
    %v2079 = vpop.f32.mrb[0].mxu0
    %2080 = vdwg.mxu0
    %v2082 = vsel %vm1700, %v1673, 0
    %v2085 = vsel %vm1700, %v1697, 0
    %2087 = vmatprep.subr.mxu0 0.0
    %2088 = vmatpush1.xpose.msra.mxu0 %v2085
    %2089 = vmatprep.subr.mxu0 0.0
    %2090 = vmatpush1.xpose.msra.mxu0 0.0
    %2091 = vmatprep.subr.mxu0 0.0
    %2092 = vmatpush1.xpose.msra.mxu0 0.0
    %2093 = vmatprep.subr.mxu0 0.0
    %2094 = vmatpush1.xpose.msra.mxu0 0.0
    %2095 = vmatprep.subr.mxu0 0.0
    %2096 = vmatpush1.xpose.msra.mxu0 0.0
    %2097 = vmatprep.subr.mxu0 0.0
    %2098 = vmatpush1.xpose.msra.mxu0 0.0
    %2099 = vmatprep.subr.mxu0 0.0
    %2100 = vmatpush1.xpose.msra.mxu0 0.0
    %2101 = vmatprep.subr.mxu0 0.0
    %2102 = vmatpush1.xpose.msra.mxu0 0.0
    %2103 = vmatprep.subr.mxu0 0.0
    %2104 = vmatpush1.xpose.msra.mxu0 0.0
    %2105 = vmatprep.subr.mxu0 0.0
    %2106 = vmatpush1.xpose.msra.mxu0 0.0
    %2107 = vmatprep.subr.mxu0 0.0
    %2108 = vmatpush1.xpose.msra.mxu0 0.0
    %2109 = vmatprep.subr.mxu0 0.0
    %2110 = vmatpush1.xpose.msra.mxu0 0.0
    %2111 = vmatprep.subr.mxu0 0.0
    %2112 = vmatpush1.xpose.msra.mxu0 0.0
    %2113 = vmatprep.subr.mxu0 0.0
    %2114 = vmatpush1.xpose.msra.mxu0 0.0
    %2115 = vmatprep.subr.mxu0 0.0
    %2116 = vmatpush1.xpose.msra.mxu0 0.0
    %2117 = vmatprep.subr.mxu0 0.0
    %2118 = vmatpush1.xpose.msra.mxu0 0.0
    %2119 = vmatprep.subr.mxu0 0.0
    %2120 = vmatpush1.xpose.msra.mxu0 0.0
    %2121 = vmatprep.subr.mxu0 0.0
    %2122 = vmatpush1.xpose.msra.mxu0 0.0
    %2123 = vmatprep.subr.mxu0 0.0
    %2124 = vmatpush1.xpose.msra.mxu0 0.0
    %2125 = vmatprep.subr.mxu0 0.0
    %2126 = vmatpush1.xpose.msra.mxu0 0.0
    %2127 = vmatprep.subr.mxu0 0.0
    %2128 = vmatpush1.xpose.msra.mxu0 0.0
    %2129 = vmatprep.subr.mxu0 0.0
    %2130 = vmatpush1.xpose.msra.mxu0 0.0
    %2131 = vmatprep.subr.mxu0 0.0
    %2132 = vmatpush1.xpose.msra.mxu0 0.0
    %2133 = vmatprep.subr.mxu0 0.0
    %2134 = vmatpush1.xpose.msra.mxu0 0.0
    %2135 = vmatprep.subr.mxu0 0.0
    %2136 = vmatpush1.xpose.msra.mxu0 0.0
    %2137 = vmatprep.subr.mxu0 0.0
    %2138 = vmatpush1.xpose.msra.mxu0 0.0
    %2139 = vmatprep.subr.mxu0 0.0
    %2140 = vmatpush1.xpose.msra.mxu0 0.0
    %2141 = vmatprep.subr.mxu0 0.0
    %2142 = vmatpush1.xpose.msra.mxu0 0.0
    %2143 = vmatprep.subr.mxu0 0.0
    %2144 = vmatpush1.xpose.msra.mxu0 0.0
    %2145 = vmatprep.subr.mxu0 0.0
    %2146 = vmatpush1.xpose.msra.mxu0 0.0
    %2147 = vmatprep.subr.mxu0 0.0
    %2148 = vmatpush1.xpose.msra.mxu0 0.0
    %2149 = vmatprep.subr.mxu0 0.0
    %2150 = vmatpush1.xpose.msra.mxu0 0.0
    %2151 = vmatprep.mubr.f32.mxu0 0.0
    %2152 = vmatmul.mubr.f32.gmra.mrb[0].mxu0 %v2082
    %v2153 = vpop.f32.mrb[0].mxu0
    %v2154 = vadd.f32 0.0, %v2153
    %v2155 = vpop.f32.mrb[0].mxu0
    %2156 = vdwg.mxu0
    %v2158 = vsel %vm1700, %v1674, 0
    %v2161 = vsel %vm1700, %v1698, 0
    %2163 = vmatprep.subr.mxu0 0.0
    %2164 = vmatpush1.xpose.msra.mxu0 %v2161
    %2165 = vmatprep.subr.mxu0 0.0
    %2166 = vmatpush1.xpose.msra.mxu0 0.0
    %2167 = vmatprep.subr.mxu0 0.0
    %2168 = vmatpush1.xpose.msra.mxu0 0.0
    %2169 = vmatprep.subr.mxu0 0.0
    %2170 = vmatpush1.xpose.msra.mxu0 0.0
    %2171 = vmatprep.subr.mxu0 0.0
    %2172 = vmatpush1.xpose.msra.mxu0 0.0
    %2173 = vmatprep.subr.mxu0 0.0
    %2174 = vmatpush1.xpose.msra.mxu0 0.0
    %2175 = vmatprep.subr.mxu0 0.0
    %2176 = vmatpush1.xpose.msra.mxu0 0.0
    %2177 = vmatprep.subr.mxu0 0.0
    %2178 = vmatpush1.xpose.msra.mxu0 0.0
    %2179 = vmatprep.subr.mxu0 0.0
    %2180 = vmatpush1.xpose.msra.mxu0 0.0
    %2181 = vmatprep.subr.mxu0 0.0
    %2182 = vmatpush1.xpose.msra.mxu0 0.0
    %2183 = vmatprep.subr.mxu0 0.0
    %2184 = vmatpush1.xpose.msra.mxu0 0.0
    %2185 = vmatprep.subr.mxu0 0.0
    %2186 = vmatpush1.xpose.msra.mxu0 0.0
    %2187 = vmatprep.subr.mxu0 0.0
    %2188 = vmatpush1.xpose.msra.mxu0 0.0
    %2189 = vmatprep.subr.mxu0 0.0
    %2190 = vmatpush1.xpose.msra.mxu0 0.0
    %2191 = vmatprep.subr.mxu0 0.0
    %2192 = vmatpush1.xpose.msra.mxu0 0.0
    %2193 = vmatprep.subr.mxu0 0.0
    %2194 = vmatpush1.xpose.msra.mxu0 0.0
    %2195 = vmatprep.subr.mxu0 0.0
    %2196 = vmatpush1.xpose.msra.mxu0 0.0
    %2197 = vmatprep.subr.mxu0 0.0
    %2198 = vmatpush1.xpose.msra.mxu0 0.0
    %2199 = vmatprep.subr.mxu0 0.0
    %2200 = vmatpush1.xpose.msra.mxu0 0.0
    %2201 = vmatprep.subr.mxu0 0.0
    %2202 = vmatpush1.xpose.msra.mxu0 0.0
    %2203 = vmatprep.subr.mxu0 0.0
    %2204 = vmatpush1.xpose.msra.mxu0 0.0
    %2205 = vmatprep.subr.mxu0 0.0
    %2206 = vmatpush1.xpose.msra.mxu0 0.0
    %2207 = vmatprep.subr.mxu0 0.0
    %2208 = vmatpush1.xpose.msra.mxu0 0.0
    %2209 = vmatprep.subr.mxu0 0.0
    %2210 = vmatpush1.xpose.msra.mxu0 0.0
    %2211 = vmatprep.subr.mxu0 0.0
    %2212 = vmatpush1.xpose.msra.mxu0 0.0
    %2213 = vmatprep.subr.mxu0 0.0
    %2214 = vmatpush1.xpose.msra.mxu0 0.0
    %2215 = vmatprep.subr.mxu0 0.0
    %2216 = vmatpush1.xpose.msra.mxu0 0.0
    %2217 = vmatprep.subr.mxu0 0.0
    %2218 = vmatpush1.xpose.msra.mxu0 0.0
    %2219 = vmatprep.subr.mxu0 0.0
    %2220 = vmatpush1.xpose.msra.mxu0 0.0
    %2221 = vmatprep.subr.mxu0 0.0
    %2222 = vmatpush1.xpose.msra.mxu0 0.0
    %2223 = vmatprep.subr.mxu0 0.0
    %2224 = vmatpush1.xpose.msra.mxu0 0.0
    %2225 = vmatprep.subr.mxu0 0.0
    %2226 = vmatpush1.xpose.msra.mxu0 0.0
    %2227 = vmatprep.mubr.f32.mxu0 0.0
    %2228 = vmatmul.mubr.f32.gmra.mrb[0].mxu0 %v2158
    %v2229 = vpop.f32.mrb[0].mxu0
    %v2230 = vadd.f32 0.0, %v2229
    %v2231 = vpop.f32.mrb[0].mxu0
    %2232 = vdwg.mxu0
    %v2234 = vsel %vm1700, %v1675, 0
    %v2237 = vsel %vm1700, %v1699, 0
    %2239 = vmatprep.subr.mxu0 0.0
    %2240 = vmatpush1.xpose.msra.mxu0 %v2237
    %2241 = vmatprep.subr.mxu0 0.0
    %2242 = vmatpush1.xpose.msra.mxu0 0.0
    %2243 = vmatprep.subr.mxu0 0.0
    %2244 = vmatpush1.xpose.msra.mxu0 0.0
    %2245 = vmatprep.subr.mxu0 0.0
    %2246 = vmatpush1.xpose.msra.mxu0 0.0
    %2247 = vmatprep.subr.mxu0 0.0
    %2248 = vmatpush1.xpose.msra.mxu0 0.0
    %2249 = vmatprep.subr.mxu0 0.0
    %2250 = vmatpush1.xpose.msra.mxu0 0.0
    %2251 = vmatprep.subr.mxu0 0.0
    %2252 = vmatpush1.xpose.msra.mxu0 0.0
    %2253 = vmatprep.subr.mxu0 0.0
    %2254 = vmatpush1.xpose.msra.mxu0 0.0
    %2255 = vmatprep.subr.mxu0 0.0
    %2256 = vmatpush1.xpose.msra.mxu0 0.0
    %2257 = vmatprep.subr.mxu0 0.0
    %2258 = vmatpush1.xpose.msra.mxu0 0.0
    %2259 = vmatprep.subr.mxu0 0.0
    %2260 = vmatpush1.xpose.msra.mxu0 0.0
    %2261 = vmatprep.subr.mxu0 0.0
    %2262 = vmatpush1.xpose.msra.mxu0 0.0
    %2263 = vmatprep.subr.mxu0 0.0
    %2264 = vmatpush1.xpose.msra.mxu0 0.0
    %2265 = vmatprep.subr.mxu0 0.0
    %2266 = vmatpush1.xpose.msra.mxu0 0.0
    %2267 = vmatprep.subr.mxu0 0.0
    %2268 = vmatpush1.xpose.msra.mxu0 0.0
    %2269 = vmatprep.subr.mxu0 0.0
    %2270 = vmatpush1.xpose.msra.mxu0 0.0
    %2271 = vmatprep.subr.mxu0 0.0
    %2272 = vmatpush1.xpose.msra.mxu0 0.0
    %2273 = vmatprep.subr.mxu0 0.0
    %2274 = vmatpush1.xpose.msra.mxu0 0.0
    %2275 = vmatprep.subr.mxu0 0.0
    %2276 = vmatpush1.xpose.msra.mxu0 0.0
    %2277 = vmatprep.subr.mxu0 0.0
    %2278 = vmatpush1.xpose.msra.mxu0 0.0
    %2279 = vmatprep.subr.mxu0 0.0
    %2280 = vmatpush1.xpose.msra.mxu0 0.0
    %2281 = vmatprep.subr.mxu0 0.0
    %2282 = vmatpush1.xpose.msra.mxu0 0.0
    %2283 = vmatprep.subr.mxu0 0.0
    %2284 = vmatpush1.xpose.msra.mxu0 0.0
    %2285 = vmatprep.subr.mxu0 0.0
    %2286 = vmatpush1.xpose.msra.mxu0 0.0
    %2287 = vmatprep.subr.mxu0 0.0
    %2288 = vmatpush1.xpose.msra.mxu0 0.0
    %2289 = vmatprep.subr.mxu0 0.0
    %2290 = vmatpush1.xpose.msra.mxu0 0.0
    %2291 = vmatprep.subr.mxu0 0.0
    %2292 = vmatpush1.xpose.msra.mxu0 0.0
    %2293 = vmatprep.subr.mxu0 0.0
    %2294 = vmatpush1.xpose.msra.mxu0 0.0
    %2295 = vmatprep.subr.mxu0 0.0
    %2296 = vmatpush1.xpose.msra.mxu0 0.0
    %2297 = vmatprep.subr.mxu0 0.0
    %2298 = vmatpush1.xpose.msra.mxu0 0.0
    %2299 = vmatprep.subr.mxu0 0.0
    %2300 = vmatpush1.xpose.msra.mxu0 0.0
    %2301 = vmatprep.subr.mxu0 0.0
    %2302 = vmatpush1.xpose.msra.mxu0 0.0
    %2303 = vmatprep.mubr.f32.mxu0 0.0
    %2304 = vmatmul.mubr.f32.gmra.mrb[0].mxu0 %v2234
    %v2305 = vpop.f32.mrb[0].mxu0
    %v2306 = vadd.f32 0.0, %v2305
    %v2307 = vpop.f32.mrb[0].mxu0
    %2308 = vdwg.mxu0
    %v2309 = vlaneseq
    %v2310 = vshrl.u32 %v2309, 7
    %v2311 = vlaneseq
    %v2312 = vand.u32 %v2311, 127
    %vm2313 = vcmp.le.s32.totalorder %v2312, %v2310
    %v2314 = vsel %vm2313, 1, 0
    %vm2315 = vcmp.eq.s32.totalorder %v2314, 1
    %v2316 = vsel %vm2315, %v1774, -3.4028235e+38
    %v2317 = vsel %vm2315, %v1850, -3.4028235e+38
    %v2318 = vsel %vm2315, %v1926, -3.4028235e+38
    %v2319 = vsel %vm2315, %v2002, -3.4028235e+38
    %v2320 = vsel %vm2315, %v2078, -3.4028235e+38
    %v2321 = vsel %vm2315, %v2154, -3.4028235e+38
    %v2322 = vsel %vm2315, %v2230, -3.4028235e+38
    %v2323 = vsel %vm2315, %v2306, -3.4028235e+38
    %v2324 = vsel %vm1700, %v2316, -inf
    %2325 = vmax.xlane.f32.xlu0 %v2324
    %v2326 = vpop.xlane.xlu0 %2325
    %v2327 = vsel %vm1700, %v2317, -inf
    %2328 = vmax.xlane.f32.xlu0 %v2327
    %v2329 = vpop.xlane.xlu0 %2328
    %v2330 = vsel %vm1700, %v2318, -inf
    %2331 = vmax.xlane.f32.xlu0 %v2330
    %v2332 = vpop.xlane.xlu0 %2331
    %v2333 = vsel %vm1700, %v2319, -inf
    %2334 = vmax.xlane.f32.xlu0 %v2333
    %v2335 = vpop.xlane.xlu0 %2334
    %v2336 = vsel %vm1700, %v2320, -inf
    %2337 = vmax.xlane.f32.xlu0 %v2336
    %v2338 = vpop.xlane.xlu0 %2337
    %v2339 = vsel %vm1700, %v2321, -inf
    %2340 = vmax.xlane.f32.xlu0 %v2339
    %v2341 = vpop.xlane.xlu0 %2340
    %v2342 = vsel %vm1700, %v2322, -inf
    %2343 = vmax.xlane.f32.xlu0 %v2342
    %v2344 = vpop.xlane.xlu0 %2343
    %v2345 = vsel %vm1700, %v2323, -inf
    %2346 = vmax.xlane.f32.xlu0 %v2345
    %v2347 = vpop.xlane.xlu0 %2346
    %v2348 = vsub.f32 %v2316, %v2326
    %v2349 = vsub.f32 %v2317, %v2329
    %v2350 = vsub.f32 %v2318, %v2332
    %v2351 = vsub.f32 %v2319, %v2335
    %v2352 = vsub.f32 %v2320, %v2338
    %v2353 = vsub.f32 %v2321, %v2341
    %v2354 = vsub.f32 %v2322, %v2344
    %v2355 = vsub.f32 %v2323, %v2347
    %v2356 = vmul.f32 %v2348, 1.442695
    %v2357 = vpow.pop %v2356
    %v2358 = vmul.f32 %v2349, 1.442695
    %v2359 = vpow.pop %v2358
    %v2360 = vmul.f32 %v2350, 1.442695
    %v2361 = vpow.pop %v2360
    %v2362 = vmul.f32 %v2351, 1.442695
    %v2363 = vpow.pop %v2362
    %v2364 = vmul.f32 %v2352, 1.442695
    %v2365 = vpow.pop %v2364
    %v2366 = vmul.f32 %v2353, 1.442695
    %v2367 = vpow.pop %v2366
    %v2368 = vmul.f32 %v2354, 1.442695
    %v2369 = vpow.pop %v2368
    %v2370 = vmul.f32 %v2355, 1.442695
    %v2371 = vpow.pop %v2370
    %v2372 = vsel %vm1700, %v2357, 0.0
    %2373 = vadd.xlane.f32.xlu0 %v2372
    %v2374 = vpop.xlane.xlu0 %2373
    %v2375 = vsel %vm1700, %v2359, 0.0
    %2376 = vadd.xlane.f32.xlu0 %v2375
    %v2377 = vpop.xlane.xlu0 %2376
    %v2378 = vsel %vm1700, %v2361, 0.0
    %2379 = vadd.xlane.f32.xlu0 %v2378
    %v2380 = vpop.xlane.xlu0 %2379
    %v2381 = vsel %vm1700, %v2363, 0.0
    %2382 = vadd.xlane.f32.xlu0 %v2381
    %v2383 = vpop.xlane.xlu0 %2382
    %v2384 = vsel %vm1700, %v2365, 0.0
    %2385 = vadd.xlane.f32.xlu0 %v2384
    %v2386 = vpop.xlane.xlu0 %2385
    %v2387 = vsel %vm1700, %v2367, 0.0
    %2388 = vadd.xlane.f32.xlu0 %v2387
    %v2389 = vpop.xlane.xlu0 %2388
    %v2390 = vsel %vm1700, %v2369, 0.0
    %2391 = vadd.xlane.f32.xlu0 %v2390
    %v2392 = vpop.xlane.xlu0 %2391
    %v2393 = vsel %vm1700, %v2371, 0.0
    %2394 = vadd.xlane.f32.xlu0 %v2393
    %v2395 = vpop.xlane.xlu0 %2394
    %v2396 = vrcp.pop %v2374
    %v2397 = vrcp.pop %v2377
    %v2398 = vrcp.pop %v2380
    %v2399 = vrcp.pop %v2383
    %v2400 = vrcp.pop %v2386
    %v2401 = vrcp.pop %v2389
    %v2402 = vrcp.pop %v2392
    %v2403 = vrcp.pop %v2395
    %v2404 = vmul.f32 %v2357, %v2396
    %v2405 = vmul.f32 %v2359, %v2397
    %v2406 = vmul.f32 %v2361, %v2398
    %v2407 = vmul.f32 %v2363, %v2399
    %v2408 = vmul.f32 %v2365, %v2400
    %v2409 = vmul.f32 %v2367, %v2401
    %v2410 = vmul.f32 %v2369, %v2402
    %v2411 = vmul.f32 %v2371, %v2403
    %v2413 = vsel %vm1700, %v2404, 0
    %2415 = vmatprep.subr.mxu0 0.0
    %2416 = vmatpush1.msra.mxu0 %v1419
    %2417 = vmatprep.subr.mxu0 0.0
    %2418 = vmatpush1.msra.mxu0 0.0
    %2419 = vmatprep.subr.mxu0 0.0
    %2420 = vmatpush1.msra.mxu0 0.0
    %2421 = vmatprep.subr.mxu0 0.0
    %2422 = vmatpush1.msra.mxu0 0.0
    %2423 = vmatprep.subr.mxu0 0.0
    %2424 = vmatpush1.msra.mxu0 0.0
    %2425 = vmatprep.subr.mxu0 0.0
    %2426 = vmatpush1.msra.mxu0 0.0
    %2427 = vmatprep.subr.mxu0 0.0
    %2428 = vmatpush1.msra.mxu0 0.0
    %2429 = vmatprep.subr.mxu0 0.0
    %2430 = vmatpush1.msra.mxu0 0.0
    %2431 = vmatprep.subr.mxu0 0.0
    %2432 = vmatpush1.msra.mxu0 0.0
    %2433 = vmatprep.subr.mxu0 0.0
    %2434 = vmatpush1.msra.mxu0 0.0
    %2435 = vmatprep.subr.mxu0 0.0
    %2436 = vmatpush1.msra.mxu0 0.0
    %2437 = vmatprep.subr.mxu0 0.0
    %2438 = vmatpush1.msra.mxu0 0.0
    %2439 = vmatprep.subr.mxu0 0.0
    %2440 = vmatpush1.msra.mxu0 0.0
    %2441 = vmatprep.subr.mxu0 0.0
    %2442 = vmatpush1.msra.mxu0 0.0
    %2443 = vmatprep.subr.mxu0 0.0
    %2444 = vmatpush1.msra.mxu0 0.0
    %2445 = vmatprep.subr.mxu0 0.0
    %2446 = vmatpush1.msra.mxu0 0.0
    %2447 = vmatprep.subr.mxu0 0.0
    %2448 = vmatpush1.msra.mxu0 0.0
    %2449 = vmatprep.subr.mxu0 0.0
    %2450 = vmatpush1.msra.mxu0 0.0
    %2451 = vmatprep.subr.mxu0 0.0
    %2452 = vmatpush1.msra.mxu0 0.0
    %2453 = vmatprep.subr.mxu0 0.0
    %2454 = vmatpush1.msra.mxu0 0.0
    %2455 = vmatprep.subr.mxu0 0.0
    %2456 = vmatpush1.msra.mxu0 0.0
    %2457 = vmatprep.subr.mxu0 0.0
    %2458 = vmatpush1.msra.mxu0 0.0
    %2459 = vmatprep.subr.mxu0 0.0
    %2460 = vmatpush1.msra.mxu0 0.0
    %2461 = vmatprep.subr.mxu0 0.0
    %2462 = vmatpush1.msra.mxu0 0.0
    %2463 = vmatprep.subr.mxu0 0.0
    %2464 = vmatpush1.msra.mxu0 0.0
    %2465 = vmatprep.subr.mxu0 0.0
    %2466 = vmatpush1.msra.mxu0 0.0
    %2467 = vmatprep.subr.mxu0 0.0
    %2468 = vmatpush1.msra.mxu0 0.0
    %2469 = vmatprep.subr.mxu0 0.0
    %2470 = vmatpush1.msra.mxu0 0.0
    %2471 = vmatprep.subr.mxu0 0.0
    %2472 = vmatpush1.msra.mxu0 0.0
    %2473 = vmatprep.subr.mxu0 0.0
    %2474 = vmatpush1.msra.mxu0 0.0
    %2475 = vmatprep.subr.mxu0 0.0
    %2476 = vmatpush1.msra.mxu0 0.0
    %2477 = vmatprep.subr.mxu0 0.0
    %2478 = vmatpush1.msra.mxu0 0.0
    %2479 = vmatprep.mubr.f32.mxu0 0.0
    %2480 = vmatmul.mubr.f32.gmra.mrb[0].mxu0 %v2413
    %v2481 = vpop.f32.mrb[0].mxu0
    %v2482 = vadd.f32 0.0, %v2481
    %v2483 = vpop.f32.mrb[0].mxu0
    %2484 = vdwg.mxu0
    %v2486 = vsel %vm1700, %v2405, 0
    %2488 = vmatprep.subr.mxu0 0.0
    %2489 = vmatpush1.msra.mxu0 %v1424
    %2490 = vmatprep.subr.mxu0 0.0
    %2491 = vmatpush1.msra.mxu0 0.0
    %2492 = vmatprep.subr.mxu0 0.0
    %2493 = vmatpush1.msra.mxu0 0.0
    %2494 = vmatprep.subr.mxu0 0.0
    %2495 = vmatpush1.msra.mxu0 0.0
    %2496 = vmatprep.subr.mxu0 0.0
    %2497 = vmatpush1.msra.mxu0 0.0
    %2498 = vmatprep.subr.mxu0 0.0
    %2499 = vmatpush1.msra.mxu0 0.0
    %2500 = vmatprep.subr.mxu0 0.0
    %2501 = vmatpush1.msra.mxu0 0.0
    %2502 = vmatprep.subr.mxu0 0.0
    %2503 = vmatpush1.msra.mxu0 0.0
    %2504 = vmatprep.subr.mxu0 0.0
    %2505 = vmatpush1.msra.mxu0 0.0
    %2506 = vmatprep.subr.mxu0 0.0
    %2507 = vmatpush1.msra.mxu0 0.0
    %2508 = vmatprep.subr.mxu0 0.0
    %2509 = vmatpush1.msra.mxu0 0.0
    %2510 = vmatprep.subr.mxu0 0.0
    %2511 = vmatpush1.msra.mxu0 0.0
    %2512 = vmatprep.subr.mxu0 0.0
    %2513 = vmatpush1.msra.mxu0 0.0
    %2514 = vmatprep.subr.mxu0 0.0
    %2515 = vmatpush1.msra.mxu0 0.0
    %2516 = vmatprep.subr.mxu0 0.0
    %2517 = vmatpush1.msra.mxu0 0.0
    %2518 = vmatprep.subr.mxu0 0.0
    %2519 = vmatpush1.msra.mxu0 0.0
    %2520 = vmatprep.subr.mxu0 0.0
    %2521 = vmatpush1.msra.mxu0 0.0
    %2522 = vmatprep.subr.mxu0 0.0
    %2523 = vmatpush1.msra.mxu0 0.0
    %2524 = vmatprep.subr.mxu0 0.0
    %2525 = vmatpush1.msra.mxu0 0.0
    %2526 = vmatprep.subr.mxu0 0.0
    %2527 = vmatpush1.msra.mxu0 0.0
    %2528 = vmatprep.subr.mxu0 0.0
    %2529 = vmatpush1.msra.mxu0 0.0
    %2530 = vmatprep.subr.mxu0 0.0
    %2531 = vmatpush1.msra.mxu0 0.0
    %2532 = vmatprep.subr.mxu0 0.0
    %2533 = vmatpush1.msra.mxu0 0.0
    %2534 = vmatprep.subr.mxu0 0.0
    %2535 = vmatpush1.msra.mxu0 0.0
    %2536 = vmatprep.subr.mxu0 0.0
    %2537 = vmatpush1.msra.mxu0 0.0
    %2538 = vmatprep.subr.mxu0 0.0
    %2539 = vmatpush1.msra.mxu0 0.0
    %2540 = vmatprep.subr.mxu0 0.0
    %2541 = vmatpush1.msra.mxu0 0.0
    %2542 = vmatprep.subr.mxu0 0.0
    %2543 = vmatpush1.msra.mxu0 0.0
    %2544 = vmatprep.subr.mxu0 0.0
    %2545 = vmatpush1.msra.mxu0 0.0
    %2546 = vmatprep.subr.mxu0 0.0
    %2547 = vmatpush1.msra.mxu0 0.0
    %2548 = vmatprep.subr.mxu0 0.0
    %2549 = vmatpush1.msra.mxu0 0.0
    %2550 = vmatprep.subr.mxu0 0.0
    %2551 = vmatpush1.msra.mxu0 0.0
    %2552 = vmatprep.mubr.f32.mxu0 0.0
    %2553 = vmatmul.mubr.f32.gmra.mrb[0].mxu0 %v2486
    %v2554 = vpop.f32.mrb[0].mxu0
    %v2555 = vadd.f32 0.0, %v2554
    %v2556 = vpop.f32.mrb[0].mxu0
    %2557 = vdwg.mxu0
    %v2559 = vsel %vm1700, %v2406, 0
    %2561 = vmatprep.subr.mxu0 0.0
    %2562 = vmatpush1.msra.mxu0 %v1494
    %2563 = vmatprep.subr.mxu0 0.0
    %2564 = vmatpush1.msra.mxu0 0.0
    %2565 = vmatprep.subr.mxu0 0.0
    %2566 = vmatpush1.msra.mxu0 0.0
    %2567 = vmatprep.subr.mxu0 0.0
    %2568 = vmatpush1.msra.mxu0 0.0
    %2569 = vmatprep.subr.mxu0 0.0
    %2570 = vmatpush1.msra.mxu0 0.0
    %2571 = vmatprep.subr.mxu0 0.0
    %2572 = vmatpush1.msra.mxu0 0.0
    %2573 = vmatprep.subr.mxu0 0.0
    %2574 = vmatpush1.msra.mxu0 0.0
    %2575 = vmatprep.subr.mxu0 0.0
    %2576 = vmatpush1.msra.mxu0 0.0
    %2577 = vmatprep.subr.mxu0 0.0
    %2578 = vmatpush1.msra.mxu0 0.0
    %2579 = vmatprep.subr.mxu0 0.0
    %2580 = vmatpush1.msra.mxu0 0.0
    %2581 = vmatprep.subr.mxu0 0.0
    %2582 = vmatpush1.msra.mxu0 0.0
    %2583 = vmatprep.subr.mxu0 0.0
    %2584 = vmatpush1.msra.mxu0 0.0
    %2585 = vmatprep.subr.mxu0 0.0
    %2586 = vmatpush1.msra.mxu0 0.0
    %2587 = vmatprep.subr.mxu0 0.0
    %2588 = vmatpush1.msra.mxu0 0.0
    %2589 = vmatprep.subr.mxu0 0.0
    %2590 = vmatpush1.msra.mxu0 0.0
    %2591 = vmatprep.subr.mxu0 0.0
    %2592 = vmatpush1.msra.mxu0 0.0
    %2593 = vmatprep.subr.mxu0 0.0
    %2594 = vmatpush1.msra.mxu0 0.0
    %2595 = vmatprep.subr.mxu0 0.0
    %2596 = vmatpush1.msra.mxu0 0.0
    %2597 = vmatprep.subr.mxu0 0.0
    %2598 = vmatpush1.msra.mxu0 0.0
    %2599 = vmatprep.subr.mxu0 0.0
    %2600 = vmatpush1.msra.mxu0 0.0
    %2601 = vmatprep.subr.mxu0 0.0
    %2602 = vmatpush1.msra.mxu0 0.0
    %2603 = vmatprep.subr.mxu0 0.0
    %2604 = vmatpush1.msra.mxu0 0.0
    %2605 = vmatprep.subr.mxu0 0.0
    %2606 = vmatpush1.msra.mxu0 0.0
    %2607 = vmatprep.subr.mxu0 0.0
    %2608 = vmatpush1.msra.mxu0 0.0
    %2609 = vmatprep.subr.mxu0 0.0
    %2610 = vmatpush1.msra.mxu0 0.0
    %2611 = vmatprep.subr.mxu0 0.0
    %2612 = vmatpush1.msra.mxu0 0.0
    %2613 = vmatprep.subr.mxu0 0.0
    %2614 = vmatpush1.msra.mxu0 0.0
    %2615 = vmatprep.subr.mxu0 0.0
    %2616 = vmatpush1.msra.mxu0 0.0
    %2617 = vmatprep.subr.mxu0 0.0
    %2618 = vmatpush1.msra.mxu0 0.0
    %2619 = vmatprep.subr.mxu0 0.0
    %2620 = vmatpush1.msra.mxu0 0.0
    %2621 = vmatprep.subr.mxu0 0.0
    %2622 = vmatpush1.msra.mxu0 0.0
    %2623 = vmatprep.subr.mxu0 0.0
    %2624 = vmatpush1.msra.mxu0 0.0
    %2625 = vmatprep.mubr.f32.mxu0 0.0
    %2626 = vmatmul.mubr.f32.gmra.mrb[0].mxu0 %v2559
    %v2627 = vpop.f32.mrb[0].mxu0
    %v2628 = vadd.f32 0.0, %v2627
    %v2629 = vpop.f32.mrb[0].mxu0
    %2630 = vdwg.mxu0
    %v2632 = vsel %vm1700, %v2407, 0
    %2634 = vmatprep.subr.mxu0 0.0
    %2635 = vmatpush1.msra.mxu0 %v1499
    %2636 = vmatprep.subr.mxu0 0.0
    %2637 = vmatpush1.msra.mxu0 0.0
    %2638 = vmatprep.subr.mxu0 0.0
    %2639 = vmatpush1.msra.mxu0 0.0
    %2640 = vmatprep.subr.mxu0 0.0
    %2641 = vmatpush1.msra.mxu0 0.0
    %2642 = vmatprep.subr.mxu0 0.0
    %2643 = vmatpush1.msra.mxu0 0.0
    %2644 = vmatprep.subr.mxu0 0.0
    %2645 = vmatpush1.msra.mxu0 0.0
    %2646 = vmatprep.subr.mxu0 0.0
    %2647 = vmatpush1.msra.mxu0 0.0
    %2648 = vmatprep.subr.mxu0 0.0
    %2649 = vmatpush1.msra.mxu0 0.0
    %2650 = vmatprep.subr.mxu0 0.0
    %2651 = vmatpush1.msra.mxu0 0.0
    %2652 = vmatprep.subr.mxu0 0.0
    %2653 = vmatpush1.msra.mxu0 0.0
    %2654 = vmatprep.subr.mxu0 0.0
    %2655 = vmatpush1.msra.mxu0 0.0
    %2656 = vmatprep.subr.mxu0 0.0
    %2657 = vmatpush1.msra.mxu0 0.0
    %2658 = vmatprep.subr.mxu0 0.0
    %2659 = vmatpush1.msra.mxu0 0.0
    %2660 = vmatprep.subr.mxu0 0.0
    %2661 = vmatpush1.msra.mxu0 0.0
    %2662 = vmatprep.subr.mxu0 0.0
    %2663 = vmatpush1.msra.mxu0 0.0
    %2664 = vmatprep.subr.mxu0 0.0
    %2665 = vmatpush1.msra.mxu0 0.0
    %2666 = vmatprep.subr.mxu0 0.0
    %2667 = vmatpush1.msra.mxu0 0.0
    %2668 = vmatprep.subr.mxu0 0.0
    %2669 = vmatpush1.msra.mxu0 0.0
    %2670 = vmatprep.subr.mxu0 0.0
    %2671 = vmatpush1.msra.mxu0 0.0
    %2672 = vmatprep.subr.mxu0 0.0
    %2673 = vmatpush1.msra.mxu0 0.0
    %2674 = vmatprep.subr.mxu0 0.0
    %2675 = vmatpush1.msra.mxu0 0.0
    %2676 = vmatprep.subr.mxu0 0.0
    %2677 = vmatpush1.msra.mxu0 0.0
    %2678 = vmatprep.subr.mxu0 0.0
    %2679 = vmatpush1.msra.mxu0 0.0
    %2680 = vmatprep.subr.mxu0 0.0
    %2681 = vmatpush1.msra.mxu0 0.0
    %2682 = vmatprep.subr.mxu0 0.0
    %2683 = vmatpush1.msra.mxu0 0.0
    %2684 = vmatprep.subr.mxu0 0.0
    %2685 = vmatpush1.msra.mxu0 0.0
    %2686 = vmatprep.subr.mxu0 0.0
    %2687 = vmatpush1.msra.mxu0 0.0
    %2688 = vmatprep.subr.mxu0 0.0
    %2689 = vmatpush1.msra.mxu0 0.0
    %2690 = vmatprep.subr.mxu0 0.0
    %2691 = vmatpush1.msra.mxu0 0.0
    %2692 = vmatprep.subr.mxu0 0.0
    %2693 = vmatpush1.msra.mxu0 0.0
    %2694 = vmatprep.subr.mxu0 0.0
    %2695 = vmatpush1.msra.mxu0 0.0
    %2696 = vmatprep.subr.mxu0 0.0
    %2697 = vmatpush1.msra.mxu0 0.0
    %2698 = vmatprep.mubr.f32.mxu0 0.0
    %2699 = vmatmul.mubr.f32.gmra.mrb[0].mxu0 %v2632
    %v2700 = vpop.f32.mrb[0].mxu0
    %v2701 = vadd.f32 0.0, %v2700
    %v2702 = vpop.f32.mrb[0].mxu0
    %2703 = vdwg.mxu0
    %v2705 = vsel %vm1700, %v2408, 0
    %2707 = vmatprep.subr.mxu0 0.0
    %2708 = vmatpush1.msra.mxu0 %v1569
    %2709 = vmatprep.subr.mxu0 0.0
    %2710 = vmatpush1.msra.mxu0 0.0
    %2711 = vmatprep.subr.mxu0 0.0
    %2712 = vmatpush1.msra.mxu0 0.0
    %2713 = vmatprep.subr.mxu0 0.0
    %2714 = vmatpush1.msra.mxu0 0.0
    %2715 = vmatprep.subr.mxu0 0.0
    %2716 = vmatpush1.msra.mxu0 0.0
    %2717 = vmatprep.subr.mxu0 0.0
    %2718 = vmatpush1.msra.mxu0 0.0
    %2719 = vmatprep.subr.mxu0 0.0
    %2720 = vmatpush1.msra.mxu0 0.0
    %2721 = vmatprep.subr.mxu0 0.0
    %2722 = vmatpush1.msra.mxu0 0.0
    %2723 = vmatprep.subr.mxu0 0.0
    %2724 = vmatpush1.msra.mxu0 0.0
    %2725 = vmatprep.subr.mxu0 0.0
    %2726 = vmatpush1.msra.mxu0 0.0
    %2727 = vmatprep.subr.mxu0 0.0
    %2728 = vmatpush1.msra.mxu0 0.0
    %2729 = vmatprep.subr.mxu0 0.0
    %2730 = vmatpush1.msra.mxu0 0.0
    %2731 = vmatprep.subr.mxu0 0.0
    %2732 = vmatpush1.msra.mxu0 0.0
    %2733 = vmatprep.subr.mxu0 0.0
    %2734 = vmatpush1.msra.mxu0 0.0
    %2735 = vmatprep.subr.mxu0 0.0
    %2736 = vmatpush1.msra.mxu0 0.0
    %2737 = vmatprep.subr.mxu0 0.0
    %2738 = vmatpush1.msra.mxu0 0.0
    %2739 = vmatprep.subr.mxu0 0.0
    %2740 = vmatpush1.msra.mxu0 0.0
    %2741 = vmatprep.subr.mxu0 0.0
    %2742 = vmatpush1.msra.mxu0 0.0
    %2743 = vmatprep.subr.mxu0 0.0
    %2744 = vmatpush1.msra.mxu0 0.0
    %2745 = vmatprep.subr.mxu0 0.0
    %2746 = vmatpush1.msra.mxu0 0.0
    %2747 = vmatprep.subr.mxu0 0.0
    %2748 = vmatpush1.msra.mxu0 0.0
    %2749 = vmatprep.subr.mxu0 0.0
    %2750 = vmatpush1.msra.mxu0 0.0
    %2751 = vmatprep.subr.mxu0 0.0
    %2752 = vmatpush1.msra.mxu0 0.0
    %2753 = vmatprep.subr.mxu0 0.0
    %2754 = vmatpush1.msra.mxu0 0.0
    %2755 = vmatprep.subr.mxu0 0.0
    %2756 = vmatpush1.msra.mxu0 0.0
    %2757 = vmatprep.subr.mxu0 0.0
    %2758 = vmatpush1.msra.mxu0 0.0
    %2759 = vmatprep.subr.mxu0 0.0
    %2760 = vmatpush1.msra.mxu0 0.0
    %2761 = vmatprep.subr.mxu0 0.0
    %2762 = vmatpush1.msra.mxu0 0.0
    %2763 = vmatprep.subr.mxu0 0.0
    %2764 = vmatpush1.msra.mxu0 0.0
    %2765 = vmatprep.subr.mxu0 0.0
    %2766 = vmatpush1.msra.mxu0 0.0
    %2767 = vmatprep.subr.mxu0 0.0
    %2768 = vmatpush1.msra.mxu0 0.0
    %2769 = vmatprep.subr.mxu0 0.0
    %2770 = vmatpush1.msra.mxu0 0.0
    %2771 = vmatprep.mubr.f32.mxu0 0.0
    %2772 = vmatmul.mubr.f32.gmra.mrb[0].mxu0 %v2705
    %v2773 = vpop.f32.mrb[0].mxu0
    %v2774 = vadd.f32 0.0, %v2773
    %v2775 = vpop.f32.mrb[0].mxu0
    %2776 = vdwg.mxu0
    %v2778 = vsel %vm1700, %v2409, 0
    %2780 = vmatprep.subr.mxu0 0.0
    %2781 = vmatpush1.msra.mxu0 %v1574
    %2782 = vmatprep.subr.mxu0 0.0
    %2783 = vmatpush1.msra.mxu0 0.0
    %2784 = vmatprep.subr.mxu0 0.0
    %2785 = vmatpush1.msra.mxu0 0.0
    %2786 = vmatprep.subr.mxu0 0.0
    %2787 = vmatpush1.msra.mxu0 0.0
    %2788 = vmatprep.subr.mxu0 0.0
    %2789 = vmatpush1.msra.mxu0 0.0
    %2790 = vmatprep.subr.mxu0 0.0
    %2791 = vmatpush1.msra.mxu0 0.0
    %2792 = vmatprep.subr.mxu0 0.0
    %2793 = vmatpush1.msra.mxu0 0.0
    %2794 = vmatprep.subr.mxu0 0.0
    %2795 = vmatpush1.msra.mxu0 0.0
    %2796 = vmatprep.subr.mxu0 0.0
    %2797 = vmatpush1.msra.mxu0 0.0
    %2798 = vmatprep.subr.mxu0 0.0
    %2799 = vmatpush1.msra.mxu0 0.0
    %2800 = vmatprep.subr.mxu0 0.0
    %2801 = vmatpush1.msra.mxu0 0.0
    %2802 = vmatprep.subr.mxu0 0.0
    %2803 = vmatpush1.msra.mxu0 0.0
    %2804 = vmatprep.subr.mxu0 0.0
    %2805 = vmatpush1.msra.mxu0 0.0
    %2806 = vmatprep.subr.mxu0 0.0
    %2807 = vmatpush1.msra.mxu0 0.0
    %2808 = vmatprep.subr.mxu0 0.0
    %2809 = vmatpush1.msra.mxu0 0.0
    %2810 = vmatprep.subr.mxu0 0.0
    %2811 = vmatpush1.msra.mxu0 0.0
    %2812 = vmatprep.subr.mxu0 0.0
    %2813 = vmatpush1.msra.mxu0 0.0
    %2814 = vmatprep.subr.mxu0 0.0
    %2815 = vmatpush1.msra.mxu0 0.0
    %2816 = vmatprep.subr.mxu0 0.0
    %2817 = vmatpush1.msra.mxu0 0.0
    %2818 = vmatprep.subr.mxu0 0.0
    %2819 = vmatpush1.msra.mxu0 0.0
    %2820 = vmatprep.subr.mxu0 0.0
    %2821 = vmatpush1.msra.mxu0 0.0
    %2822 = vmatprep.subr.mxu0 0.0
    %2823 = vmatpush1.msra.mxu0 0.0
    %2824 = vmatprep.subr.mxu0 0.0
    %2825 = vmatpush1.msra.mxu0 0.0
    %2826 = vmatprep.subr.mxu0 0.0
    %2827 = vmatpush1.msra.mxu0 0.0
    %2828 = vmatprep.subr.mxu0 0.0
    %2829 = vmatpush1.msra.mxu0 0.0
    %2830 = vmatprep.subr.mxu0 0.0
    %2831 = vmatpush1.msra.mxu0 0.0
    %2832 = vmatprep.subr.mxu0 0.0
    %2833 = vmatpush1.msra.mxu0 0.0
    %2834 = vmatprep.subr.mxu0 0.0
    %2835 = vmatpush1.msra.mxu0 0.0
    %2836 = vmatprep.subr.mxu0 0.0
    %2837 = vmatpush1.msra.mxu0 0.0
    %2838 = vmatprep.subr.mxu0 0.0
    %2839 = vmatpush1.msra.mxu0 0.0
    %2840 = vmatprep.subr.mxu0 0.0
    %2841 = vmatpush1.msra.mxu0 0.0
    %2842 = vmatprep.subr.mxu0 0.0
    %2843 = vmatpush1.msra.mxu0 0.0
    %2844 = vmatprep.mubr.f32.mxu0 0.0
    %2845 = vmatmul.mubr.f32.gmra.mrb[0].mxu0 %v2778
    %v2846 = vpop.f32.mrb[0].mxu0
    %v2847 = vadd.f32 0.0, %v2846
    %v2848 = vpop.f32.mrb[0].mxu0
    %2849 = vdwg.mxu0
    %v2851 = vsel %vm1700, %v2410, 0
    %2853 = vmatprep.subr.mxu0 0.0
    %2854 = vmatpush1.msra.mxu0 %v1644
    %2855 = vmatprep.subr.mxu0 0.0
    %2856 = vmatpush1.msra.mxu0 0.0
    %2857 = vmatprep.subr.mxu0 0.0
    %2858 = vmatpush1.msra.mxu0 0.0
    %2859 = vmatprep.subr.mxu0 0.0
    %2860 = vmatpush1.msra.mxu0 0.0
    %2861 = vmatprep.subr.mxu0 0.0
    %2862 = vmatpush1.msra.mxu0 0.0
    %2863 = vmatprep.subr.mxu0 0.0
    %2864 = vmatpush1.msra.mxu0 0.0
    %2865 = vmatprep.subr.mxu0 0.0
    %2866 = vmatpush1.msra.mxu0 0.0
    %2867 = vmatprep.subr.mxu0 0.0
    %2868 = vmatpush1.msra.mxu0 0.0
    %2869 = vmatprep.subr.mxu0 0.0
    %2870 = vmatpush1.msra.mxu0 0.0
    %2871 = vmatprep.subr.mxu0 0.0
    %2872 = vmatpush1.msra.mxu0 0.0
    %2873 = vmatprep.subr.mxu0 0.0
    %2874 = vmatpush1.msra.mxu0 0.0
    %2875 = vmatprep.subr.mxu0 0.0
    %2876 = vmatpush1.msra.mxu0 0.0
    %2877 = vmatprep.subr.mxu0 0.0
    %2878 = vmatpush1.msra.mxu0 0.0
    %2879 = vmatprep.subr.mxu0 0.0
    %2880 = vmatpush1.msra.mxu0 0.0
    %2881 = vmatprep.subr.mxu0 0.0
    %2882 = vmatpush1.msra.mxu0 0.0
    %2883 = vmatprep.subr.mxu0 0.0
    %2884 = vmatpush1.msra.mxu0 0.0
    %2885 = vmatprep.subr.mxu0 0.0
    %2886 = vmatpush1.msra.mxu0 0.0
    %2887 = vmatprep.subr.mxu0 0.0
    %2888 = vmatpush1.msra.mxu0 0.0
    %2889 = vmatprep.subr.mxu0 0.0
    %2890 = vmatpush1.msra.mxu0 0.0
    %2891 = vmatprep.subr.mxu0 0.0
    %2892 = vmatpush1.msra.mxu0 0.0
    %2893 = vmatprep.subr.mxu0 0.0
    %2894 = vmatpush1.msra.mxu0 0.0
    %2895 = vmatprep.subr.mxu0 0.0
    %2896 = vmatpush1.msra.mxu0 0.0
    %2897 = vmatprep.subr.mxu0 0.0
    %2898 = vmatpush1.msra.mxu0 0.0
    %2899 = vmatprep.subr.mxu0 0.0
    %2900 = vmatpush1.msra.mxu0 0.0
    %2901 = vmatprep.subr.mxu0 0.0
    %2902 = vmatpush1.msra.mxu0 0.0
    %2903 = vmatprep.subr.mxu0 0.0
    %2904 = vmatpush1.msra.mxu0 0.0
    %2905 = vmatprep.subr.mxu0 0.0
    %2906 = vmatpush1.msra.mxu0 0.0
    %2907 = vmatprep.subr.mxu0 0.0
    %2908 = vmatpush1.msra.mxu0 0.0
    %2909 = vmatprep.subr.mxu0 0.0
    %2910 = vmatpush1.msra.mxu0 0.0
    %2911 = vmatprep.subr.mxu0 0.0
    %2912 = vmatpush1.msra.mxu0 0.0
    %2913 = vmatprep.subr.mxu0 0.0
    %2914 = vmatpush1.msra.mxu0 0.0
    %2915 = vmatprep.subr.mxu0 0.0
    %2916 = vmatpush1.msra.mxu0 0.0
    %2917 = vmatprep.mubr.f32.mxu0 0.0
    %2918 = vmatmul.mubr.f32.gmra.mrb[0].mxu0 %v2851
    %v2919 = vpop.f32.mrb[0].mxu0
    %v2920 = vadd.f32 0.0, %v2919
    %v2921 = vpop.f32.mrb[0].mxu0
    %2922 = vdwg.mxu0
    %v2924 = vsel %vm1700, %v2411, 0
    %2926 = vmatprep.subr.mxu0 0.0
    %2927 = vmatpush1.msra.mxu0 %v1649
    %2928 = vmatprep.subr.mxu0 0.0
    %2929 = vmatpush1.msra.mxu0 0.0
    %2930 = vmatprep.subr.mxu0 0.0
    %2931 = vmatpush1.msra.mxu0 0.0
    %2932 = vmatprep.subr.mxu0 0.0
    %2933 = vmatpush1.msra.mxu0 0.0
    %2934 = vmatprep.subr.mxu0 0.0
    %2935 = vmatpush1.msra.mxu0 0.0
    %2936 = vmatprep.subr.mxu0 0.0
    %2937 = vmatpush1.msra.mxu0 0.0
    %2938 = vmatprep.subr.mxu0 0.0
    %2939 = vmatpush1.msra.mxu0 0.0
    %2940 = vmatprep.subr.mxu0 0.0
    %2941 = vmatpush1.msra.mxu0 0.0
    %2942 = vmatprep.subr.mxu0 0.0
    %2943 = vmatpush1.msra.mxu0 0.0
    %2944 = vmatprep.subr.mxu0 0.0
    %2945 = vmatpush1.msra.mxu0 0.0
    %2946 = vmatprep.subr.mxu0 0.0
    %2947 = vmatpush1.msra.mxu0 0.0
    %2948 = vmatprep.subr.mxu0 0.0
    %2949 = vmatpush1.msra.mxu0 0.0
    %2950 = vmatprep.subr.mxu0 0.0
    %2951 = vmatpush1.msra.mxu0 0.0
    %2952 = vmatprep.subr.mxu0 0.0
    %2953 = vmatpush1.msra.mxu0 0.0
    %2954 = vmatprep.subr.mxu0 0.0
    %2955 = vmatpush1.msra.mxu0 0.0
    %2956 = vmatprep.subr.mxu0 0.0
    %2957 = vmatpush1.msra.mxu0 0.0
    %2958 = vmatprep.subr.mxu0 0.0
    %2959 = vmatpush1.msra.mxu0 0.0
    %2960 = vmatprep.subr.mxu0 0.0
    %2961 = vmatpush1.msra.mxu0 0.0
    %2962 = vmatprep.subr.mxu0 0.0
    %2963 = vmatpush1.msra.mxu0 0.0
    %2964 = vmatprep.subr.mxu0 0.0
    %2965 = vmatpush1.msra.mxu0 0.0
    %2966 = vmatprep.subr.mxu0 0.0
    %2967 = vmatpush1.msra.mxu0 0.0
    %2968 = vmatprep.subr.mxu0 0.0
    %2969 = vmatpush1.msra.mxu0 0.0
    %2970 = vmatprep.subr.mxu0 0.0
    %2971 = vmatpush1.msra.mxu0 0.0
    %2972 = vmatprep.subr.mxu0 0.0
    %2973 = vmatpush1.msra.mxu0 0.0
    %2974 = vmatprep.subr.mxu0 0.0
    %2975 = vmatpush1.msra.mxu0 0.0
    %2976 = vmatprep.subr.mxu0 0.0
    %2977 = vmatpush1.msra.mxu0 0.0
    %2978 = vmatprep.subr.mxu0 0.0
    %2979 = vmatpush1.msra.mxu0 0.0
    %2980 = vmatprep.subr.mxu0 0.0
    %2981 = vmatpush1.msra.mxu0 0.0
    %2982 = vmatprep.subr.mxu0 0.0
    %2983 = vmatpush1.msra.mxu0 0.0
    %2984 = vmatprep.subr.mxu0 0.0
    %2985 = vmatpush1.msra.mxu0 0.0
    %2986 = vmatprep.subr.mxu0 0.0
    %2987 = vmatpush1.msra.mxu0 0.0
    %2988 = vmatprep.subr.mxu0 0.0
    %2989 = vmatpush1.msra.mxu0 0.0
    %2990 = vmatprep.mubr.f32.mxu0 0.0
    %2991 = vmatmul.mubr.f32.gmra.mrb[0].mxu0 %v2924
    %v2992 = vpop.f32.mrb[0].mxu0
    %v2993 = vadd.f32 0.0, %v2992
    %v2994 = vpop.f32.mrb[0].mxu0
    %2995 = vdwg.mxu0
    %v2996 = vld [vmem:[%s6] sm:$0xff]
    %v2997 = vld [vmem:[%s6 + $0x8] sm:$0xff]
    %v2998 = vld [vmem:[%s6 + $0x10] sm:$0xff]
    %v2999 = vld [vmem:[%s6 + $0x18] sm:$0xff]
    %v3001 = vsel %vm1700, %v2482, 0
    %v3004 = vsel %vm1700, %v2555, 0
    %3006 = vmatprep.subr.mxu0 0.0
    %3007 = vmatpush1.msra.mxu0 %v2996
    %3008 = vmatprep.subr.mxu0 0.0
    %3009 = vmatpush1.msra.mxu0 0.0
    %3010 = vmatprep.subr.mxu0 0.0
    %3011 = vmatpush1.msra.mxu0 0.0
    %3012 = vmatprep.subr.mxu0 0.0
    %3013 = vmatpush1.msra.mxu0 0.0
    %3014 = vmatprep.subr.mxu0 0.0
    %3015 = vmatpush1.msra.mxu0 0.0
    %3016 = vmatprep.subr.mxu0 0.0
    %3017 = vmatpush1.msra.mxu0 0.0
    %3018 = vmatprep.subr.mxu0 0.0
    %3019 = vmatpush1.msra.mxu0 0.0
    %3020 = vmatprep.subr.mxu0 0.0
    %3021 = vmatpush1.msra.mxu0 0.0
    %3022 = vmatprep.subr.mxu0 0.0
    %3023 = vmatpush1.msra.mxu0 0.0
    %3024 = vmatprep.subr.mxu0 0.0
    %3025 = vmatpush1.msra.mxu0 0.0
    %3026 = vmatprep.subr.mxu0 0.0
    %3027 = vmatpush1.msra.mxu0 0.0
    %3028 = vmatprep.subr.mxu0 0.0
    %3029 = vmatpush1.msra.mxu0 0.0
    %3030 = vmatprep.subr.mxu0 0.0
    %3031 = vmatpush1.msra.mxu0 0.0
    %3032 = vmatprep.subr.mxu0 0.0
    %3033 = vmatpush1.msra.mxu0 0.0
    %3034 = vmatprep.subr.mxu0 0.0
    %3035 = vmatpush1.msra.mxu0 0.0
    %3036 = vmatprep.subr.mxu0 0.0
    %3037 = vmatpush1.msra.mxu0 0.0
    %3038 = vmatprep.subr.mxu0 0.0
    %3039 = vmatpush1.msra.mxu0 0.0
    %3040 = vmatprep.subr.mxu0 0.0
    %3041 = vmatpush1.msra.mxu0 0.0
    %3042 = vmatprep.subr.mxu0 0.0
    %3043 = vmatpush1.msra.mxu0 0.0
    %3044 = vmatprep.subr.mxu0 0.0
    %3045 = vmatpush1.msra.mxu0 0.0
    %3046 = vmatprep.subr.mxu0 0.0
    %3047 = vmatpush1.msra.mxu0 0.0
    %3048 = vmatprep.subr.mxu0 0.0
    %3049 = vmatpush1.msra.mxu0 0.0
    %3050 = vmatprep.subr.mxu0 0.0
    %3051 = vmatpush1.msra.mxu0 0.0
    %3052 = vmatprep.subr.mxu0 0.0
    %3053 = vmatpush1.msra.mxu0 0.0
    %3054 = vmatprep.subr.mxu0 0.0
    %3055 = vmatpush1.msra.mxu0 0.0
    %3056 = vmatprep.subr.mxu0 0.0
    %3057 = vmatpush1.msra.mxu0 0.0
    %3058 = vmatprep.subr.mxu0 0.0
    %3059 = vmatpush1.msra.mxu0 0.0
    %3060 = vmatprep.subr.mxu0 0.0
    %3061 = vmatpush1.msra.mxu0 0.0
    %3062 = vmatprep.subr.mxu0 0.0
    %3063 = vmatpush1.msra.mxu0 0.0
    %3064 = vmatprep.subr.mxu0 0.0
    %3065 = vmatpush1.msra.mxu0 0.0
    %3066 = vmatprep.subr.mxu0 0.0
    %3067 = vmatpush1.msra.mxu0 0.0
    %3068 = vmatprep.subr.mxu0 0.0
    %3069 = vmatpush1.msra.mxu0 0.0
    %3070 = vmatprep.mubr.f32.mxu0 0.0
    %3071 = vmatmul.mubr.f32.gmra.mrb[0].mxu0 %v3001
    %v3072 = vpop.f32.mrb[0].mxu0
    %v3073 = vadd.f32 0.0, %v3072
    %v3074 = vpop.f32.mrb[0].mxu0
    %3075 = vmatprep.mubr.f32.mxu0 0.0
    %3076 = vmatmul.mubr.f32.gmra.mrb[0].mxu0 %v3004
    %v3077 = vpop.f32.mrb[0].mxu0
    %v3078 = vadd.f32 0.0, %v3077
    %v3079 = vpop.f32.mrb[0].mxu0
    %3080 = vdwg.mxu0
    %v3082 = vsel %vm1700, %v2628, 0
    %v3085 = vsel %vm1700, %v2701, 0
    %3087 = vmatprep.subr.mxu0 0.0
    %3088 = vmatpush1.msra.mxu0 %v2997
    %3089 = vmatprep.subr.mxu0 0.0
    %3090 = vmatpush1.msra.mxu0 0.0
    %3091 = vmatprep.subr.mxu0 0.0
    %3092 = vmatpush1.msra.mxu0 0.0
    %3093 = vmatprep.subr.mxu0 0.0
    %3094 = vmatpush1.msra.mxu0 0.0
    %3095 = vmatprep.subr.mxu0 0.0
    %3096 = vmatpush1.msra.mxu0 0.0
    %3097 = vmatprep.subr.mxu0 0.0
    %3098 = vmatpush1.msra.mxu0 0.0
    %3099 = vmatprep.subr.mxu0 0.0
    %3100 = vmatpush1.msra.mxu0 0.0
    %3101 = vmatprep.subr.mxu0 0.0
    %3102 = vmatpush1.msra.mxu0 0.0
    %3103 = vmatprep.subr.mxu0 0.0
    %3104 = vmatpush1.msra.mxu0 0.0
    %3105 = vmatprep.subr.mxu0 0.0
    %3106 = vmatpush1.msra.mxu0 0.0
    %3107 = vmatprep.subr.mxu0 0.0
    %3108 = vmatpush1.msra.mxu0 0.0
    %3109 = vmatprep.subr.mxu0 0.0
    %3110 = vmatpush1.msra.mxu0 0.0
    %3111 = vmatprep.subr.mxu0 0.0
    %3112 = vmatpush1.msra.mxu0 0.0
    %3113 = vmatprep.subr.mxu0 0.0
    %3114 = vmatpush1.msra.mxu0 0.0
    %3115 = vmatprep.subr.mxu0 0.0
    %3116 = vmatpush1.msra.mxu0 0.0
    %3117 = vmatprep.subr.mxu0 0.0
    %3118 = vmatpush1.msra.mxu0 0.0
    %3119 = vmatprep.subr.mxu0 0.0
    %3120 = vmatpush1.msra.mxu0 0.0
    %3121 = vmatprep.subr.mxu0 0.0
    %3122 = vmatpush1.msra.mxu0 0.0
    %3123 = vmatprep.subr.mxu0 0.0
    %3124 = vmatpush1.msra.mxu0 0.0
    %3125 = vmatprep.subr.mxu0 0.0
    %3126 = vmatpush1.msra.mxu0 0.0
    %3127 = vmatprep.subr.mxu0 0.0
    %3128 = vmatpush1.msra.mxu0 0.0
    %3129 = vmatprep.subr.mxu0 0.0
    %3130 = vmatpush1.msra.mxu0 0.0
    %3131 = vmatprep.subr.mxu0 0.0
    %3132 = vmatpush1.msra.mxu0 0.0
    %3133 = vmatprep.subr.mxu0 0.0
    %3134 = vmatpush1.msra.mxu0 0.0
    %3135 = vmatprep.subr.mxu0 0.0
    %3136 = vmatpush1.msra.mxu0 0.0
    %3137 = vmatprep.subr.mxu0 0.0
    %3138 = vmatpush1.msra.mxu0 0.0
    %3139 = vmatprep.subr.mxu0 0.0
    %3140 = vmatpush1.msra.mxu0 0.0
    %3141 = vmatprep.subr.mxu0 0.0
    %3142 = vmatpush1.msra.mxu0 0.0
    %3143 = vmatprep.subr.mxu0 0.0
    %3144 = vmatpush1.msra.mxu0 0.0
    %3145 = vmatprep.subr.mxu0 0.0
    %3146 = vmatpush1.msra.mxu0 0.0
    %3147 = vmatprep.subr.mxu0 0.0
    %3148 = vmatpush1.msra.mxu0 0.0
    %3149 = vmatprep.subr.mxu0 0.0
    %3150 = vmatpush1.msra.mxu0 0.0
    %3151 = vmatprep.mubr.f32.mxu0 0.0
    %3152 = vmatmul.mubr.f32.gmra.mrb[0].mxu0 %v3082
    %v3153 = vpop.f32.mrb[0].mxu0
    %v3154 = vadd.f32 0.0, %v3153
    %v3155 = vpop.f32.mrb[0].mxu0
    %3156 = vmatprep.mubr.f32.mxu0 0.0
    %3157 = vmatmul.mubr.f32.gmra.mrb[0].mxu0 %v3085
    %v3158 = vpop.f32.mrb[0].mxu0
    %v3159 = vadd.f32 0.0, %v3158
    %v3160 = vpop.f32.mrb[0].mxu0
    %3161 = vdwg.mxu0
    %v3163 = vsel %vm1700, %v2774, 0
    %v3166 = vsel %vm1700, %v2847, 0
    %3168 = vmatprep.subr.mxu0 0.0
    %3169 = vmatpush1.msra.mxu0 %v2998
    %3170 = vmatprep.subr.mxu0 0.0
    %3171 = vmatpush1.msra.mxu0 0.0
    %3172 = vmatprep.subr.mxu0 0.0
    %3173 = vmatpush1.msra.mxu0 0.0
    %3174 = vmatprep.subr.mxu0 0.0
    %3175 = vmatpush1.msra.mxu0 0.0
    %3176 = vmatprep.subr.mxu0 0.0
    %3177 = vmatpush1.msra.mxu0 0.0
    %3178 = vmatprep.subr.mxu0 0.0
    %3179 = vmatpush1.msra.mxu0 0.0
    %3180 = vmatprep.subr.mxu0 0.0
    %3181 = vmatpush1.msra.mxu0 0.0
    %3182 = vmatprep.subr.mxu0 0.0
    %3183 = vmatpush1.msra.mxu0 0.0
    %3184 = vmatprep.subr.mxu0 0.0
    %3185 = vmatpush1.msra.mxu0 0.0
    %3186 = vmatprep.subr.mxu0 0.0
    %3187 = vmatpush1.msra.mxu0 0.0
    %3188 = vmatprep.subr.mxu0 0.0
    %3189 = vmatpush1.msra.mxu0 0.0
    %3190 = vmatprep.subr.mxu0 0.0
    %3191 = vmatpush1.msra.mxu0 0.0
    %3192 = vmatprep.subr.mxu0 0.0
    %3193 = vmatpush1.msra.mxu0 0.0
    %3194 = vmatprep.subr.mxu0 0.0
    %3195 = vmatpush1.msra.mxu0 0.0
    %3196 = vmatprep.subr.mxu0 0.0
    %3197 = vmatpush1.msra.mxu0 0.0
    %3198 = vmatprep.subr.mxu0 0.0
    %3199 = vmatpush1.msra.mxu0 0.0
    %3200 = vmatprep.subr.mxu0 0.0
    %3201 = vmatpush1.msra.mxu0 0.0
    %3202 = vmatprep.subr.mxu0 0.0
    %3203 = vmatpush1.msra.mxu0 0.0
    %3204 = vmatprep.subr.mxu0 0.0
    %3205 = vmatpush1.msra.mxu0 0.0
    %3206 = vmatprep.subr.mxu0 0.0
    %3207 = vmatpush1.msra.mxu0 0.0
    %3208 = vmatprep.subr.mxu0 0.0
    %3209 = vmatpush1.msra.mxu0 0.0
    %3210 = vmatprep.subr.mxu0 0.0
    %3211 = vmatpush1.msra.mxu0 0.0
    %3212 = vmatprep.subr.mxu0 0.0
    %3213 = vmatpush1.msra.mxu0 0.0
    %3214 = vmatprep.subr.mxu0 0.0
    %3215 = vmatpush1.msra.mxu0 0.0
    %3216 = vmatprep.subr.mxu0 0.0
    %3217 = vmatpush1.msra.mxu0 0.0
    %3218 = vmatprep.subr.mxu0 0.0
    %3219 = vmatpush1.msra.mxu0 0.0
    %3220 = vmatprep.subr.mxu0 0.0
    %3221 = vmatpush1.msra.mxu0 0.0
    %3222 = vmatprep.subr.mxu0 0.0
    %3223 = vmatpush1.msra.mxu0 0.0
    %3224 = vmatprep.subr.mxu0 0.0
    %3225 = vmatpush1.msra.mxu0 0.0
    %3226 = vmatprep.subr.mxu0 0.0
    %3227 = vmatpush1.msra.mxu0 0.0
    %3228 = vmatprep.subr.mxu0 0.0
    %3229 = vmatpush1.msra.mxu0 0.0
    %3230 = vmatprep.subr.mxu0 0.0
    %3231 = vmatpush1.msra.mxu0 0.0
    %3232 = vmatprep.mubr.f32.mxu0 0.0
    %3233 = vmatmul.mubr.f32.gmra.mrb[0].mxu0 %v3163
    %v3234 = vpop.f32.mrb[0].mxu0
    %v3235 = vadd.f32 0.0, %v3234
    %v3236 = vpop.f32.mrb[0].mxu0
    %3237 = vmatprep.mubr.f32.mxu0 0.0
    %3238 = vmatmul.mubr.f32.gmra.mrb[0].mxu0 %v3166
    %v3239 = vpop.f32.mrb[0].mxu0
    %v3240 = vadd.f32 0.0, %v3239
    %v3241 = vpop.f32.mrb[0].mxu0
    %3242 = vdwg.mxu0
    %v3244 = vsel %vm1700, %v2920, 0
    %v3247 = vsel %vm1700, %v2993, 0
    %3249 = vmatprep.subr.mxu0 0.0
    %3250 = vmatpush1.msra.mxu0 %v2999
    %3251 = vmatprep.subr.mxu0 0.0
    %3252 = vmatpush1.msra.mxu0 0.0
    %3253 = vmatprep.subr.mxu0 0.0
    %3254 = vmatpush1.msra.mxu0 0.0
    %3255 = vmatprep.subr.mxu0 0.0
    %3256 = vmatpush1.msra.mxu0 0.0
    %3257 = vmatprep.subr.mxu0 0.0
    %3258 = vmatpush1.msra.mxu0 0.0
    %3259 = vmatprep.subr.mxu0 0.0
    %3260 = vmatpush1.msra.mxu0 0.0
    %3261 = vmatprep.subr.mxu0 0.0
    %3262 = vmatpush1.msra.mxu0 0.0
    %3263 = vmatprep.subr.mxu0 0.0
    %3264 = vmatpush1.msra.mxu0 0.0
    %3265 = vmatprep.subr.mxu0 0.0
    %3266 = vmatpush1.msra.mxu0 0.0
    %3267 = vmatprep.subr.mxu0 0.0
    %3268 = vmatpush1.msra.mxu0 0.0
    %3269 = vmatprep.subr.mxu0 0.0
    %3270 = vmatpush1.msra.mxu0 0.0
    %3271 = vmatprep.subr.mxu0 0.0
    %3272 = vmatpush1.msra.mxu0 0.0
    %3273 = vmatprep.subr.mxu0 0.0
    %3274 = vmatpush1.msra.mxu0 0.0
    %3275 = vmatprep.subr.mxu0 0.0
    %3276 = vmatpush1.msra.mxu0 0.0
    %3277 = vmatprep.subr.mxu0 0.0
    %3278 = vmatpush1.msra.mxu0 0.0
    %3279 = vmatprep.subr.mxu0 0.0
    %3280 = vmatpush1.msra.mxu0 0.0
    %3281 = vmatprep.subr.mxu0 0.0
    %3282 = vmatpush1.msra.mxu0 0.0
    %3283 = vmatprep.subr.mxu0 0.0
    %3284 = vmatpush1.msra.mxu0 0.0
    %3285 = vmatprep.subr.mxu0 0.0
    %3286 = vmatpush1.msra.mxu0 0.0
    %3287 = vmatprep.subr.mxu0 0.0
    %3288 = vmatpush1.msra.mxu0 0.0
    %3289 = vmatprep.subr.mxu0 0.0
    %3290 = vmatpush1.msra.mxu0 0.0
    %3291 = vmatprep.subr.mxu0 0.0
    %3292 = vmatpush1.msra.mxu0 0.0
    %3293 = vmatprep.subr.mxu0 0.0
    %3294 = vmatpush1.msra.mxu0 0.0
    %3295 = vmatprep.subr.mxu0 0.0
    %3296 = vmatpush1.msra.mxu0 0.0
    %3297 = vmatprep.subr.mxu0 0.0
    %3298 = vmatpush1.msra.mxu0 0.0
    %3299 = vmatprep.subr.mxu0 0.0
    %3300 = vmatpush1.msra.mxu0 0.0
    %3301 = vmatprep.subr.mxu0 0.0
    %3302 = vmatpush1.msra.mxu0 0.0
    %3303 = vmatprep.subr.mxu0 0.0
    %3304 = vmatpush1.msra.mxu0 0.0
    %3305 = vmatprep.subr.mxu0 0.0
    %3306 = vmatpush1.msra.mxu0 0.0
    %3307 = vmatprep.subr.mxu0 0.0
    %3308 = vmatpush1.msra.mxu0 0.0
    %3309 = vmatprep.subr.mxu0 0.0
    %3310 = vmatpush1.msra.mxu0 0.0
    %3311 = vmatprep.subr.mxu0 0.0
    %3312 = vmatpush1.msra.mxu0 0.0
    %3313 = vmatprep.mubr.f32.mxu0 0.0
    %3314 = vmatmul.mubr.f32.gmra.mrb[0].mxu0 %v3244
    %v3315 = vpop.f32.mrb[0].mxu0
    %v3316 = vadd.f32 0.0, %v3315
    %v3317 = vpop.f32.mrb[0].mxu0
    %3318 = vmatprep.mubr.f32.mxu0 0.0
    %3319 = vmatmul.mubr.f32.gmra.mrb[0].mxu0 %v3247
    %v3320 = vpop.f32.mrb[0].mxu0
    %v3321 = vadd.f32 0.0, %v3320
    %v3322 = vpop.f32.mrb[0].mxu0
    %3323 = vdwg.mxu0
    %v3324 = vsel %vm42, %v3073, 0.0
    %v3325 = vsel %vm42, %v3154, 0.0
    %v3326 = vadd.f32 %v3324, %v3325
    %v3327 = vsel %vm42, %v3235, 0.0
    %v3328 = vadd.f32 %v3326, %v3327
    %v3329 = vsel %vm42, %v3316, 0.0
    %v3330 = vadd.f32 %v3328, %v3329
    %v3331 = vsel %vm42, %v3078, 0.0
    %v3332 = vsel %vm42, %v3159, 0.0
    %v3333 = vadd.f32 %v3331, %v3332
    %v3334 = vsel %vm42, %v3240, 0.0
    %v3335 = vadd.f32 %v3333, %v3334
    %v3336 = vsel %vm42, %v3321, 0.0
    %v3337 = vadd.f32 %v3335, %v3336
    %v3338 = vadd.f32 %v33, %v3330
    %v3339 = vadd.f32 %v34, %v3337
    %v3340 = vld [vmem:[%s4] sm:$0x1]
    %v3341 = vmul.f32 %v3338, %v3338
    %v3342 = vmul.f32 %v3339, %v3339
    %v3343 = vsel %vm42, %v3341, 0.0
    %3344 = vadd.xlane.f32.xlu0 %v3343
    %v3345 = vpop.xlane.xlu0 %3344
    %v3346 = vsel %vm42, %v3342, 0.0
    %3347 = vadd.xlane.f32.xlu0 %v3346
    %v3348 = vpop.xlane.xlu0 %3347
    %v3349 = vmul.f32 %v3345, %v49
    %v3350 = vmul.f32 %v3348, %v49
    %v3351 = vadd.f32 %v3349, 1e-06
    %v3352 = vadd.f32 %v3350, 1e-06
    %v3353 = vrsqrt.pop %v3351
    %v3354 = vrsqrt.pop %v3352
    %v3355 = vmul.f32 %v3338, %v3353
    %v3356 = vmul.f32 %v3339, %v3354
    %v3358 = vlaneseq
    %v3359 = vshrl.u32 %v3358, 7
    %v3360 = vsub.s32 0, %v3359
    %v3361 = vrot.slane %v3340, %v3360
    %v3363 = vmul.f32 %v3355, %v3361
    %v3364 = vmul.f32 %v3356, %v3361
    %v3365 = vld [vmem:[%s7] sm:$0xff]
    %v3366 = vld [vmem:[%s7 + $0x8] sm:$0xff]
    %v3367 = vld [vmem:[%s7 + $0x10] sm:$0xff]
    %v3368 = vld [vmem:[%s7 + $0x18] sm:$0xff]
    %v3370 = vsel %vm42, %v3363, 0
    %v3373 = vsel %vm42, %v3364, 0
    %3375 = vmatprep.subr.mxu0 0.0
    %3376 = vmatpush1.msra.mxu0 %v3365
    %3377 = vmatprep.subr.mxu0 0.0
    %3378 = vmatpush1.msra.mxu0 %v3366
    %3379 = vmatprep.subr.mxu0 0.0
    %3380 = vmatpush1.msra.mxu0 %v3367
    %3381 = vmatprep.subr.mxu0 0.0
    %3382 = vmatpush1.msra.mxu0 %v3368
    %3383 = vmatprep.subr.mxu0 0.0
    %3384 = vmatpush1.msra.mxu0 0.0
    %3385 = vmatprep.subr.mxu0 0.0
    %3386 = vmatpush1.msra.mxu0 0.0
    %3387 = vmatprep.subr.mxu0 0.0
    %3388 = vmatpush1.msra.mxu0 0.0
    %3389 = vmatprep.subr.mxu0 0.0
    %3390 = vmatpush1.msra.mxu0 0.0
    %3391 = vmatprep.subr.mxu0 0.0
    %3392 = vmatpush1.msra.mxu0 0.0
    %3393 = vmatprep.subr.mxu0 0.0
    %3394 = vmatpush1.msra.mxu0 0.0
    %3395 = vmatprep.subr.mxu0 0.0
    %3396 = vmatpush1.msra.mxu0 0.0
    %3397 = vmatprep.subr.mxu0 0.0
    %3398 = vmatpush1.msra.mxu0 0.0
    %3399 = vmatprep.subr.mxu0 0.0
    %3400 = vmatpush1.msra.mxu0 0.0
    %3401 = vmatprep.subr.mxu0 0.0
    %3402 = vmatpush1.msra.mxu0 0.0
    %3403 = vmatprep.subr.mxu0 0.0
    %3404 = vmatpush1.msra.mxu0 0.0
    %3405 = vmatprep.subr.mxu0 0.0
    %3406 = vmatpush1.msra.mxu0 0.0
    %3407 = vmatprep.subr.mxu0 0.0
    %3408 = vmatpush1.msra.mxu0 0.0
    %3409 = vmatprep.subr.mxu0 0.0
    %3410 = vmatpush1.msra.mxu0 0.0
    %3411 = vmatprep.subr.mxu0 0.0
    %3412 = vmatpush1.msra.mxu0 0.0
    %3413 = vmatprep.subr.mxu0 0.0
    %3414 = vmatpush1.msra.mxu0 0.0
    %3415 = vmatprep.subr.mxu0 0.0
    %3416 = vmatpush1.msra.mxu0 0.0
    %3417 = vmatprep.subr.mxu0 0.0
    %3418 = vmatpush1.msra.mxu0 0.0
    %3419 = vmatprep.subr.mxu0 0.0
    %3420 = vmatpush1.msra.mxu0 0.0
    %3421 = vmatprep.subr.mxu0 0.0
    %3422 = vmatpush1.msra.mxu0 0.0
    %3423 = vmatprep.subr.mxu0 0.0
    %3424 = vmatpush1.msra.mxu0 0.0
    %3425 = vmatprep.subr.mxu0 0.0
    %3426 = vmatpush1.msra.mxu0 0.0
    %3427 = vmatprep.subr.mxu0 0.0
    %3428 = vmatpush1.msra.mxu0 0.0
    %3429 = vmatprep.subr.mxu0 0.0
    %3430 = vmatpush1.msra.mxu0 0.0
    %3431 = vmatprep.subr.mxu0 0.0
    %3432 = vmatpush1.msra.mxu0 0.0
    %3433 = vmatprep.subr.mxu0 0.0
    %3434 = vmatpush1.msra.mxu0 0.0
    %3435 = vmatprep.subr.mxu0 0.0
    %3436 = vmatpush1.msra.mxu0 0.0
    %3437 = vmatprep.subr.mxu0 0.0
    %3438 = vmatpush1.msra.mxu0 0.0
    %3439 = vmatprep.mubr.f32.mxu0 0.0
    %3440 = vmatmul.mubr.f32.gmra.mrb[0].mxu0 %v3370
    %v3441 = vpop.f32.mrb[0].mxu0
    %v3442 = vadd.f32 0.0, %v3441
    %v3443 = vpop.f32.mrb[0].mxu0
    %3444 = vmatprep.mubr.f32.mxu0 0.0
    %3445 = vmatmul.mubr.f32.gmra.mrb[0].mxu0 %v3373
    %v3446 = vpop.f32.mrb[0].mxu0
    %v3447 = vadd.f32 0.0, %v3446
    %v3448 = vpop.f32.mrb[0].mxu0
    %3449 = vdwg.mxu0
    %v3450 = vxor.u32 %v3442, 2147483648
    %v3451 = vxor.u32 %v3447, 2147483648
    %v3452 = vmul.f32 %v3450, 1.442695
    %v3453 = vpow.pop %v3452
    %v3454 = vmul.f32 %v3451, 1.442695
    %v3455 = vpow.pop %v3454
    %v3456 = vadd.f32 %v3453, 1.0
    %v3457 = vadd.f32 %v3455, 1.0
    %v3458 = vrcp.pop %v3456
    %v3459 = vmul.f32 1.0, %v3458
    %v3460 = vrcp.pop %v3457
    %v3461 = vmul.f32 1.0, %v3460
    %v3462 = vmul.f32 %v3442, %v3459
    %v3463 = vmul.f32 %v3447, %v3461
    %3466 = vrot.lane.b32.xlu0 %v3442, 64
    %v3467 = vpop.permute.xlu0 %3466
    %3468 = vrot.lane.b32.xlu0 %v3447, 64
    %v3469 = vpop.permute.xlu0 %3468
    %v3472 = vmul.f32 %v3462, %v3467
    %v3473 = vmul.f32 %v3463, %v3469
    %v3474 = vld [vmem:[%s8] sm:$0xff]
    %v3475 = vld [vmem:[%s8 + $0x8] sm:$0xff]
    %v3476 = vld [vmem:[%s8 + $0x10] sm:$0xff]
    %v3477 = vld [vmem:[%s8 + $0x18] sm:$0xff]
    %v3478 = vld [vmem:[%s8 + $0x20] sm:$0xff]
    %v3479 = vld [vmem:[%s8 + $0x28] sm:$0xff]
    %v3480 = vld [vmem:[%s8 + $0x30] sm:$0xff]
    %v3481 = vld [vmem:[%s8 + $0x38] sm:$0xff]
    %vm3482 = vcmask 523264
    %v3484 = vsel %vm3482, %v3472, 0
    %v3487 = vsel %vm3482, %v3473, 0
    %3489 = vmatprep.subr.mxu0 0.0
    %3490 = vmatpush1.msra.mxu0 %v3474
    %3491 = vmatprep.subr.mxu0 0.0
    %3492 = vmatpush1.msra.mxu0 %v3475
    %3493 = vmatprep.subr.mxu0 0.0
    %3494 = vmatpush1.msra.mxu0 %v3476
    %3495 = vmatprep.subr.mxu0 0.0
    %3496 = vmatpush1.msra.mxu0 %v3477
    %3497 = vmatprep.subr.mxu0 0.0
    %3498 = vmatpush1.msra.mxu0 %v3478
    %3499 = vmatprep.subr.mxu0 0.0
    %3500 = vmatpush1.msra.mxu0 %v3479
    %3501 = vmatprep.subr.mxu0 0.0
    %3502 = vmatpush1.msra.mxu0 %v3480
    %3503 = vmatprep.subr.mxu0 0.0
    %3504 = vmatpush1.msra.mxu0 %v3481
    %3505 = vmatprep.subr.mxu0 0.0
    %3506 = vmatpush1.msra.mxu0 0.0
    %3507 = vmatprep.subr.mxu0 0.0
    %3508 = vmatpush1.msra.mxu0 0.0
    %3509 = vmatprep.subr.mxu0 0.0
    %3510 = vmatpush1.msra.mxu0 0.0
    %3511 = vmatprep.subr.mxu0 0.0
    %3512 = vmatpush1.msra.mxu0 0.0
    %3513 = vmatprep.subr.mxu0 0.0
    %3514 = vmatpush1.msra.mxu0 0.0
    %3515 = vmatprep.subr.mxu0 0.0
    %3516 = vmatpush1.msra.mxu0 0.0
    %3517 = vmatprep.subr.mxu0 0.0
    %3518 = vmatpush1.msra.mxu0 0.0
    %3519 = vmatprep.subr.mxu0 0.0
    %3520 = vmatpush1.msra.mxu0 0.0
    %3521 = vmatprep.subr.mxu0 0.0
    %3522 = vmatpush1.msra.mxu0 0.0
    %3523 = vmatprep.subr.mxu0 0.0
    %3524 = vmatpush1.msra.mxu0 0.0
    %3525 = vmatprep.subr.mxu0 0.0
    %3526 = vmatpush1.msra.mxu0 0.0
    %3527 = vmatprep.subr.mxu0 0.0
    %3528 = vmatpush1.msra.mxu0 0.0
    %3529 = vmatprep.subr.mxu0 0.0
    %3530 = vmatpush1.msra.mxu0 0.0
    %3531 = vmatprep.subr.mxu0 0.0
    %3532 = vmatpush1.msra.mxu0 0.0
    %3533 = vmatprep.subr.mxu0 0.0
    %3534 = vmatpush1.msra.mxu0 0.0
    %3535 = vmatprep.subr.mxu0 0.0
    %3536 = vmatpush1.msra.mxu0 0.0
    %3537 = vmatprep.subr.mxu0 0.0
    %3538 = vmatpush1.msra.mxu0 0.0
    %3539 = vmatprep.subr.mxu0 0.0
    %3540 = vmatpush1.msra.mxu0 0.0
    %3541 = vmatprep.subr.mxu0 0.0
    %3542 = vmatpush1.msra.mxu0 0.0
    %3543 = vmatprep.subr.mxu0 0.0
    %3544 = vmatpush1.msra.mxu0 0.0
    %3545 = vmatprep.subr.mxu0 0.0
    %3546 = vmatpush1.msra.mxu0 0.0
    %3547 = vmatprep.subr.mxu0 0.0
    %3548 = vmatpush1.msra.mxu0 0.0
    %3549 = vmatprep.subr.mxu0 0.0
    %3550 = vmatpush1.msra.mxu0 0.0
    %3551 = vmatprep.subr.mxu0 0.0
    %3552 = vmatpush1.msra.mxu0 0.0
    %3553 = vmatprep.mubr.f32.mxu0 0.0
    %3554 = vmatmul.mubr.f32.gmra.mrb[0].mxu0 %v3484
    %v3555 = vpop.f32.mrb[0].mxu0
    %v3556 = vadd.f32 0.0, %v3555
    %v3557 = vpop.f32.mrb[0].mxu0
    %3558 = vmatprep.mubr.f32.mxu0 0.0
    %3559 = vmatmul.mubr.f32.gmra.mrb[0].mxu0 %v3487
    %v3560 = vpop.f32.mrb[0].mxu0
    %v3561 = vadd.f32 0.0, %v3560
    %v3562 = vpop.f32.mrb[0].mxu0
    %3563 = vdwg.mxu0
    %v3564 = vadd.f32 %v3338, %v3556
    %v3565 = vadd.f32 %v3339, %v3561
    %3566 = vst.msk [vmem:[#allocation2] sm:$0xff] %vm42, %v3564
    %3567 = vst.msk [vmem:[#allocation2 + $0x8] sm:$0xff] %vm42, %v3565
    // Predicated region
    $region38: #{llama_decoder_layer.1} parent=1 // pred_check
      _
    $region39: #{llama_decoder_layer.1} parent=1 // pred_check_branch
      %3569 = sbr.rel (0) target = $region41
    $region40: #{llama_decoder_layer.1} parent=1 // pred_region
      %s3571 = ssub.s32 256, 256
      %3572 = vsyncadd [#allocation3], %s3571
      %s3573 = sshll.u32 [#allocation2], 4
      %s3574 = int_to_ptr.vmem [resolvable:$true] %s3573
      %3579 = dma.vmem_to_hbm [thread:$0]  %s3574, 256, %s9, [#allocation3], 128, 128, 8
    $region41: #{llama_decoder_layer.1} parent=1 // pred_fallthru
      _
    // Predicated region
    $region42: #{llama_decoder_layer.1} parent=1 // pred_check
      _
    $region43: #{llama_decoder_layer.1} parent=1 // pred_check_branch
      %3581 = sbr.rel (0) target = $region45
    $region44: #{llama_decoder_layer.1} parent=1 // pred_region
      %3582 = dma.done [#allocation3], 256
    $region45: #{llama_decoder_layer.1} parent=1 // pred_fallthru
      _
    %3583 = vsyncpa [#allocation3], 1

</llo_original>
